<compile_context>
chip_gen: v5e
topology: v5e:2x2
jax: 0.10.0
libtpu: 0.0.40
codegen_flags: <defaults>
</compile_context>

<pallas_src>
import numpy as np
import jax
import jax.numpy as jnp
from jax.experimental import pallas as pl
from jax.experimental.pallas import tpu as pltpu


_VMEM = pl.BlockSpec(memory_space=pltpu.MemorySpace.VMEM)


# ---------------------------- fused Pallas kernel ----------------------------

def fused_forward_kernel(x_ref, t1_ref, t2_ref, pack_ref, wf2_ref, wf1_hbm_ref,
                         out_ref, wf1_vmem, wf1_sem):
    """Whole forward pass for a batch-stacked (N*28, 28) input."""
    nb = x_ref.shape[0] // 28                      # batch size (static)
    R = 28 * nb - 4                                # conv1 output rows (tall)
    P = 12 * nb                                    # pooled rows (tall)
    Q = P - 2                                      # conv2 output rows (tall)

    # Kick off the dominant DMA (int8 fc1 weight, ~1 MB) so it overlaps with the
    # conv/pool stage below; waited on just before the fc1 accumulation.
    wf1_copy = pltpu.make_async_copy(wf1_hbm_ref, wf1_vmem, wf1_sem)
    wf1_copy.start()

    # Unpack the small constants (single packed operand).
    b1 = pack_ref[0:1, 0:240]                      # conv1 bias, lane layout ow*10+c
    b2 = pack_ref[1:2, 0:200]                      # conv2 bias, lane layout ow2*20+c2
    bf1s = pack_ref[2:3, 0:500]                    # b_fc1 / quant_scale
    bf2 = pack_ref[3:4, 0:10]                      # fc2 bias
    prow = pack_ref[4:4 + P, 0:R - 1]              # pool row-select (P, R-1)
    sel = pack_ref[4 + P:4 + P + 10 * nb, 0:Q]     # fc1 LHS gather (10*nb, Q)

    # ---- conv1 (5x5, 1->10) + bias + relu, all images at once ----
    # a[n*28 + r, ow*10 + c] = relu(conv1)[n, c, r, ow] for r in 0..23; rows
    # r in 24..27 of each image are finite cross-image junk, never read below.
    xs = x_ref[...]                                # (nb*28, 28) f32
    a = jnp.dot(xs[0:R, :], t1_ref[0].astype(jnp.float32),
                preferred_element_type=jnp.float32)
    for ki in range(1, 5):
        a += jnp.dot(xs[ki:ki + R, :], t1_ref[ki].astype(jnp.float32),
                     preferred_element_type=jnp.float32)
    a = jnp.maximum(a + b1, 0.0)                   # (R, 240)

    # ---- 2x2 max-pool, stride 2 (shifted maxima + constant row-select) ----
    colmax = jnp.maximum(a[:, 0:230], a[:, 10:240])          # pair cols (dw)
    rowmax = jnp.maximum(colmax[0:R - 1, :], colmax[1:R, :])  # pair rows (dh)
    pooled = jnp.dot(prow, rowmax, preferred_element_type=jnp.float32)  # (P, 230)
    # pooled[n*12 + ph, 20*pw + c] = maxpool(relu(conv1))[n, c, ph, pw]; the
    # odd-output-column lanes hold finite junk that t2's zero rows cancel
    # (asserted in prepare_params).

    # ---- conv2 (3x3, 10->20) + bias + relu ----
    b = jnp.dot(pooled[0:Q, :], t2_ref[0].astype(jnp.float32),
                preferred_element_type=jnp.float32)
    for ki2 in range(1, 3):
        b += jnp.dot(pooled[ki2:ki2 + Q, :], t2_ref[ki2].astype(jnp.float32),
                     preferred_element_type=jnp.float32)
    b = jnp.maximum(b + b2, 0.0)                   # (Q, 200); rows n*12+{10,11} junk

    # One contiguous (10*nb, 200) block in [oh2-major, image-minor] order so the
    # fc1 loop uses plain static sublane slices (no per-iteration gathers).
    block = jnp.dot(sel, b, preferred_element_type=jnp.float32)

    # ---- fc1 (2000 -> 500) + relu; int8 weight dequantized on use ----
    wf1_copy.wait()
    acc = jnp.dot(block[0:nb, :], wf1_vmem[0].astype(jnp.float32),
                  preferred_element_type=jnp.float32)
    for oh2 in range(1, 10):
        acc += jnp.dot(block[oh2 * nb:(oh2 + 1) * nb, :],
                       wf1_vmem[oh2].astype(jnp.float32),
                       preferred_element_type=jnp.float32)
    # Per-output-column quant scale is folded into bf1s / wf2 at prepare time.
    h = jnp.maximum(acc + bf1s, 0.0)               # (nb, 500)

    # ---- fc2 (500 -> 10) + log_softmax ----
    logits = jnp.dot(h, wf2_ref[...], preferred_element_type=jnp.float32) + bf2
    m = jnp.max(logits, axis=1, keepdims=True)
    shifted = logits - m
    lse = jnp.log(jnp.sum(jnp.exp(shifted), axis=1, keepdims=True))
    out_ref[...] = shifted - lse


# ----------------------- one-time parameter repackaging ----------------------

def prepare_params(p, batch_size):
    """Pure layout/precision transforms of the PyTorch-layout params (run once).

      t1[ki, j, ow*10+c]                   = w_c1[c, 0, ki, j-ow]          (bf16)
      t2[ki2, 20*(ow2+kj2)+cin, ow2*20+c2] = w_c2[c2, cin, ki2, kj2]       (bf16)
      wf1_q[oh2, ow2*20+c2, f]             = round(w_fc1[c2*100+oh2*10+ow2, f]/s[f])
      pack                                 = biases + pool/select matrices (f32)
    """
    n = int(batch_size)
    assert 1 <= n <= 18, "packed pool/select matrices sized for small batches"

    w1 = np.asarray(p["w_c1"], np.float32)                 # (10, 1, 5, 5)
    e1 = np.zeros((28, 24, 5), np.float32)
    for ow in range(24):
        for kj in range(5):
            e1[ow + kj, ow, kj] = 1.0
    t1 = np.einsum("jwk,cik->ijwc", e1, w1[:, 0]).reshape(5, 28, 240)

    w2 = np.asarray(p["w_c2"], np.float32)                 # (20, 10, 3, 3)
    e2 = np.zeros((230, 10, 10, 3), np.float32)
    for ow2 in range(10):
        for cin in range(10):
            for kj2 in range(3):
                e2[20 * (ow2 + kj2) + cin, ow2, cin, kj2] = 1.0
    t2 = np.einsum("lwnk,cnik->ilwc", e2, w2).reshape(3, 230, 200)

    # Max-pool correctness relies on t2 having all-zero rows at the "odd output
    # column" junk lanes of the pooled activation.  Assert that structure here.
    odd_lanes = [l for l in range(230) if (l // 10) % 2 == 1]
    assert np.all(t2[:, odd_lanes, :] == 0.0), "t2 junk-cancelling rows not zero"

    # fc1 weight: fold PyTorch NCHW flatten into row order, then int8-quantize
    # with one scale per output column.
    wf1 = (np.asarray(p["w_fc1"], np.float32)
           .reshape(20, 10, 10, 500).transpose(1, 2, 0, 3).reshape(10, 200, 500))
    s = np.maximum(np.max(np.abs(wf1), axis=(0, 1)) / 127.0, 1e-8)   # (500,)
    wf1_q = np.clip(np.rint(wf1 / s), -127, 127).astype(np.int8)
    # relu(acc*s + b) == s*relu(acc + b/s) for s > 0: fold s into b_fc1 / w_fc2.
    bf1_div_s = np.asarray(p["b_fc1"], np.float32) / s
    wf2_scaled = np.asarray(p["w_fc2"], np.float32) * s[:, None]

    # Pack the small operands into one array (one DMA instead of six).
    pack = np.zeros((4 + 22 * n, 512), np.float32)
    pack[0, :240] = np.tile(np.asarray(p["b_c1"], np.float32), 24)
    pack[1, :200] = np.tile(np.asarray(p["b_c2"], np.float32), 10)
    pack[2, :500] = bf1_div_s
    pack[3, :10] = np.asarray(p["b_fc2"], np.float32)
    for bimg in range(n):                                  # pool row-select (12n, 28n-5)
        for ph in range(12):
            pack[4 + bimg * 12 + ph, bimg * 28 + 2 * ph] = 1.0
    base = 4 + 12 * n                                      # fc1 LHS gather (10n, 12n-2)
    for oh2 in range(10):
        for bimg in range(n):
            pack[base + oh2 * n + bimg, bimg * 12 + oh2] = 1.0

    return {
        "t1": jnp.asarray(t1, jnp.bfloat16),
        "t2": jnp.asarray(t2, jnp.bfloat16),
        "pack": jnp.asarray(pack),
        "wf2": jnp.asarray(wf2_scaled, jnp.float32),
        "wf1_q": jnp.asarray(wf1_q),                       # int8
    }


@jax.jit
def forward(x_nchw, prepped):
    n = x_nchw.shape[0]
    assert prepped["pack"].shape[0] == 4 + 22 * n, \
        "prepared params were built for a different batch size"
    x = x_nchw.reshape(n * 28, 28)                         # Cin == 1, batch-stacked rows
    return pl.pallas_call(
        fused_forward_kernel,
        out_shape=jax.ShapeDtypeStruct((n, 10), jnp.float32),
        in_specs=[_VMEM, _VMEM, _VMEM, _VMEM, _VMEM,
                  pl.BlockSpec(memory_space=pl.ANY)],      # wf1_q stays in HBM; manual DMA
        out_specs=_VMEM,
        scratch_shapes=[pltpu.VMEM((10, 200, 500), jnp.int8),
                        pltpu.SemaphoreType.DMA],
    )(x, prepped["t1"], prepped["t2"], prepped["pack"], prepped["wf2"],
      prepped["wf1_q"])
    # TODO(synk): for batch >= ~8, add a "parallel" batch grid axis (constant
    # index_maps for weights) to engage v7x's second TensorCore; at N=2 the
    # per-step grid overhead would outweigh the win.


# ------------------------ deterministic parameter init -----------------------

def init_params(key):
    ks = jax.random.split(key, 8)

    def u(k, shape, fan_in):
        bound = 1.0 / jnp.sqrt(float(fan_in))
        return jax.random.uniform(k, shape, jnp.float32, -bound, bound)

    return {
        "w_c1": u(ks[0], (10, 1, 5, 5), 1 * 5 * 5),
        "b_c1": u(ks[1], (10,), 1 * 5 * 5),
        "w_c2": u(ks[2], (20, 10, 3, 3), 10 * 3 * 3),
        "b_c2": u(ks[3], (20,), 10 * 3 * 3),
        # stored transposed vs. PyTorch: (in_features, out_features), rows in NCHW order
        "w_fc1": u(ks[4], (20 * 10 * 10, 500), 20 * 10 * 10),
        "b_fc1": u(ks[5], (500,), 20 * 10 * 10),
        "w_fc2": u(ks[6], (500, 10), 500),
        "b_fc2": u(ks[7], (10,), 500),
    }


# ------------------------ pure-JAX reference (semantics) ---------------------

def reference_forward(x, p):
    dn = ("NCHW", "OIHW", "NCHW")
    y = jax.lax.conv_general_dilated(x, p["w_c1"], (1, 1), "VALID", dimension_numbers=dn)
    y = jnp.maximum(y + p["b_c1"].reshape(1, -1, 1, 1), 0.0)
    y = jax.lax.reduce_window(y, -jnp.inf, jax.lax.max, (1, 1, 2, 2), (1, 1, 2, 2), "VALID")
    y = jax.lax.conv_general_dilated(y, p["w_c2"], (1, 1), "VALID", dimension_numbers=dn)
    y = jnp.maximum(y + p["b_c2"].reshape(1, -1, 1, 1), 0.0)
    y = y.reshape(y.shape[0], -1)                          # PyTorch NCHW flatten
    y = jnp.maximum(y @ p["w_fc1"] + p["b_fc1"], 0.0)
    y = y @ p["w_fc2"] + p["b_fc2"]
    return jax.nn.log_softmax(y, axis=1)


if __name__ == "__main__":
    key = jax.random.PRNGKey(0)
    pkey, xkey = jax.random.split(key)
    params = init_params(pkey)
    x = jax.random.normal(xkey, (2, 1, 28, 28), jnp.float32)   # MNIST-style input
    prepped = prepare_params(params, batch_size=x.shape[0])

    out = jax.block_until_ready(forward(x, prepped))

    assert out.shape == (2, 10)
    # log_softmax rows must exponentiate-and-sum to 1
    assert bool(jnp.all(jnp.abs(jnp.sum(jnp.exp(out), axis=1) - 1.0) < 1e-4))
    # end-to-end check vs pure-JAX reference (tolerance covers bf16 t1/t2 + int8 fc1)
    ref = reference_forward(x, params)
    max_err = float(jnp.max(jnp.abs(out - ref)))
    assert max_err < 0.15, f"mismatch vs reference: {max_err}"
    print("KERNEL_OK")
</pallas_src>

<mosaic_0001>
module attributes {stable_mosaic.version = 11 : i64} {
  func.func @fused_forward_kernel(%arg0: memref<56x28xf32, #tpu.memory_space<vmem>>, %arg1: memref<5x28x240xbf16, #tpu.memory_space<vmem>>, %arg2: memref<3x230x200xbf16, #tpu.memory_space<vmem>>, %arg3: memref<48x512xf32, #tpu.memory_space<vmem>>, %arg4: memref<500x10xf32, #tpu.memory_space<vmem>>, %arg5: memref<10x200x500xi8, #tpu.memory_space<any>>, %arg6: memref<2x10xf32, #tpu.memory_space<vmem>>, %arg7: memref<10x200x500xi8, #tpu.memory_space<vmem>>, %arg8: memref<!tpu.dma_semaphore, #tpu.memory_space<semaphore_mem>>) attributes {dimension_semantics = [], scalar_prefetch = 0 : i64, scratch_operands = 2 : i64, tpu.core_type = #tpu.core_type<tc>} {
    tpu.enqueue_dma source(%arg5 : memref<10x200x500xi8, #tpu.memory_space<any>>) target(%arg7 : memref<10x200x500xi8, #tpu.memory_space<vmem>>) target_semaphore(%arg8 : memref<!tpu.dma_semaphore, #tpu.memory_space<semaphore_mem>>)
    %c0 = arith.constant 0 : index
    %c0_0 = arith.constant 0 : index
    %0 = vector.load %arg3[%c0, %c0_0] : memref<48x512xf32, #tpu.memory_space<vmem>>, vector<1x240xf32>
    %c1 = arith.constant 1 : index
    %c0_1 = arith.constant 0 : index
    %1 = vector.load %arg3[%c1, %c0_1] : memref<48x512xf32, #tpu.memory_space<vmem>>, vector<1x200xf32>
    %c2 = arith.constant 2 : index
    %c0_2 = arith.constant 0 : index
    %2 = vector.load %arg3[%c2, %c0_2] : memref<48x512xf32, #tpu.memory_space<vmem>>, vector<1x500xf32>
    %c3 = arith.constant 3 : index
    %c0_3 = arith.constant 0 : index
    %3 = vector.load %arg3[%c3, %c0_3] : memref<48x512xf32, #tpu.memory_space<vmem>>, vector<1x10xf32>
    %c4 = arith.constant 4 : index
    %c0_4 = arith.constant 0 : index
    %4 = vector.load %arg3[%c4, %c0_4] : memref<48x512xf32, #tpu.memory_space<vmem>>, vector<24x51xf32>
    %c28 = arith.constant 28 : index
    %c0_5 = arith.constant 0 : index
    %5 = vector.load %arg3[%c28, %c0_5] : memref<48x512xf32, #tpu.memory_space<vmem>>, vector<20x22xf32>
    %c0_6 = arith.constant 0 : index
    %c0_7 = arith.constant 0 : index
    %6 = vector.load %arg0[%c0_6, %c0_7] : memref<56x28xf32, #tpu.memory_space<vmem>>, vector<56x28xf32>
    %7 = vector.extract_strided_slice %6 {offsets = [0, 0], sizes = [52, 28], strides = [1, 1]} : vector<56x28xf32> to vector<52x28xf32>
    %c0_8 = arith.constant 0 : index
    %c0_9 = arith.constant 0 : index
    %c0_10 = arith.constant 0 : index
    %8 = vector.load %arg1[%c0_8, %c0_9, %c0_10] : memref<5x28x240xbf16, #tpu.memory_space<vmem>>, vector<1x28x240xbf16>
    %9 = vector.shape_cast %8 : vector<1x28x240xbf16> to vector<28x240xbf16>
    %10 = arith.extf %9 : vector<28x240xbf16> to vector<28x240xf32>
    %cst = arith.constant dense<0.000000e+00> : vector<52x240xf32>
    %11 = tpu.matmul %7, %10, %cst {dimension_numbers = #tpu.dot_dimension_numbers<[1], [0], [0], [1], [0, 0, 1, 1], [], []>} : vector<52x28xf32>, vector<28x240xf32>, vector<52x240xf32> -> vector<52x240xf32>
    %12 = vector.extract_strided_slice %6 {offsets = [1, 0], sizes = [52, 28], strides = [1, 1]} : vector<56x28xf32> to vector<52x28xf32>
    %c1_11 = arith.constant 1 : index
    %c0_12 = arith.constant 0 : index
    %c0_13 = arith.constant 0 : index
    %13 = vector.load %arg1[%c1_11, %c0_12, %c0_13] : memref<5x28x240xbf16, #tpu.memory_space<vmem>>, vector<1x28x240xbf16>
    %14 = vector.shape_cast %13 : vector<1x28x240xbf16> to vector<28x240xbf16>
    %15 = arith.extf %14 : vector<28x240xbf16> to vector<28x240xf32>
    %cst_14 = arith.constant dense<0.000000e+00> : vector<52x240xf32>
    %16 = tpu.matmul %12, %15, %cst_14 {dimension_numbers = #tpu.dot_dimension_numbers<[1], [0], [0], [1], [0, 0, 1, 1], [], []>} : vector<52x28xf32>, vector<28x240xf32>, vector<52x240xf32> -> vector<52x240xf32>
    %17 = arith.addf %11, %16 : vector<52x240xf32>
    %18 = vector.extract_strided_slice %6 {offsets = [2, 0], sizes = [52, 28], strides = [1, 1]} : vector<56x28xf32> to vector<52x28xf32>
    %c2_15 = arith.constant 2 : index
    %c0_16 = arith.constant 0 : index
    %c0_17 = arith.constant 0 : index
    %19 = vector.load %arg1[%c2_15, %c0_16, %c0_17] : memref<5x28x240xbf16, #tpu.memory_space<vmem>>, vector<1x28x240xbf16>
    %20 = vector.shape_cast %19 : vector<1x28x240xbf16> to vector<28x240xbf16>
    %21 = arith.extf %20 : vector<28x240xbf16> to vector<28x240xf32>
    %cst_18 = arith.constant dense<0.000000e+00> : vector<52x240xf32>
    %22 = tpu.matmul %18, %21, %cst_18 {dimension_numbers = #tpu.dot_dimension_numbers<[1], [0], [0], [1], [0, 0, 1, 1], [], []>} : vector<52x28xf32>, vector<28x240xf32>, vector<52x240xf32> -> vector<52x240xf32>
    %23 = arith.addf %17, %22 : vector<52x240xf32>
    %24 = vector.extract_strided_slice %6 {offsets = [3, 0], sizes = [52, 28], strides = [1, 1]} : vector<56x28xf32> to vector<52x28xf32>
    %c3_19 = arith.constant 3 : index
    %c0_20 = arith.constant 0 : index
    %c0_21 = arith.constant 0 : index
    %25 = vector.load %arg1[%c3_19, %c0_20, %c0_21] : memref<5x28x240xbf16, #tpu.memory_space<vmem>>, vector<1x28x240xbf16>
    %26 = vector.shape_cast %25 : vector<1x28x240xbf16> to vector<28x240xbf16>
    %27 = arith.extf %26 : vector<28x240xbf16> to vector<28x240xf32>
    %cst_22 = arith.constant dense<0.000000e+00> : vector<52x240xf32>
    %28 = tpu.matmul %24, %27, %cst_22 {dimension_numbers = #tpu.dot_dimension_numbers<[1], [0], [0], [1], [0, 0, 1, 1], [], []>} : vector<52x28xf32>, vector<28x240xf32>, vector<52x240xf32> -> vector<52x240xf32>
    %29 = arith.addf %23, %28 : vector<52x240xf32>
    %30 = vector.extract_strided_slice %6 {offsets = [4, 0], sizes = [52, 28], strides = [1, 1]} : vector<56x28xf32> to vector<52x28xf32>
    %c4_23 = arith.constant 4 : index
    %c0_24 = arith.constant 0 : index
    %c0_25 = arith.constant 0 : index
    %31 = vector.load %arg1[%c4_23, %c0_24, %c0_25] : memref<5x28x240xbf16, #tpu.memory_space<vmem>>, vector<1x28x240xbf16>
    %32 = vector.shape_cast %31 : vector<1x28x240xbf16> to vector<28x240xbf16>
    %33 = arith.extf %32 : vector<28x240xbf16> to vector<28x240xf32>
    %cst_26 = arith.constant dense<0.000000e+00> : vector<52x240xf32>
    %34 = tpu.matmul %30, %33, %cst_26 {dimension_numbers = #tpu.dot_dimension_numbers<[1], [0], [0], [1], [0, 0, 1, 1], [], []>} : vector<52x28xf32>, vector<28x240xf32>, vector<52x240xf32> -> vector<52x240xf32>
    %35 = arith.addf %29, %34 : vector<52x240xf32>
    %36 = vector.broadcast %0 : vector<1x240xf32> to vector<52x240xf32>
    %37 = arith.addf %35, %36 : vector<52x240xf32>
    %cst_27 = arith.constant 0.000000e+00 : f32
    %38 = vector.broadcast %cst_27 : f32 to vector<52x240xf32>
    %39 = arith.maximumf %37, %38 : vector<52x240xf32>
    %40 = vector.extract_strided_slice %39 {offsets = [0, 0], sizes = [52, 230], strides = [1, 1]} : vector<52x240xf32> to vector<52x230xf32>
    %41 = vector.extract_strided_slice %39 {offsets = [0, 10], sizes = [52, 230], strides = [1, 1]} : vector<52x240xf32> to vector<52x230xf32>
    %42 = arith.maximumf %40, %41 : vector<52x230xf32>
    %43 = vector.extract_strided_slice %42 {offsets = [0, 0], sizes = [51, 230], strides = [1, 1]} : vector<52x230xf32> to vector<51x230xf32>
    %44 = vector.extract_strided_slice %42 {offsets = [1, 0], sizes = [51, 230], strides = [1, 1]} : vector<52x230xf32> to vector<51x230xf32>
    %45 = arith.maximumf %43, %44 : vector<51x230xf32>
    %cst_28 = arith.constant dense<0.000000e+00> : vector<24x230xf32>
    %46 = tpu.matmul %4, %45, %cst_28 {dimension_numbers = #tpu.dot_dimension_numbers<[1], [0], [0], [1], [0, 0, 1, 1], [], []>} : vector<24x51xf32>, vector<51x230xf32>, vector<24x230xf32> -> vector<24x230xf32>
    %47 = vector.extract_strided_slice %46 {offsets = [0, 0], sizes = [22, 230], strides = [1, 1]} : vector<24x230xf32> to vector<22x230xf32>
    %c0_29 = arith.constant 0 : index
    %c0_30 = arith.constant 0 : index
    %c0_31 = arith.constant 0 : index
    %48 = vector.load %arg2[%c0_29, %c0_30, %c0_31] : memref<3x230x200xbf16, #tpu.memory_space<vmem>>, vector<1x230x200xbf16>
    %49 = vector.shape_cast %48 : vector<1x230x200xbf16> to vector<230x200xbf16>
    %50 = arith.extf %49 : vector<230x200xbf16> to vector<230x200xf32>
    %cst_32 = arith.constant dense<0.000000e+00> : vector<22x200xf32>
    %51 = tpu.matmul %47, %50, %cst_32 {dimension_numbers = #tpu.dot_dimension_numbers<[1], [0], [0], [1], [0, 0, 1, 1], [], []>} : vector<22x230xf32>, vector<230x200xf32>, vector<22x200xf32> -> vector<22x200xf32>
    %52 = vector.extract_strided_slice %46 {offsets = [1, 0], sizes = [22, 230], strides = [1, 1]} : vector<24x230xf32> to vector<22x230xf32>
    %c1_33 = arith.constant 1 : index
    %c0_34 = arith.constant 0 : index
    %c0_35 = arith.constant 0 : index
    %53 = vector.load %arg2[%c1_33, %c0_34, %c0_35] : memref<3x230x200xbf16, #tpu.memory_space<vmem>>, vector<1x230x200xbf16>
    %54 = vector.shape_cast %53 : vector<1x230x200xbf16> to vector<230x200xbf16>
    %55 = arith.extf %54 : vector<230x200xbf16> to vector<230x200xf32>
    %cst_36 = arith.constant dense<0.000000e+00> : vector<22x200xf32>
    %56 = tpu.matmul %52, %55, %cst_36 {dimension_numbers = #tpu.dot_dimension_numbers<[1], [0], [0], [1], [0, 0, 1, 1], [], []>} : vector<22x230xf32>, vector<230x200xf32>, vector<22x200xf32> -> vector<22x200xf32>
    %57 = arith.addf %51, %56 : vector<22x200xf32>
    %58 = vector.extract_strided_slice %46 {offsets = [2, 0], sizes = [22, 230], strides = [1, 1]} : vector<24x230xf32> to vector<22x230xf32>
    %c2_37 = arith.constant 2 : index
    %c0_38 = arith.constant 0 : index
    %c0_39 = arith.constant 0 : index
    %59 = vector.load %arg2[%c2_37, %c0_38, %c0_39] : memref<3x230x200xbf16, #tpu.memory_space<vmem>>, vector<1x230x200xbf16>
    %60 = vector.shape_cast %59 : vector<1x230x200xbf16> to vector<230x200xbf16>
    %61 = arith.extf %60 : vector<230x200xbf16> to vector<230x200xf32>
    %cst_40 = arith.constant dense<0.000000e+00> : vector<22x200xf32>
    %62 = tpu.matmul %58, %61, %cst_40 {dimension_numbers = #tpu.dot_dimension_numbers<[1], [0], [0], [1], [0, 0, 1, 1], [], []>} : vector<22x230xf32>, vector<230x200xf32>, vector<22x200xf32> -> vector<22x200xf32>
    %63 = arith.addf %57, %62 : vector<22x200xf32>
    %64 = vector.broadcast %1 : vector<1x200xf32> to vector<22x200xf32>
    %65 = arith.addf %63, %64 : vector<22x200xf32>
    %cst_41 = arith.constant 0.000000e+00 : f32
    %66 = vector.broadcast %cst_41 : f32 to vector<22x200xf32>
    %67 = arith.maximumf %65, %66 : vector<22x200xf32>
    %cst_42 = arith.constant dense<0.000000e+00> : vector<20x200xf32>
    %68 = tpu.matmul %5, %67, %cst_42 {dimension_numbers = #tpu.dot_dimension_numbers<[1], [0], [0], [1], [0, 0, 1, 1], [], []>} : vector<20x22xf32>, vector<22x200xf32>, vector<20x200xf32> -> vector<20x200xf32>
    tpu.wait_dma2 semaphore(%arg8 : memref<!tpu.dma_semaphore, #tpu.memory_space<semaphore_mem>>) src(%arg5 : memref<10x200x500xi8, #tpu.memory_space<any>>) dst(%arg7 : memref<10x200x500xi8, #tpu.memory_space<vmem>>)
    %69 = vector.extract_strided_slice %68 {offsets = [0, 0], sizes = [2, 200], strides = [1, 1]} : vector<20x200xf32> to vector<2x200xf32>
    %c0_43 = arith.constant 0 : index
    %c0_44 = arith.constant 0 : index
    %c0_45 = arith.constant 0 : index
    %70 = vector.load %arg7[%c0_43, %c0_44, %c0_45] : memref<10x200x500xi8, #tpu.memory_space<vmem>>, vector<1x200x500xi8>
    %71 = vector.shape_cast %70 : vector<1x200x500xi8> to vector<200x500xi8>
    %72 = arith.sitofp %71 : vector<200x500xi8> to vector<200x500xf32>
    %cst_46 = arith.constant dense<0.000000e+00> : vector<2x500xf32>
    %73 = tpu.matmul %69, %72, %cst_46 {dimension_numbers = #tpu.dot_dimension_numbers<[1], [0], [0], [1], [0, 0, 1, 1], [], []>} : vector<2x200xf32>, vector<200x500xf32>, vector<2x500xf32> -> vector<2x500xf32>
    %74 = vector.extract_strided_slice %68 {offsets = [2, 0], sizes = [2, 200], strides = [1, 1]} : vector<20x200xf32> to vector<2x200xf32>
    %c1_47 = arith.constant 1 : index
    %c0_48 = arith.constant 0 : index
    %c0_49 = arith.constant 0 : index
    %75 = vector.load %arg7[%c1_47, %c0_48, %c0_49] : memref<10x200x500xi8, #tpu.memory_space<vmem>>, vector<1x200x500xi8>
    %76 = vector.shape_cast %75 : vector<1x200x500xi8> to vector<200x500xi8>
    %77 = arith.sitofp %76 : vector<200x500xi8> to vector<200x500xf32>
    %cst_50 = arith.constant dense<0.000000e+00> : vector<2x500xf32>
    %78 = tpu.matmul %74, %77, %cst_50 {dimension_numbers = #tpu.dot_dimension_numbers<[1], [0], [0], [1], [0, 0, 1, 1], [], []>} : vector<2x200xf32>, vector<200x500xf32>, vector<2x500xf32> -> vector<2x500xf32>
    %79 = arith.addf %73, %78 : vector<2x500xf32>
    %80 = vector.extract_strided_slice %68 {offsets = [4, 0], sizes = [2, 200], strides = [1, 1]} : vector<20x200xf32> to vector<2x200xf32>
    %c2_51 = arith.constant 2 : index
    %c0_52 = arith.constant 0 : index
    %c0_53 = arith.constant 0 : index
    %81 = vector.load %arg7[%c2_51, %c0_52, %c0_53] : memref<10x200x500xi8, #tpu.memory_space<vmem>>, vector<1x200x500xi8>
    %82 = vector.shape_cast %81 : vector<1x200x500xi8> to vector<200x500xi8>
    %83 = arith.sitofp %82 : vector<200x500xi8> to vector<200x500xf32>
    %cst_54 = arith.constant dense<0.000000e+00> : vector<2x500xf32>
    %84 = tpu.matmul %80, %83, %cst_54 {dimension_numbers = #tpu.dot_dimension_numbers<[1], [0], [0], [1], [0, 0, 1, 1], [], []>} : vector<2x200xf32>, vector<200x500xf32>, vector<2x500xf32> -> vector<2x500xf32>
    %85 = arith.addf %79, %84 : vector<2x500xf32>
    %86 = vector.extract_strided_slice %68 {offsets = [6, 0], sizes = [2, 200], strides = [1, 1]} : vector<20x200xf32> to vector<2x200xf32>
    %c3_55 = arith.constant 3 : index
    %c0_56 = arith.constant 0 : index
    %c0_57 = arith.constant 0 : index
    %87 = vector.load %arg7[%c3_55, %c0_56, %c0_57] : memref<10x200x500xi8, #tpu.memory_space<vmem>>, vector<1x200x500xi8>
    %88 = vector.shape_cast %87 : vector<1x200x500xi8> to vector<200x500xi8>
    %89 = arith.sitofp %88 : vector<200x500xi8> to vector<200x500xf32>
    %cst_58 = arith.constant dense<0.000000e+00> : vector<2x500xf32>
    %90 = tpu.matmul %86, %89, %cst_58 {dimension_numbers = #tpu.dot_dimension_numbers<[1], [0], [0], [1], [0, 0, 1, 1], [], []>} : vector<2x200xf32>, vector<200x500xf32>, vector<2x500xf32> -> vector<2x500xf32>
    %91 = arith.addf %85, %90 : vector<2x500xf32>
    %92 = vector.extract_strided_slice %68 {offsets = [8, 0], sizes = [2, 200], strides = [1, 1]} : vector<20x200xf32> to vector<2x200xf32>
    %c4_59 = arith.constant 4 : index
    %c0_60 = arith.constant 0 : index
    %c0_61 = arith.constant 0 : index
    %93 = vector.load %arg7[%c4_59, %c0_60, %c0_61] : memref<10x200x500xi8, #tpu.memory_space<vmem>>, vector<1x200x500xi8>
    %94 = vector.shape_cast %93 : vector<1x200x500xi8> to vector<200x500xi8>
    %95 = arith.sitofp %94 : vector<200x500xi8> to vector<200x500xf32>
    %cst_62 = arith.constant dense<0.000000e+00> : vector<2x500xf32>
    %96 = tpu.matmul %92, %95, %cst_62 {dimension_numbers = #tpu.dot_dimension_numbers<[1], [0], [0], [1], [0, 0, 1, 1], [], []>} : vector<2x200xf32>, vector<200x500xf32>, vector<2x500xf32> -> vector<2x500xf32>
    %97 = arith.addf %91, %96 : vector<2x500xf32>
    %98 = vector.extract_strided_slice %68 {offsets = [10, 0], sizes = [2, 200], strides = [1, 1]} : vector<20x200xf32> to vector<2x200xf32>
    %c5 = arith.constant 5 : index
    %c0_63 = arith.constant 0 : index
    %c0_64 = arith.constant 0 : index
    %99 = vector.load %arg7[%c5, %c0_63, %c0_64] : memref<10x200x500xi8, #tpu.memory_space<vmem>>, vector<1x200x500xi8>
    %100 = vector.shape_cast %99 : vector<1x200x500xi8> to vector<200x500xi8>
    %101 = arith.sitofp %100 : vector<200x500xi8> to vector<200x500xf32>
    %cst_65 = arith.constant dense<0.000000e+00> : vector<2x500xf32>
    %102 = tpu.matmul %98, %101, %cst_65 {dimension_numbers = #tpu.dot_dimension_numbers<[1], [0], [0], [1], [0, 0, 1, 1], [], []>} : vector<2x200xf32>, vector<200x500xf32>, vector<2x500xf32> -> vector<2x500xf32>
    %103 = arith.addf %97, %102 : vector<2x500xf32>
    %104 = vector.extract_strided_slice %68 {offsets = [12, 0], sizes = [2, 200], strides = [1, 1]} : vector<20x200xf32> to vector<2x200xf32>
    %c6 = arith.constant 6 : index
    %c0_66 = arith.constant 0 : index
    %c0_67 = arith.constant 0 : index
    %105 = vector.load %arg7[%c6, %c0_66, %c0_67] : memref<10x200x500xi8, #tpu.memory_space<vmem>>, vector<1x200x500xi8>
    %106 = vector.shape_cast %105 : vector<1x200x500xi8> to vector<200x500xi8>
    %107 = arith.sitofp %106 : vector<200x500xi8> to vector<200x500xf32>
    %cst_68 = arith.constant dense<0.000000e+00> : vector<2x500xf32>
    %108 = tpu.matmul %104, %107, %cst_68 {dimension_numbers = #tpu.dot_dimension_numbers<[1], [0], [0], [1], [0, 0, 1, 1], [], []>} : vector<2x200xf32>, vector<200x500xf32>, vector<2x500xf32> -> vector<2x500xf32>
    %109 = arith.addf %103, %108 : vector<2x500xf32>
    %110 = vector.extract_strided_slice %68 {offsets = [14, 0], sizes = [2, 200], strides = [1, 1]} : vector<20x200xf32> to vector<2x200xf32>
    %c7 = arith.constant 7 : index
    %c0_69 = arith.constant 0 : index
    %c0_70 = arith.constant 0 : index
    %111 = vector.load %arg7[%c7, %c0_69, %c0_70] : memref<10x200x500xi8, #tpu.memory_space<vmem>>, vector<1x200x500xi8>
    %112 = vector.shape_cast %111 : vector<1x200x500xi8> to vector<200x500xi8>
    %113 = arith.sitofp %112 : vector<200x500xi8> to vector<200x500xf32>
    %cst_71 = arith.constant dense<0.000000e+00> : vector<2x500xf32>
    %114 = tpu.matmul %110, %113, %cst_71 {dimension_numbers = #tpu.dot_dimension_numbers<[1], [0], [0], [1], [0, 0, 1, 1], [], []>} : vector<2x200xf32>, vector<200x500xf32>, vector<2x500xf32> -> vector<2x500xf32>
    %115 = arith.addf %109, %114 : vector<2x500xf32>
    %116 = vector.extract_strided_slice %68 {offsets = [16, 0], sizes = [2, 200], strides = [1, 1]} : vector<20x200xf32> to vector<2x200xf32>
    %c8 = arith.constant 8 : index
    %c0_72 = arith.constant 0 : index
    %c0_73 = arith.constant 0 : index
    %117 = vector.load %arg7[%c8, %c0_72, %c0_73] : memref<10x200x500xi8, #tpu.memory_space<vmem>>, vector<1x200x500xi8>
    %118 = vector.shape_cast %117 : vector<1x200x500xi8> to vector<200x500xi8>
    %119 = arith.sitofp %118 : vector<200x500xi8> to vector<200x500xf32>
    %cst_74 = arith.constant dense<0.000000e+00> : vector<2x500xf32>
    %120 = tpu.matmul %116, %119, %cst_74 {dimension_numbers = #tpu.dot_dimension_numbers<[1], [0], [0], [1], [0, 0, 1, 1], [], []>} : vector<2x200xf32>, vector<200x500xf32>, vector<2x500xf32> -> vector<2x500xf32>
    %121 = arith.addf %115, %120 : vector<2x500xf32>
    %122 = vector.extract_strided_slice %68 {offsets = [18, 0], sizes = [2, 200], strides = [1, 1]} : vector<20x200xf32> to vector<2x200xf32>
    %c9 = arith.constant 9 : index
    %c0_75 = arith.constant 0 : index
    %c0_76 = arith.constant 0 : index
    %123 = vector.load %arg7[%c9, %c0_75, %c0_76] : memref<10x200x500xi8, #tpu.memory_space<vmem>>, vector<1x200x500xi8>
    %124 = vector.shape_cast %123 : vector<1x200x500xi8> to vector<200x500xi8>
    %125 = arith.sitofp %124 : vector<200x500xi8> to vector<200x500xf32>
    %cst_77 = arith.constant dense<0.000000e+00> : vector<2x500xf32>
    %126 = tpu.matmul %122, %125, %cst_77 {dimension_numbers = #tpu.dot_dimension_numbers<[1], [0], [0], [1], [0, 0, 1, 1], [], []>} : vector<2x200xf32>, vector<200x500xf32>, vector<2x500xf32> -> vector<2x500xf32>
    %127 = arith.addf %121, %126 : vector<2x500xf32>
    %128 = vector.broadcast %2 : vector<1x500xf32> to vector<2x500xf32>
    %129 = arith.addf %127, %128 : vector<2x500xf32>
    %cst_78 = arith.constant 0.000000e+00 : f32
    %130 = vector.broadcast %cst_78 : f32 to vector<2x500xf32>
    %131 = arith.maximumf %129, %130 : vector<2x500xf32>
    %c0_79 = arith.constant 0 : index
    %c0_80 = arith.constant 0 : index
    %132 = vector.load %arg4[%c0_79, %c0_80] : memref<500x10xf32, #tpu.memory_space<vmem>>, vector<500x10xf32>
    %cst_81 = arith.constant dense<0.000000e+00> : vector<2x10xf32>
    %133 = tpu.matmul %131, %132, %cst_81 {dimension_numbers = #tpu.dot_dimension_numbers<[1], [0], [0], [1], [0, 0, 1, 1], [], []>} : vector<2x500xf32>, vector<500x10xf32>, vector<2x10xf32> -> vector<2x10xf32>
    %134 = vector.broadcast %3 : vector<1x10xf32> to vector<2x10xf32>
    %135 = arith.addf %133, %134 : vector<2x10xf32>
    %cst_82 = arith.constant dense<0xFF800000> : vector<2xf32>
    %136 = vector.multi_reduction <maximumf>, %135, %cst_82 [1] : vector<2x10xf32> to vector<2xf32>
    %137 = vector.shape_cast %136 : vector<2xf32> to vector<2x1xf32>
    %138 = vector.broadcast %137 : vector<2x1xf32> to vector<2x10xf32>
    %139 = arith.subf %135, %138 : vector<2x10xf32>
    %140 = math.exp %139 : vector<2x10xf32>
    %cst_83 = arith.constant dense<0.000000e+00> : vector<2xf32>
    %141 = vector.multi_reduction <add>, %140, %cst_83 [1] : vector<2x10xf32> to vector<2xf32>
    %142 = vector.shape_cast %141 : vector<2xf32> to vector<2x1xf32>
    %143 = math.log %142 : vector<2x1xf32>
    %144 = vector.broadcast %143 : vector<2x1xf32> to vector<2x10xf32>
    %145 = arith.subf %139, %144 : vector<2x10xf32>
    %c0_84 = arith.constant 0 : index
    %c0_85 = arith.constant 0 : index
    %146 = vector.load %arg6[%c0_84, %c0_85] : memref<2x10xf32, #tpu.memory_space<vmem>>, vector<2x10xf32>
    tpu.vector_store %arg6[%c0_84, %c0_85], %145 {strides = array<i32>} : memref<2x10xf32, #tpu.memory_space<vmem>>, vector<2x10xf32>,
    return
  }
}

</mosaic_0001>

<llo_original>
// kernel: forward.1
$region0: #{forward.1}
  #allocation0 [shape = 'u32[]', space=smem, size = 0x4, offset = 0x4, fixed_abs, tag = 'smem constant byte address 0x4 - core index']
  #allocation1 [shape = 'u32[72,128]{1,0:T(1,128)}', space=vmem, size = 0x9000, scoped, tag = 'internal scratch']
  #allocation2 [shape = 's8[10,200,500]{2,1,0:T(8,128)(4,1)}', space=vmem, size = 0xfa000, scoped, tag = 'scratch operand']
  #allocation3 [shape = 's32[1]{0}', space=sflag, size = 0x4, scoped, tag = 'scratch operand']
  #allocation6 [shape = 's32[]', space=sflag, size = 0x4, offset = 0, fixed_abs, tag = 'sflag constant byte address 0x0 - dummy sync flag']
  #allocation7 [shape = 's32[]', space=sflag, size = 0x4, offset = 0, fixed_abs, tag = 'sflag constant byte address 0x0 - dummy sync flag']
  #allocation8 [shape = 'u32[]', space=smem, size = 0x4, offset = 0x44, fixed_abs, tag = 'smem constant byte address 0x44 - assertion arg 0']
  #allocation9 [shape = 'u32[]', space=smem, size = 0x4, offset = 0x48, fixed_abs, tag = 'smem constant byte address 0x48 - assertion arg 1']
  %s0 = inlined_call_operand.vmem [shape: f32[56,28], index: 0, kind: input, shape index: {}]
  %s1 = inlined_call_operand.vmem [shape: bf16[5,28,240], index: 1, kind: input, shape index: {}]
  %s2 = inlined_call_operand.vmem [shape: bf16[3,230,200], index: 2, kind: input, shape index: {}]
  %s3 = inlined_call_operand.vmem [shape: f32[48,512], index: 3, kind: input, shape index: {}]
  %s4 = inlined_call_operand.vmem [shape: f32[500,10], index: 4, kind: input, shape index: {}]
  %s5 = inlined_call_operand.hbm [shape: s8[10,200,500], index: 5, kind: input, shape index: {}]
  %s6 = inlined_call_operand.hbm [shape: f32[2,10], index: 6, kind: output, shape index: {}]
  %s7 = sld [smem:[#allocation0]]
  $region34: #{forward.1} parent=0
    _
  %s9 = ssub.s32 1, %s7
  %s10 = scalar_select 0, %s9, %s7
  $region1: #{forward.1} parent=0
    #allocation4 [shape = 'u8[1024]{0}', space=vmem, size = 0x400, scoped, tag = 'output window, operand 0, single buffered']
    #allocation5 [shape = 's32[1]{0}', space=sflag, size = 0x4, scoped, tag = 'scoped memory for forward.1']
    %11 = vsyncpa [#allocation5], 0
    // Predicated region
    $region2: #{forward.1} parent=1 // pred_check
      _
    $region3: #{forward.1} parent=1 // pred_check_branch
      %13 = sbr.rel (0) target = $region5
    $region4: #{forward.1} parent=1 // pred_region
      _
    $region5: #{forward.1} parent=1 // pred_fallthru
      _
    // Predicated region
    $region6: #{forward.1} parent=1 // pred_check
      _
    $region7: #{forward.1} parent=1 // pred_check_branch
      %15 = sbr.rel (0) target = $region9
    $region8: #{forward.1} parent=1 // pred_region
      _
    $region9: #{forward.1} parent=1 // pred_fallthru
      _
    // Predicated region
    $region10: #{forward.1} parent=1 // pred_check
      _
    $region11: #{forward.1} parent=1 // pred_check_branch
      %17 = sbr.rel (0) target = $region13
    $region12: #{forward.1} parent=1 // pred_region
      _
    $region13: #{forward.1} parent=1 // pred_fallthru
      _
    // Predicated region
    $region14: #{forward.1} parent=1 // pred_check
      _
    $region15: #{forward.1} parent=1 // pred_check_branch
      %19 = sbr.rel (0) target = $region17
    $region16: #{forward.1} parent=1 // pred_region
      _
    $region17: #{forward.1} parent=1 // pred_fallthru
      _
    // Predicated region
    $region18: #{forward.1} parent=1 // pred_check
      _
    $region19: #{forward.1} parent=1 // pred_check_branch
      %21 = sbr.rel (0) target = $region21
    $region20: #{forward.1} parent=1 // pred_region
      _
    $region21: #{forward.1} parent=1 // pred_fallthru
      _
    // Predicated region
    $region22: #{forward.1} parent=1 // pred_check
      _
    $region23: #{forward.1} parent=1 // pred_check_branch
      %23 = sbr.rel target = $region25
    $region24: #{forward.1} parent=1 // pred_region
      %24 = sst [smem:[#allocation8]] [#allocation7]
      %25 = sst [smem:[#allocation9]] [#allocation6]
    $region25: #{forward.1} parent=1 // pred_fallthru
      _
    %27 = shalt.err (0)
    %s29 = sshll.u32 %s5, 4
    %s30 = int_to_ptr.hbm [resolvable:$true] %s29
    %s31 = sshll.u32 [#allocation2], 4
    %s32 = int_to_ptr.vmem [resolvable:$true] %s31
    %34 = dma.hbm_to_vmem [thread:$0]  %s30, 32000, %s32, [#allocation3]
    %v35 = vld [vmem:[%s3] ss:$8 sm:$0x3]
    %s36 = scalar_lea.vmem %s3, 1
    %v37 = vld [vmem:[%s36] ss:$8 sm:$0x3]
    %s38 = scalar_lea.vmem %s3, 2
    %v39 = vld [vmem:[%s38] ss:$8 sm:$0xf]
    %v40 = vld [vmem:[%s3 + $0x3] ss:$0 sm:$0xff]
    %v41 = vld [vmem:[%s3] sm:$0xf0]
    %v42 = vld [vmem:[%s3 + $0x20] sm:$0xff]
    %v43 = vld [vmem:[%s3 + $0x40] sm:$0xff]
    %v44 = vld [vmem:[%s3 + $0x60] sm:$0xf]
    %v45 = vld [vmem:[%s3 + $0x60] sm:$0xf0]
    %v46 = vld [vmem:[%s3 + $0x80] sm:$0xff]
    %v47 = vld [vmem:[%s3 + $0xa0] sm:$0xff]
    %v48 = vld [vmem:[%s0] sm:$0xff]
    %v49 = vld [vmem:[%s0 + $0x8] sm:$0xff]
    %v50 = vld [vmem:[%s0 + $0x10] sm:$0xff]
    %v51 = vld [vmem:[%s0 + $0x18] sm:$0xff]
    %v52 = vld [vmem:[%s0 + $0x20] sm:$0xff]
    %v53 = vld [vmem:[%s0 + $0x28] sm:$0xff]
    %v54 = vld [vmem:[%s0 + $0x30] sm:$0xff]
    %v55 = vld [vmem:[%s1] sm:$0xff]
    %v56 = vld [vmem:[%s1 + $0x8] sm:$0xff]
    %v57 = vld [vmem:[%s1 + $0x10] sm:$0xff]
    %v58 = vld [vmem:[%s1 + $0x18] sm:$0x33]
    %v59 = vunpack.c.l.bf16 %v55
    %v60 = vunpack.c.h.bf16 %v55
    %v61 = vunpack.c.l.bf16 %v56
    %v62 = vunpack.c.h.bf16 %v56
    %v63 = vunpack.c.l.bf16 %v57
    %v64 = vunpack.c.h.bf16 %v57
    %v65 = vunpack.c.l.bf16 %v58
    %v66 = vunpack.c.h.bf16 %v58
    %s67 = scalar_lea.vmem %s1, 32
    %v68 = vld [vmem:[%s67] sm:$0xff]
    %v69 = vld [vmem:[%s67 + $0x8] sm:$0xff]
    %v70 = vld [vmem:[%s67 + $0x10] sm:$0xff]
    %v71 = vld [vmem:[%s67 + $0x18] sm:$0x33]
    %v72 = vunpack.c.l.bf16 %v68
    %v73 = vunpack.c.h.bf16 %v68
    %v74 = vunpack.c.l.bf16 %v69
    %v75 = vunpack.c.h.bf16 %v69
    %v76 = vunpack.c.l.bf16 %v70
    %v77 = vunpack.c.h.bf16 %v70
    %v78 = vunpack.c.l.bf16 %v71
    %v79 = vunpack.c.h.bf16 %v71
    %vm87 = vcmask 1046528
    %v88 = vrot.slane %v48, 1
    %v89 = vrot.slane %v49, 1
    %v90 = vsel %vm87, %v88, %v89
    %v91 = vrot.slane %v50, 1
    %v92 = vsel %vm87, %v89, %v91
    %v93 = vrot.slane %v51, 1
    %v94 = vsel %vm87, %v91, %v93
    %v95 = vrot.slane %v52, 1
    %v96 = vsel %vm87, %v93, %v95
    %v97 = vrot.slane %v53, 1
    %v98 = vsel %vm87, %v95, %v97
    %v99 = vrot.slane %v54, 1
    %v100 = vsel %vm87, %v97, %v99
    %vm101 = vcmask 228352
    %v102 = vsel %vm101, %v90, 0
    %v104 = vsel %vm101, %v92, 0
    %v106 = vsel %vm101, %v94, 0
    %v108 = vsel %vm101, %v96, 0
    %v110 = vsel %vm101, %v98, 0
    %v112 = vsel %vm101, %v100, 0
    %v114 = vsel %vm101, %v99, 0
    %vm116 = vcmask 1043456
    %v118 = vsel %vm116, %v78, 0
    %v121 = vsel %vm116, %v79, 0
    %123 = vmatpush.msra.mxu0 0.0
    %124 = vmatpush.msra.mxu0 0.0
    %125 = vmatpush.msra.mxu0 0.0
    %126 = vmatpush.msra.mxu0 0.0
    %127 = vmatpush.msra.mxu0 0.0
    %128 = vmatpush.msra.mxu0 0.0
    %129 = vmatpush.msra.mxu0 0.0
    %130 = vmatpush.msra.mxu0 0.0
    %131 = vmatpush.msra.mxu0 0.0
    %132 = vmatpush.msra.mxu0 0.0
    %133 = vmatpush.msra.mxu0 0.0
    %134 = vmatpush.msra.mxu0 0.0
    %135 = vmatpush.msra.mxu0 %v118
    %136 = vmatpush.msra.mxu0 %v76
    %137 = vmatpush.msra.mxu0 %v74
    %138 = vmatpush.msra.mxu0 %v72
    %139 = vmatmul.f32.gmra.mxu0 %v102
    %v140 = vpop.f32.mrf.mxu0
    %v141 = vadd.f32 0.0, %v140
    %142 = vmatmul.f32.gmra.mxu0 %v104
    %v143 = vpop.f32.mrf.mxu0
    %v144 = vadd.f32 0.0, %v143
    %145 = vmatmul.f32.gmra.mxu0 %v106
    %v146 = vpop.f32.mrf.mxu0
    %v147 = vadd.f32 0.0, %v146
    %148 = vmatmul.f32.gmra.mxu0 %v108
    %v149 = vpop.f32.mrf.mxu0
    %v150 = vadd.f32 0.0, %v149
    %151 = vmatmul.f32.gmra.mxu0 %v110
    %v152 = vpop.f32.mrf.mxu0
    %v153 = vadd.f32 0.0, %v152
    %154 = vmatmul.f32.gmra.mxu0 %v112
    %v155 = vpop.f32.mrf.mxu0
    %v156 = vadd.f32 0.0, %v155
    %157 = vmatmul.f32.gmra.mxu0 %v114
    %v158 = vpop.f32.mrf.mxu0
    %v159 = vadd.f32 0.0, %v158
    %160 = vdwg.mxu0
    %161 = vmatpush.msra.mxu0 0.0
    %162 = vmatpush.msra.mxu0 0.0
    %163 = vmatpush.msra.mxu0 0.0
    %164 = vmatpush.msra.mxu0 0.0
    %165 = vmatpush.msra.mxu0 0.0
    %166 = vmatpush.msra.mxu0 0.0
    %167 = vmatpush.msra.mxu0 0.0
    %168 = vmatpush.msra.mxu0 0.0
    %169 = vmatpush.msra.mxu0 0.0
    %170 = vmatpush.msra.mxu0 0.0
    %171 = vmatpush.msra.mxu0 0.0
    %172 = vmatpush.msra.mxu0 0.0
    %173 = vmatpush.msra.mxu0 %v121
    %174 = vmatpush.msra.mxu0 %v77
    %175 = vmatpush.msra.mxu0 %v75
    %176 = vmatpush.msra.mxu0 %v73
    %177 = vmatmul.f32.gmra.mxu0 %v102
    %v178 = vpop.f32.mrf.mxu0
    %v179 = vadd.f32 0.0, %v178
    %180 = vmatmul.f32.gmra.mxu0 %v104
    %v181 = vpop.f32.mrf.mxu0
    %v182 = vadd.f32 0.0, %v181
    %183 = vmatmul.f32.gmra.mxu0 %v106
    %v184 = vpop.f32.mrf.mxu0
    %v185 = vadd.f32 0.0, %v184
    %186 = vmatmul.f32.gmra.mxu0 %v108
    %v187 = vpop.f32.mrf.mxu0
    %v188 = vadd.f32 0.0, %v187
    %189 = vmatmul.f32.gmra.mxu0 %v110
    %v190 = vpop.f32.mrf.mxu0
    %v191 = vadd.f32 0.0, %v190
    %192 = vmatmul.f32.gmra.mxu0 %v112
    %v193 = vpop.f32.mrf.mxu0
    %v194 = vadd.f32 0.0, %v193
    %195 = vmatmul.f32.gmra.mxu0 %v114
    %v196 = vpop.f32.mrf.mxu0
    %v197 = vadd.f32 0.0, %v196
    %198 = vdwg.mxu0
    %v199 = vsel %vm101, %v48, 0
    %v201 = vsel %vm101, %v49, 0
    %v203 = vsel %vm101, %v50, 0
    %v205 = vsel %vm101, %v51, 0
    %v207 = vsel %vm101, %v52, 0
    %v209 = vsel %vm101, %v53, 0
    %v211 = vsel %vm101, %v54, 0
    %v214 = vsel %vm116, %v65, 0
    %v217 = vsel %vm116, %v66, 0
    %219 = vmatpush.msra.mxu0 0.0
    %220 = vmatpush.msra.mxu0 0.0
    %221 = vmatpush.msra.mxu0 0.0
    %222 = vmatpush.msra.mxu0 0.0
    %223 = vmatpush.msra.mxu0 0.0
    %224 = vmatpush.msra.mxu0 0.0
    %225 = vmatpush.msra.mxu0 0.0
    %226 = vmatpush.msra.mxu0 0.0
    %227 = vmatpush.msra.mxu0 0.0
    %228 = vmatpush.msra.mxu0 0.0
    %229 = vmatpush.msra.mxu0 0.0
    %230 = vmatpush.msra.mxu0 0.0
    %231 = vmatpush.msra.mxu0 %v214
    %232 = vmatpush.msra.mxu0 %v63
    %233 = vmatpush.msra.mxu0 %v61
    %234 = vmatpush.msra.mxu0 %v59
    %235 = vmatmul.f32.gmra.mxu0 %v199
    %v236 = vpop.f32.mrf.mxu0
    %v237 = vadd.f32 %v141, %v236
    %238 = vmatmul.f32.gmra.mxu0 %v201
    %v239 = vpop.f32.mrf.mxu0
    %v240 = vadd.f32 %v144, %v239
    %241 = vmatmul.f32.gmra.mxu0 %v203
    %v242 = vpop.f32.mrf.mxu0
    %v243 = vadd.f32 %v147, %v242
    %244 = vmatmul.f32.gmra.mxu0 %v205
    %v245 = vpop.f32.mrf.mxu0
    %v246 = vadd.f32 %v150, %v245
    %247 = vmatmul.f32.gmra.mxu0 %v207
    %v248 = vpop.f32.mrf.mxu0
    %v249 = vadd.f32 %v153, %v248
    %250 = vmatmul.f32.gmra.mxu0 %v209
    %v251 = vpop.f32.mrf.mxu0
    %v252 = vadd.f32 %v156, %v251
    %253 = vmatmul.f32.gmra.mxu0 %v211
    %v254 = vpop.f32.mrf.mxu0
    %v255 = vadd.f32 %v159, %v254
    %256 = vdwg.mxu0
    %257 = vmatpush.msra.mxu0 0.0
    %258 = vmatpush.msra.mxu0 0.0
    %259 = vmatpush.msra.mxu0 0.0
    %260 = vmatpush.msra.mxu0 0.0
    %261 = vmatpush.msra.mxu0 0.0
    %262 = vmatpush.msra.mxu0 0.0
    %263 = vmatpush.msra.mxu0 0.0
    %264 = vmatpush.msra.mxu0 0.0
    %265 = vmatpush.msra.mxu0 0.0
    %266 = vmatpush.msra.mxu0 0.0
    %267 = vmatpush.msra.mxu0 0.0
    %268 = vmatpush.msra.mxu0 0.0
    %269 = vmatpush.msra.mxu0 %v217
    %270 = vmatpush.msra.mxu0 %v64
    %271 = vmatpush.msra.mxu0 %v62
    %272 = vmatpush.msra.mxu0 %v60
    %273 = vmatmul.f32.gmra.mxu0 %v199
    %v274 = vpop.f32.mrf.mxu0
    %v275 = vadd.f32 %v179, %v274
    %276 = vmatmul.f32.gmra.mxu0 %v201
    %v277 = vpop.f32.mrf.mxu0
    %v278 = vadd.f32 %v182, %v277
    %279 = vmatmul.f32.gmra.mxu0 %v203
    %v280 = vpop.f32.mrf.mxu0
    %v281 = vadd.f32 %v185, %v280
    %282 = vmatmul.f32.gmra.mxu0 %v205
    %v283 = vpop.f32.mrf.mxu0
    %v284 = vadd.f32 %v188, %v283
    %285 = vmatmul.f32.gmra.mxu0 %v207
    %v286 = vpop.f32.mrf.mxu0
    %v287 = vadd.f32 %v191, %v286
    %288 = vmatmul.f32.gmra.mxu0 %v209
    %v289 = vpop.f32.mrf.mxu0
    %v290 = vadd.f32 %v194, %v289
    %291 = vmatmul.f32.gmra.mxu0 %v211
    %v292 = vpop.f32.mrf.mxu0
    %v293 = vadd.f32 %v197, %v292
    %294 = vdwg.mxu0
    %s295 = scalar_lea.vmem %s1, 64
    %v296 = vld [vmem:[%s295] sm:$0xff]
    %v297 = vld [vmem:[%s295 + $0x8] sm:$0xff]
    %v298 = vld [vmem:[%s295 + $0x10] sm:$0xff]
    %v299 = vld [vmem:[%s295 + $0x18] sm:$0x33]
    %v300 = vunpack.c.l.bf16 %v296
    %v301 = vunpack.c.h.bf16 %v296
    %v302 = vunpack.c.l.bf16 %v297
    %v303 = vunpack.c.h.bf16 %v297
    %v304 = vunpack.c.l.bf16 %v298
    %v305 = vunpack.c.h.bf16 %v298
    %v306 = vunpack.c.l.bf16 %v299
    %v307 = vunpack.c.h.bf16 %v299
    %vm308 = vcmask 1045504
    %v309 = vrot.slane %v48, 2
    %v310 = vrot.slane %v49, 2
    %v311 = vsel %vm308, %v309, %v310
    %v312 = vrot.slane %v50, 2
    %v313 = vsel %vm308, %v310, %v312
    %v314 = vrot.slane %v51, 2
    %v315 = vsel %vm308, %v312, %v314
    %v316 = vrot.slane %v52, 2
    %v317 = vsel %vm308, %v314, %v316
    %v318 = vrot.slane %v53, 2
    %v319 = vsel %vm308, %v316, %v318
    %v320 = vrot.slane %v54, 2
    %v321 = vsel %vm308, %v318, %v320
    %v322 = vsel %vm101, %v311, 0
    %v324 = vsel %vm101, %v313, 0
    %v326 = vsel %vm101, %v315, 0
    %v328 = vsel %vm101, %v317, 0
    %v330 = vsel %vm101, %v319, 0
    %v332 = vsel %vm101, %v321, 0
    %v334 = vsel %vm101, %v320, 0
    %v337 = vsel %vm116, %v306, 0
    %v340 = vsel %vm116, %v307, 0
    %342 = vmatpush.msra.mxu0 0.0
    %343 = vmatpush.msra.mxu0 0.0
    %344 = vmatpush.msra.mxu0 0.0
    %345 = vmatpush.msra.mxu0 0.0
    %346 = vmatpush.msra.mxu0 0.0
    %347 = vmatpush.msra.mxu0 0.0
    %348 = vmatpush.msra.mxu0 0.0
    %349 = vmatpush.msra.mxu0 0.0
    %350 = vmatpush.msra.mxu0 0.0
    %351 = vmatpush.msra.mxu0 0.0
    %352 = vmatpush.msra.mxu0 0.0
    %353 = vmatpush.msra.mxu0 0.0
    %354 = vmatpush.msra.mxu0 %v337
    %355 = vmatpush.msra.mxu0 %v304
    %356 = vmatpush.msra.mxu0 %v302
    %357 = vmatpush.msra.mxu0 %v300
    %358 = vmatmul.f32.gmra.mxu0 %v322
    %v359 = vpop.f32.mrf.mxu0
    %v360 = vadd.f32 0.0, %v359
    %361 = vmatmul.f32.gmra.mxu0 %v324
    %v362 = vpop.f32.mrf.mxu0
    %v363 = vadd.f32 0.0, %v362
    %364 = vmatmul.f32.gmra.mxu0 %v326
    %v365 = vpop.f32.mrf.mxu0
    %v366 = vadd.f32 0.0, %v365
    %367 = vmatmul.f32.gmra.mxu0 %v328
    %v368 = vpop.f32.mrf.mxu0
    %v369 = vadd.f32 0.0, %v368
    %370 = vmatmul.f32.gmra.mxu0 %v330
    %v371 = vpop.f32.mrf.mxu0
    %v372 = vadd.f32 0.0, %v371
    %373 = vmatmul.f32.gmra.mxu0 %v332
    %v374 = vpop.f32.mrf.mxu0
    %v375 = vadd.f32 0.0, %v374
    %376 = vmatmul.f32.gmra.mxu0 %v334
    %v377 = vpop.f32.mrf.mxu0
    %v378 = vadd.f32 0.0, %v377
    %379 = vdwg.mxu0
    %380 = vmatpush.msra.mxu0 0.0
    %381 = vmatpush.msra.mxu0 0.0
    %382 = vmatpush.msra.mxu0 0.0
    %383 = vmatpush.msra.mxu0 0.0
    %384 = vmatpush.msra.mxu0 0.0
    %385 = vmatpush.msra.mxu0 0.0
    %386 = vmatpush.msra.mxu0 0.0
    %387 = vmatpush.msra.mxu0 0.0
    %388 = vmatpush.msra.mxu0 0.0
    %389 = vmatpush.msra.mxu0 0.0
    %390 = vmatpush.msra.mxu0 0.0
    %391 = vmatpush.msra.mxu0 0.0
    %392 = vmatpush.msra.mxu0 %v340
    %393 = vmatpush.msra.mxu0 %v305
    %394 = vmatpush.msra.mxu0 %v303
    %395 = vmatpush.msra.mxu0 %v301
    %396 = vmatmul.f32.gmra.mxu0 %v322
    %v397 = vpop.f32.mrf.mxu0
    %v398 = vadd.f32 0.0, %v397
    %399 = vmatmul.f32.gmra.mxu0 %v324
    %v400 = vpop.f32.mrf.mxu0
    %v401 = vadd.f32 0.0, %v400
    %402 = vmatmul.f32.gmra.mxu0 %v326
    %v403 = vpop.f32.mrf.mxu0
    %v404 = vadd.f32 0.0, %v403
    %405 = vmatmul.f32.gmra.mxu0 %v328
    %v406 = vpop.f32.mrf.mxu0
    %v407 = vadd.f32 0.0, %v406
    %408 = vmatmul.f32.gmra.mxu0 %v330
    %v409 = vpop.f32.mrf.mxu0
    %v410 = vadd.f32 0.0, %v409
    %411 = vmatmul.f32.gmra.mxu0 %v332
    %v412 = vpop.f32.mrf.mxu0
    %v413 = vadd.f32 0.0, %v412
    %414 = vmatmul.f32.gmra.mxu0 %v334
    %v415 = vpop.f32.mrf.mxu0
    %v416 = vadd.f32 0.0, %v415
    %417 = vdwg.mxu0
    %v418 = vadd.f32 %v237, %v360
    %v419 = vadd.f32 %v275, %v398
    %v420 = vadd.f32 %v240, %v363
    %v421 = vadd.f32 %v278, %v401
    %v422 = vadd.f32 %v243, %v366
    %v423 = vadd.f32 %v281, %v404
    %v424 = vadd.f32 %v246, %v369
    %v425 = vadd.f32 %v284, %v407
    %v426 = vadd.f32 %v249, %v372
    %v427 = vadd.f32 %v287, %v410
    %v428 = vadd.f32 %v252, %v375
    %v429 = vadd.f32 %v290, %v413
    %v430 = vadd.f32 %v255, %v378
    %v431 = vadd.f32 %v293, %v416
    %s432 = scalar_lea.vmem %s1, 96
    %v433 = vld [vmem:[%s432] sm:$0xff]
    %v434 = vld [vmem:[%s432 + $0x8] sm:$0xff]
    %v435 = vld [vmem:[%s432 + $0x10] sm:$0xff]
    %v436 = vld [vmem:[%s432 + $0x18] sm:$0x33]
    %v437 = vunpack.c.l.bf16 %v433
    %v438 = vunpack.c.h.bf16 %v433
    %v439 = vunpack.c.l.bf16 %v434
    %v440 = vunpack.c.h.bf16 %v434
    %v441 = vunpack.c.l.bf16 %v435
    %v442 = vunpack.c.h.bf16 %v435
    %v443 = vunpack.c.l.bf16 %v436
    %v444 = vunpack.c.h.bf16 %v436
    %vm445 = vcmask 1044480
    %v446 = vrot.slane %v48, 3
    %v447 = vrot.slane %v49, 3
    %v448 = vsel %vm445, %v446, %v447
    %v449 = vrot.slane %v50, 3
    %v450 = vsel %vm445, %v447, %v449
    %v451 = vrot.slane %v51, 3
    %v452 = vsel %vm445, %v449, %v451
    %v453 = vrot.slane %v52, 3
    %v454 = vsel %vm445, %v451, %v453
    %v455 = vrot.slane %v53, 3
    %v456 = vsel %vm445, %v453, %v455
    %v457 = vrot.slane %v54, 3
    %v458 = vsel %vm445, %v455, %v457
    %v459 = vsel %vm101, %v448, 0
    %v461 = vsel %vm101, %v450, 0
    %v463 = vsel %vm101, %v452, 0
    %v465 = vsel %vm101, %v454, 0
    %v467 = vsel %vm101, %v456, 0
    %v469 = vsel %vm101, %v458, 0
    %v471 = vsel %vm101, %v457, 0
    %v474 = vsel %vm116, %v443, 0
    %v477 = vsel %vm116, %v444, 0
    %479 = vmatpush.msra.mxu0 0.0
    %480 = vmatpush.msra.mxu0 0.0
    %481 = vmatpush.msra.mxu0 0.0
    %482 = vmatpush.msra.mxu0 0.0
    %483 = vmatpush.msra.mxu0 0.0
    %484 = vmatpush.msra.mxu0 0.0
    %485 = vmatpush.msra.mxu0 0.0
    %486 = vmatpush.msra.mxu0 0.0
    %487 = vmatpush.msra.mxu0 0.0
    %488 = vmatpush.msra.mxu0 0.0
    %489 = vmatpush.msra.mxu0 0.0
    %490 = vmatpush.msra.mxu0 0.0
    %491 = vmatpush.msra.mxu0 %v474
    %492 = vmatpush.msra.mxu0 %v441
    %493 = vmatpush.msra.mxu0 %v439
    %494 = vmatpush.msra.mxu0 %v437
    %495 = vmatmul.f32.gmra.mxu0 %v459
    %v496 = vpop.f32.mrf.mxu0
    %v497 = vadd.f32 0.0, %v496
    %498 = vmatmul.f32.gmra.mxu0 %v461
    %v499 = vpop.f32.mrf.mxu0
    %v500 = vadd.f32 0.0, %v499
    %501 = vmatmul.f32.gmra.mxu0 %v463
    %v502 = vpop.f32.mrf.mxu0
    %v503 = vadd.f32 0.0, %v502
    %504 = vmatmul.f32.gmra.mxu0 %v465
    %v505 = vpop.f32.mrf.mxu0
    %v506 = vadd.f32 0.0, %v505
    %507 = vmatmul.f32.gmra.mxu0 %v467
    %v508 = vpop.f32.mrf.mxu0
    %v509 = vadd.f32 0.0, %v508
    %510 = vmatmul.f32.gmra.mxu0 %v469
    %v511 = vpop.f32.mrf.mxu0
    %v512 = vadd.f32 0.0, %v511
    %513 = vmatmul.f32.gmra.mxu0 %v471
    %v514 = vpop.f32.mrf.mxu0
    %v515 = vadd.f32 0.0, %v514
    %516 = vdwg.mxu0
    %517 = vmatpush.msra.mxu0 0.0
    %518 = vmatpush.msra.mxu0 0.0
    %519 = vmatpush.msra.mxu0 0.0
    %520 = vmatpush.msra.mxu0 0.0
    %521 = vmatpush.msra.mxu0 0.0
    %522 = vmatpush.msra.mxu0 0.0
    %523 = vmatpush.msra.mxu0 0.0
    %524 = vmatpush.msra.mxu0 0.0
    %525 = vmatpush.msra.mxu0 0.0
    %526 = vmatpush.msra.mxu0 0.0
    %527 = vmatpush.msra.mxu0 0.0
    %528 = vmatpush.msra.mxu0 0.0
    %529 = vmatpush.msra.mxu0 %v477
    %530 = vmatpush.msra.mxu0 %v442
    %531 = vmatpush.msra.mxu0 %v440
    %532 = vmatpush.msra.mxu0 %v438
    %533 = vmatmul.f32.gmra.mxu0 %v459
    %v534 = vpop.f32.mrf.mxu0
    %v535 = vadd.f32 0.0, %v534
    %536 = vmatmul.f32.gmra.mxu0 %v461
    %v537 = vpop.f32.mrf.mxu0
    %v538 = vadd.f32 0.0, %v537
    %539 = vmatmul.f32.gmra.mxu0 %v463
    %v540 = vpop.f32.mrf.mxu0
    %v541 = vadd.f32 0.0, %v540
    %542 = vmatmul.f32.gmra.mxu0 %v465
    %v543 = vpop.f32.mrf.mxu0
    %v544 = vadd.f32 0.0, %v543
    %545 = vmatmul.f32.gmra.mxu0 %v467
    %v546 = vpop.f32.mrf.mxu0
    %v547 = vadd.f32 0.0, %v546
    %548 = vmatmul.f32.gmra.mxu0 %v469
    %v549 = vpop.f32.mrf.mxu0
    %v550 = vadd.f32 0.0, %v549
    %551 = vmatmul.f32.gmra.mxu0 %v471
    %v552 = vpop.f32.mrf.mxu0
    %v553 = vadd.f32 0.0, %v552
    %554 = vdwg.mxu0
    %v555 = vadd.f32 %v418, %v497
    %v556 = vadd.f32 %v419, %v535
    %v557 = vadd.f32 %v420, %v500
    %v558 = vadd.f32 %v421, %v538
    %v559 = vadd.f32 %v422, %v503
    %v560 = vadd.f32 %v423, %v541
    %v561 = vadd.f32 %v424, %v506
    %v562 = vadd.f32 %v425, %v544
    %v563 = vadd.f32 %v426, %v509
    %v564 = vadd.f32 %v427, %v547
    %v565 = vadd.f32 %v428, %v512
    %v566 = vadd.f32 %v429, %v550
    %v567 = vadd.f32 %v430, %v515
    %v568 = vadd.f32 %v431, %v553
    %s569 = scalar_lea.vmem %s1, 128
    %v570 = vld [vmem:[%s569] sm:$0xff]
    %v571 = vld [vmem:[%s569 + $0x8] sm:$0xff]
    %v572 = vld [vmem:[%s569 + $0x10] sm:$0xff]
    %v573 = vld [vmem:[%s569 + $0x18] sm:$0x33]
    %v574 = vunpack.c.l.bf16 %v570
    %v575 = vunpack.c.h.bf16 %v570
    %v576 = vunpack.c.l.bf16 %v571
    %v577 = vunpack.c.h.bf16 %v571
    %v578 = vunpack.c.l.bf16 %v572
    %v579 = vunpack.c.h.bf16 %v572
    %v580 = vunpack.c.l.bf16 %v573
    %v581 = vunpack.c.h.bf16 %v573
    %v582 = vrot.slane %v48, 4
    %v583 = vrot.slane %v49, 4
    %v584 = vsel %vm116, %v582, %v583
    %v585 = vrot.slane %v50, 4
    %v586 = vsel %vm116, %v583, %v585
    %v587 = vrot.slane %v51, 4
    %v588 = vsel %vm116, %v585, %v587
    %v589 = vrot.slane %v52, 4
    %v590 = vsel %vm116, %v587, %v589
    %v591 = vrot.slane %v53, 4
    %v592 = vsel %vm116, %v589, %v591
    %v593 = vrot.slane %v54, 4
    %v594 = vsel %vm116, %v591, %v593
    %v595 = vsel %vm101, %v584, 0
    %v597 = vsel %vm101, %v586, 0
    %v599 = vsel %vm101, %v588, 0
    %v601 = vsel %vm101, %v590, 0
    %v603 = vsel %vm101, %v592, 0
    %v605 = vsel %vm101, %v594, 0
    %v607 = vsel %vm101, %v593, 0
    %v610 = vsel %vm116, %v580, 0
    %v613 = vsel %vm116, %v581, 0
    %615 = vmatpush.msra.mxu0 0.0
    %616 = vmatpush.msra.mxu0 0.0
    %617 = vmatpush.msra.mxu0 0.0
    %618 = vmatpush.msra.mxu0 0.0
    %619 = vmatpush.msra.mxu0 0.0
    %620 = vmatpush.msra.mxu0 0.0
    %621 = vmatpush.msra.mxu0 0.0
    %622 = vmatpush.msra.mxu0 0.0
    %623 = vmatpush.msra.mxu0 0.0
    %624 = vmatpush.msra.mxu0 0.0
    %625 = vmatpush.msra.mxu0 0.0
    %626 = vmatpush.msra.mxu0 0.0
    %627 = vmatpush.msra.mxu0 %v610
    %628 = vmatpush.msra.mxu0 %v578
    %629 = vmatpush.msra.mxu0 %v576
    %630 = vmatpush.msra.mxu0 %v574
    %631 = vmatmul.f32.gmra.mxu0 %v595
    %v632 = vpop.f32.mrf.mxu0
    %v633 = vadd.f32 0.0, %v632
    %634 = vmatmul.f32.gmra.mxu0 %v597
    %v635 = vpop.f32.mrf.mxu0
    %v636 = vadd.f32 0.0, %v635
    %637 = vmatmul.f32.gmra.mxu0 %v599
    %v638 = vpop.f32.mrf.mxu0
    %v639 = vadd.f32 0.0, %v638
    %640 = vmatmul.f32.gmra.mxu0 %v601
    %v641 = vpop.f32.mrf.mxu0
    %v642 = vadd.f32 0.0, %v641
    %643 = vmatmul.f32.gmra.mxu0 %v603
    %v644 = vpop.f32.mrf.mxu0
    %v645 = vadd.f32 0.0, %v644
    %646 = vmatmul.f32.gmra.mxu0 %v605
    %v647 = vpop.f32.mrf.mxu0
    %v648 = vadd.f32 0.0, %v647
    %649 = vmatmul.f32.gmra.mxu0 %v607
    %v650 = vpop.f32.mrf.mxu0
    %v651 = vadd.f32 0.0, %v650
    %652 = vdwg.mxu0
    %653 = vmatpush.msra.mxu0 0.0
    %654 = vmatpush.msra.mxu0 0.0
    %655 = vmatpush.msra.mxu0 0.0
    %656 = vmatpush.msra.mxu0 0.0
    %657 = vmatpush.msra.mxu0 0.0
    %658 = vmatpush.msra.mxu0 0.0
    %659 = vmatpush.msra.mxu0 0.0
    %660 = vmatpush.msra.mxu0 0.0
    %661 = vmatpush.msra.mxu0 0.0
    %662 = vmatpush.msra.mxu0 0.0
    %663 = vmatpush.msra.mxu0 0.0
    %664 = vmatpush.msra.mxu0 0.0
    %665 = vmatpush.msra.mxu0 %v613
    %666 = vmatpush.msra.mxu0 %v579
    %667 = vmatpush.msra.mxu0 %v577
    %668 = vmatpush.msra.mxu0 %v575
    %669 = vmatmul.f32.gmra.mxu0 %v595
    %v670 = vpop.f32.mrf.mxu0
    %v671 = vadd.f32 0.0, %v670
    %672 = vmatmul.f32.gmra.mxu0 %v597
    %v673 = vpop.f32.mrf.mxu0
    %v674 = vadd.f32 0.0, %v673
    %675 = vmatmul.f32.gmra.mxu0 %v599
    %v676 = vpop.f32.mrf.mxu0
    %v677 = vadd.f32 0.0, %v676
    %678 = vmatmul.f32.gmra.mxu0 %v601
    %v679 = vpop.f32.mrf.mxu0
    %v680 = vadd.f32 0.0, %v679
    %681 = vmatmul.f32.gmra.mxu0 %v603
    %v682 = vpop.f32.mrf.mxu0
    %v683 = vadd.f32 0.0, %v682
    %684 = vmatmul.f32.gmra.mxu0 %v605
    %v685 = vpop.f32.mrf.mxu0
    %v686 = vadd.f32 0.0, %v685
    %687 = vmatmul.f32.gmra.mxu0 %v607
    %v688 = vpop.f32.mrf.mxu0
    %v689 = vadd.f32 0.0, %v688
    %690 = vdwg.mxu0
    %v691 = vadd.f32 %v555, %v633
    %v692 = vadd.f32 %v556, %v671
    %v693 = vadd.f32 %v557, %v636
    %v694 = vadd.f32 %v558, %v674
    %v695 = vadd.f32 %v559, %v639
    %v696 = vadd.f32 %v560, %v677
    %v697 = vadd.f32 %v561, %v642
    %v698 = vadd.f32 %v562, %v680
    %v699 = vadd.f32 %v563, %v645
    %v700 = vadd.f32 %v564, %v683
    %v701 = vadd.f32 %v565, %v648
    %v702 = vadd.f32 %v566, %v686
    %v703 = vadd.f32 %v567, %v651
    %v704 = vadd.f32 %v568, %v689
    %v706 = vperm.slane %v35, 0
    %v707 = vperm.slane %v35, 1
    %v710 = vadd.f32 %v691, %v706
    %v711 = vadd.f32 %v692, %v707
    %v712 = vadd.f32 %v693, %v706
    %v713 = vadd.f32 %v694, %v707
    %v714 = vadd.f32 %v695, %v706
    %v715 = vadd.f32 %v696, %v707
    %v716 = vadd.f32 %v697, %v706
    %v717 = vadd.f32 %v698, %v707
    %v718 = vadd.f32 %v699, %v706
    %v719 = vadd.f32 %v700, %v707
    %v720 = vadd.f32 %v701, %v706
    %v721 = vadd.f32 %v702, %v707
    %v722 = vadd.f32 %v703, %v706
    %v723 = vadd.f32 %v704, %v707
    %v724 = vmax.f32 %v710, 0.0
    %v725 = vmax.f32 %v711, 0.0
    %v726 = vmax.f32 %v712, 0.0
    %v727 = vmax.f32 %v713, 0.0
    %v728 = vmax.f32 %v714, 0.0
    %v729 = vmax.f32 %v715, 0.0
    %v730 = vmax.f32 %v716, 0.0
    %v731 = vmax.f32 %v717, 0.0
    %v732 = vmax.f32 %v718, 0.0
    %v733 = vmax.f32 %v719, 0.0
    %v734 = vmax.f32 %v720, 0.0
    %v735 = vmax.f32 %v721, 0.0
    %v736 = vmax.f32 %v722, 0.0
    %v737 = vmax.f32 %v723, 0.0
    %752 = vrot.lane.b32.xlu0 %v724, 118
    %v753 = vpop.permute.xlu0 %752
    %754 = vrot.lane.b32.xlu0 %v725, 118
    %v755 = vpop.permute.xlu0 %754
    %756 = vrot.lane.b32.xlu0 %v726, 118
    %v757 = vpop.permute.xlu0 %756
    %758 = vrot.lane.b32.xlu0 %v727, 118
    %v759 = vpop.permute.xlu0 %758
    %760 = vrot.lane.b32.xlu0 %v728, 118
    %v761 = vpop.permute.xlu0 %760
    %762 = vrot.lane.b32.xlu0 %v729, 118
    %v763 = vpop.permute.xlu0 %762
    %764 = vrot.lane.b32.xlu0 %v730, 118
    %v765 = vpop.permute.xlu0 %764
    %766 = vrot.lane.b32.xlu0 %v731, 118
    %v767 = vpop.permute.xlu0 %766
    %768 = vrot.lane.b32.xlu0 %v732, 118
    %v769 = vpop.permute.xlu0 %768
    %770 = vrot.lane.b32.xlu0 %v733, 118
    %v771 = vpop.permute.xlu0 %770
    %772 = vrot.lane.b32.xlu0 %v734, 118
    %v773 = vpop.permute.xlu0 %772
    %774 = vrot.lane.b32.xlu0 %v735, 118
    %v775 = vpop.permute.xlu0 %774
    %776 = vrot.lane.b32.xlu0 %v736, 118
    %v777 = vpop.permute.xlu0 %776
    %778 = vrot.lane.b32.xlu0 %v737, 118
    %v779 = vpop.permute.xlu0 %778
    %vm780 = vcmask 965632
    %v781 = vsel %vm780, %v753, %v755
    %v782 = vsel %vm780, %v757, %v759
    %v783 = vsel %vm780, %v761, %v763
    %v784 = vsel %vm780, %v765, %v767
    %v785 = vsel %vm780, %v769, %v771
    %v786 = vsel %vm780, %v773, %v775
    %v787 = vsel %vm780, %v777, %v779
    %v802 = vmax.f32 %v724, %v781
    %v803 = vmax.f32 %v725, %v755
    %v804 = vmax.f32 %v726, %v782
    %v805 = vmax.f32 %v727, %v759
    %v806 = vmax.f32 %v728, %v783
    %v807 = vmax.f32 %v729, %v763
    %v808 = vmax.f32 %v730, %v784
    %v809 = vmax.f32 %v731, %v767
    %v810 = vmax.f32 %v732, %v785
    %v811 = vmax.f32 %v733, %v771
    %v812 = vmax.f32 %v734, %v786
    %v813 = vmax.f32 %v735, %v775
    %v814 = vmax.f32 %v736, %v787
    %v815 = vmax.f32 %v737, %v779
    %v830 = vrot.slane %v802, 1
    %v831 = vrot.slane %v804, 1
    %v832 = vsel %vm87, %v830, %v831
    %v833 = vrot.slane %v803, 1
    %v834 = vrot.slane %v805, 1
    %v835 = vsel %vm87, %v833, %v834
    %v836 = vrot.slane %v806, 1
    %v837 = vsel %vm87, %v831, %v836
    %v838 = vrot.slane %v807, 1
    %v839 = vsel %vm87, %v834, %v838
    %v840 = vrot.slane %v808, 1
    %v841 = vsel %vm87, %v836, %v840
    %v842 = vrot.slane %v809, 1
    %v843 = vsel %vm87, %v838, %v842
    %v844 = vrot.slane %v810, 1
    %v845 = vsel %vm87, %v840, %v844
    %v846 = vrot.slane %v811, 1
    %v847 = vsel %vm87, %v842, %v846
    %v848 = vrot.slane %v812, 1
    %v849 = vsel %vm87, %v844, %v848
    %v850 = vrot.slane %v813, 1
    %v851 = vsel %vm87, %v846, %v850
    %v852 = vrot.slane %v814, 1
    %v853 = vsel %vm87, %v848, %v852
    %v854 = vrot.slane %v815, 1
    %v855 = vsel %vm87, %v850, %v854
    %v870 = vmax.f32 %v802, %v832
    %v871 = vmax.f32 %v803, %v835
    %v872 = vmax.f32 %v804, %v837
    %v873 = vmax.f32 %v805, %v839
    %v874 = vmax.f32 %v806, %v841
    %v875 = vmax.f32 %v807, %v843
    %v876 = vmax.f32 %v808, %v845
    %v877 = vmax.f32 %v809, %v847
    %v878 = vmax.f32 %v810, %v849
    %v879 = vmax.f32 %v811, %v851
    %v880 = vmax.f32 %v812, %v853
    %v881 = vmax.f32 %v813, %v855
    %v882 = vmax.f32 %v814, %v852
    %v883 = vmax.f32 %v815, %v854
    %v888 = vrot.slane %v41, 4
    %v889 = vrot.slane %v42, 4
    %v890 = vsel %vm116, %v888, %v889
    %v891 = vrot.slane %v43, 4
    %v892 = vsel %vm116, %v889, %v891
    %v893 = vrot.slane %v44, 4
    %v894 = vsel %vm116, %v891, %v893
    %vm895 = vcmask 416768
    %v896 = vsel %vm895, %v890, 0
    %v898 = vsel %vm895, %v892, 0
    %v900 = vsel %vm895, %v894, 0
    %vm902 = vcmask 1042432
    %v904 = vsel %vm902, %v882, 0
    %v907 = vsel %vm902, %v883, 0
    %909 = vmatpush.msra.mxu0 0.0
    %910 = vmatpush.msra.mxu0 0.0
    %911 = vmatpush.msra.mxu0 0.0
    %912 = vmatpush.msra.mxu0 0.0
    %913 = vmatpush.msra.mxu0 0.0
    %914 = vmatpush.msra.mxu0 0.0
    %915 = vmatpush.msra.mxu0 0.0
    %916 = vmatpush.msra.mxu0 0.0
    %917 = vmatpush.msra.mxu0 0.0
    %918 = vmatpush.msra.mxu0 %v904
    %919 = vmatpush.msra.mxu0 %v880
    %920 = vmatpush.msra.mxu0 %v878
    %921 = vmatpush.msra.mxu0 %v876
    %922 = vmatpush.msra.mxu0 %v874
    %923 = vmatpush.msra.mxu0 %v872
    %924 = vmatpush.msra.mxu0 %v870
    %925 = vmatmul.f32.gmra.mxu0 %v896
    %v926 = vpop.f32.mrf.mxu0
    %v927 = vadd.f32 0.0, %v926
    %928 = vmatmul.f32.gmra.mxu0 %v898
    %v929 = vpop.f32.mrf.mxu0
    %v930 = vadd.f32 0.0, %v929
    %931 = vmatmul.f32.gmra.mxu0 %v900
    %v932 = vpop.f32.mrf.mxu0
    %v933 = vadd.f32 0.0, %v932
    %934 = vdwg.mxu0
    %935 = vmatpush.msra.mxu0 0.0
    %936 = vmatpush.msra.mxu0 0.0
    %937 = vmatpush.msra.mxu0 0.0
    %938 = vmatpush.msra.mxu0 0.0
    %939 = vmatpush.msra.mxu0 0.0
    %940 = vmatpush.msra.mxu0 0.0
    %941 = vmatpush.msra.mxu0 0.0
    %942 = vmatpush.msra.mxu0 0.0
    %943 = vmatpush.msra.mxu0 0.0
    %944 = vmatpush.msra.mxu0 %v907
    %945 = vmatpush.msra.mxu0 %v881
    %946 = vmatpush.msra.mxu0 %v879
    %947 = vmatpush.msra.mxu0 %v877
    %948 = vmatpush.msra.mxu0 %v875
    %949 = vmatpush.msra.mxu0 %v873
    %950 = vmatpush.msra.mxu0 %v871
    %951 = vmatmul.f32.gmra.mxu0 %v896
    %v952 = vpop.f32.mrf.mxu0
    %v953 = vadd.f32 0.0, %v952
    %954 = vmatmul.f32.gmra.mxu0 %v898
    %v955 = vpop.f32.mrf.mxu0
    %v956 = vadd.f32 0.0, %v955
    %957 = vmatmul.f32.gmra.mxu0 %v900
    %v958 = vpop.f32.mrf.mxu0
    %v959 = vadd.f32 0.0, %v958
    %960 = vdwg.mxu0
    %v961 = vld [vmem:[%s2] sm:$0xff]
    %v962 = vld [vmem:[%s2 + $0x8] sm:$0xff]
    %v963 = vld [vmem:[%s2 + $0x10] sm:$0xff]
    %v964 = vld [vmem:[%s2 + $0x18] sm:$0xff]
    %v965 = vld [vmem:[%s2 + $0x20] sm:$0xff]
    %v966 = vld [vmem:[%s2 + $0x28] sm:$0xff]
    %v967 = vld [vmem:[%s2 + $0x30] sm:$0xff]
    %v968 = vld [vmem:[%s2 + $0x38] sm:$0xff]
    %v969 = vld [vmem:[%s2 + $0x40] sm:$0xff]
    %v970 = vld [vmem:[%s2 + $0x48] sm:$0xff]
    %v971 = vld [vmem:[%s2 + $0x50] sm:$0xff]
    %v972 = vld [vmem:[%s2 + $0x58] sm:$0xff]
    %v973 = vld [vmem:[%s2 + $0x60] sm:$0xff]
    %v974 = vld [vmem:[%s2 + $0x68] sm:$0xff]
    %v975 = vld [vmem:[%s2 + $0x70] sm:$0xff]
    %v976 = vld [vmem:[%s2 + $0x78] sm:$0xff]
    %v977 = vld [vmem:[%s2 + $0x80] sm:$0xff]
    %v978 = vld [vmem:[%s2 + $0x88] sm:$0xff]
    %v979 = vld [vmem:[%s2 + $0x90] sm:$0xff]
    %v980 = vld [vmem:[%s2 + $0x98] sm:$0xff]
    %v981 = vld [vmem:[%s2 + $0xa0] sm:$0xff]
    %v982 = vld [vmem:[%s2 + $0xa8] sm:$0xff]
    %v983 = vld [vmem:[%s2 + $0xb0] sm:$0xff]
    %v984 = vld [vmem:[%s2 + $0xb8] sm:$0xff]
    %v985 = vld [vmem:[%s2 + $0xc0] sm:$0xff]
    %v986 = vld [vmem:[%s2 + $0xc8] sm:$0xff]
    %v987 = vld [vmem:[%s2 + $0xd0] sm:$0xff]
    %v988 = vld [vmem:[%s2 + $0xd8] sm:$0xff]
    %v989 = vld [vmem:[%s2 + $0xe0] sm:$0x77]
    %v990 = vunpack.c.l.bf16 %v961
    %v991 = vunpack.c.h.bf16 %v961
    %v992 = vunpack.c.l.bf16 %v962
    %v993 = vunpack.c.h.bf16 %v962
    %v994 = vunpack.c.l.bf16 %v963
    %v995 = vunpack.c.h.bf16 %v963
    %v996 = vunpack.c.l.bf16 %v964
    %v997 = vunpack.c.h.bf16 %v964
    %v998 = vunpack.c.l.bf16 %v965
    %v999 = vunpack.c.h.bf16 %v965
    %v1000 = vunpack.c.l.bf16 %v966
    %v1001 = vunpack.c.h.bf16 %v966
    %v1002 = vunpack.c.l.bf16 %v967
    %v1003 = vunpack.c.h.bf16 %v967
    %v1004 = vunpack.c.l.bf16 %v968
    %v1005 = vunpack.c.h.bf16 %v968
    %v1006 = vunpack.c.l.bf16 %v969
    %v1007 = vunpack.c.h.bf16 %v969
    %v1008 = vunpack.c.l.bf16 %v970
    %v1009 = vunpack.c.h.bf16 %v970
    %v1010 = vunpack.c.l.bf16 %v971
    %v1011 = vunpack.c.h.bf16 %v971
    %v1012 = vunpack.c.l.bf16 %v972
    %v1013 = vunpack.c.h.bf16 %v972
    %v1014 = vunpack.c.l.bf16 %v973
    %v1015 = vunpack.c.h.bf16 %v973
    %v1016 = vunpack.c.l.bf16 %v974
    %v1017 = vunpack.c.h.bf16 %v974
    %v1018 = vunpack.c.l.bf16 %v975
    %v1019 = vunpack.c.h.bf16 %v975
    %v1020 = vunpack.c.l.bf16 %v976
    %v1021 = vunpack.c.h.bf16 %v976
    %v1022 = vunpack.c.l.bf16 %v977
    %v1023 = vunpack.c.h.bf16 %v977
    %v1024 = vunpack.c.l.bf16 %v978
    %v1025 = vunpack.c.h.bf16 %v978
    %v1026 = vunpack.c.l.bf16 %v979
    %v1027 = vunpack.c.h.bf16 %v979
    %v1028 = vunpack.c.l.bf16 %v980
    %v1029 = vunpack.c.h.bf16 %v980
    %v1030 = vunpack.c.l.bf16 %v981
    %v1031 = vunpack.c.h.bf16 %v981
    %v1032 = vunpack.c.l.bf16 %v982
    %v1033 = vunpack.c.h.bf16 %v982
    %v1034 = vunpack.c.l.bf16 %v983
    %v1035 = vunpack.c.h.bf16 %v983
    %v1036 = vunpack.c.l.bf16 %v984
    %v1037 = vunpack.c.h.bf16 %v984
    %v1038 = vunpack.c.l.bf16 %v985
    %v1039 = vunpack.c.h.bf16 %v985
    %v1040 = vunpack.c.l.bf16 %v986
    %v1041 = vunpack.c.h.bf16 %v986
    %v1042 = vunpack.c.l.bf16 %v987
    %v1043 = vunpack.c.h.bf16 %v987
    %v1044 = vunpack.c.l.bf16 %v988
    %v1045 = vunpack.c.h.bf16 %v988
    %v1046 = vunpack.c.l.bf16 %v989
    %v1047 = vunpack.c.h.bf16 %v989
    %s1048 = scalar_lea.vmem %s2, 232
    %v1049 = vld [vmem:[%s1048] sm:$0xff]
    %v1050 = vld [vmem:[%s1048 + $0x8] sm:$0xff]
    %v1051 = vld [vmem:[%s1048 + $0x10] sm:$0xff]
    %v1052 = vld [vmem:[%s1048 + $0x18] sm:$0xff]
    %v1053 = vld [vmem:[%s1048 + $0x20] sm:$0xff]
    %v1054 = vld [vmem:[%s1048 + $0x28] sm:$0xff]
    %v1055 = vld [vmem:[%s1048 + $0x30] sm:$0xff]
    %v1056 = vld [vmem:[%s1048 + $0x38] sm:$0xff]
    %v1057 = vld [vmem:[%s1048 + $0x40] sm:$0xff]
    %v1058 = vld [vmem:[%s1048 + $0x48] sm:$0xff]
    %v1059 = vld [vmem:[%s1048 + $0x50] sm:$0xff]
    %v1060 = vld [vmem:[%s1048 + $0x58] sm:$0xff]
    %v1061 = vld [vmem:[%s1048 + $0x60] sm:$0xff]
    %v1062 = vld [vmem:[%s1048 + $0x68] sm:$0xff]
    %v1063 = vld [vmem:[%s1048 + $0x70] sm:$0xff]
    %v1064 = vld [vmem:[%s1048 + $0x78] sm:$0xff]
    %v1065 = vld [vmem:[%s1048 + $0x80] sm:$0xff]
    %v1066 = vld [vmem:[%s1048 + $0x88] sm:$0xff]
    %v1067 = vld [vmem:[%s1048 + $0x90] sm:$0xff]
    %v1068 = vld [vmem:[%s1048 + $0x98] sm:$0xff]
    %v1069 = vld [vmem:[%s1048 + $0xa0] sm:$0xff]
    %v1070 = vld [vmem:[%s1048 + $0xa8] sm:$0xff]
    %v1071 = vld [vmem:[%s1048 + $0xb0] sm:$0xff]
    %v1072 = vld [vmem:[%s1048 + $0xb8] sm:$0xff]
    %v1073 = vld [vmem:[%s1048 + $0xc0] sm:$0xff]
    %v1074 = vld [vmem:[%s1048 + $0xc8] sm:$0xff]
    %v1075 = vld [vmem:[%s1048 + $0xd0] sm:$0xff]
    %v1076 = vld [vmem:[%s1048 + $0xd8] sm:$0xff]
    %v1077 = vld [vmem:[%s1048 + $0xe0] sm:$0x77]
    %v1078 = vunpack.c.l.bf16 %v1049
    %v1079 = vunpack.c.h.bf16 %v1049
    %v1080 = vunpack.c.l.bf16 %v1050
    %v1081 = vunpack.c.h.bf16 %v1050
    %v1082 = vunpack.c.l.bf16 %v1051
    %v1083 = vunpack.c.h.bf16 %v1051
    %v1084 = vunpack.c.l.bf16 %v1052
    %v1085 = vunpack.c.h.bf16 %v1052
    %v1086 = vunpack.c.l.bf16 %v1053
    %v1087 = vunpack.c.h.bf16 %v1053
    %v1088 = vunpack.c.l.bf16 %v1054
    %v1089 = vunpack.c.h.bf16 %v1054
    %v1090 = vunpack.c.l.bf16 %v1055
    %v1091 = vunpack.c.h.bf16 %v1055
    %v1092 = vunpack.c.l.bf16 %v1056
    %v1093 = vunpack.c.h.bf16 %v1056
    %v1094 = vunpack.c.l.bf16 %v1057
    %v1095 = vunpack.c.h.bf16 %v1057
    %v1096 = vunpack.c.l.bf16 %v1058
    %v1097 = vunpack.c.h.bf16 %v1058
    %v1098 = vunpack.c.l.bf16 %v1059
    %v1099 = vunpack.c.h.bf16 %v1059
    %v1100 = vunpack.c.l.bf16 %v1060
    %v1101 = vunpack.c.h.bf16 %v1060
    %v1102 = vunpack.c.l.bf16 %v1061
    %v1103 = vunpack.c.h.bf16 %v1061
    %v1104 = vunpack.c.l.bf16 %v1062
    %v1105 = vunpack.c.h.bf16 %v1062
    %v1106 = vunpack.c.l.bf16 %v1063
    %v1107 = vunpack.c.h.bf16 %v1063
    %v1108 = vunpack.c.l.bf16 %v1064
    %v1109 = vunpack.c.h.bf16 %v1064
    %v1110 = vunpack.c.l.bf16 %v1065
    %v1111 = vunpack.c.h.bf16 %v1065
    %v1112 = vunpack.c.l.bf16 %v1066
    %v1113 = vunpack.c.h.bf16 %v1066
    %v1114 = vunpack.c.l.bf16 %v1067
    %v1115 = vunpack.c.h.bf16 %v1067
    %v1116 = vunpack.c.l.bf16 %v1068
    %v1117 = vunpack.c.h.bf16 %v1068
    %v1118 = vunpack.c.l.bf16 %v1069
    %v1119 = vunpack.c.h.bf16 %v1069
    %v1120 = vunpack.c.l.bf16 %v1070
    %v1121 = vunpack.c.h.bf16 %v1070
    %v1122 = vunpack.c.l.bf16 %v1071
    %v1123 = vunpack.c.h.bf16 %v1071
    %v1124 = vunpack.c.l.bf16 %v1072
    %v1125 = vunpack.c.h.bf16 %v1072
    %v1126 = vunpack.c.l.bf16 %v1073
    %v1127 = vunpack.c.h.bf16 %v1073
    %v1128 = vunpack.c.l.bf16 %v1074
    %v1129 = vunpack.c.h.bf16 %v1074
    %v1130 = vunpack.c.l.bf16 %v1075
    %v1131 = vunpack.c.h.bf16 %v1075
    %v1132 = vunpack.c.l.bf16 %v1076
    %v1133 = vunpack.c.h.bf16 %v1076
    %v1134 = vunpack.c.l.bf16 %v1077
    %v1135 = vunpack.c.h.bf16 %v1077
    %v1142 = vrot.slane %v927, 1
    %v1143 = vrot.slane %v930, 1
    %v1144 = vsel %vm87, %v1142, %v1143
    %v1145 = vrot.slane %v953, 1
    %v1146 = vrot.slane %v956, 1
    %v1147 = vsel %vm87, %v1145, %v1146
    %v1148 = vrot.slane %v933, 1
    %v1149 = vsel %vm87, %v1143, %v1148
    %v1150 = vrot.slane %v959, 1
    %v1151 = vsel %vm87, %v1146, %v1150
    %vm1155 = vcmask 834560
    %v1156 = vsel %vm1155, %v1147, 0
    %v1158 = vsel %vm1155, %v1151, 0
    %v1160 = vsel %vm1155, %v1150, 0
    %v1163 = vsel %vm308, %v1134, 0
    %v1166 = vsel %vm308, %v1135, 0
    %1168 = vmatpush.msra.mxu0 %v1108
    %1169 = vmatpush.msra.mxu0 %v1106
    %1170 = vmatpush.msra.mxu0 %v1104
    %1171 = vmatpush.msra.mxu0 %v1102
    %1172 = vmatpush.msra.mxu0 %v1100
    %1173 = vmatpush.msra.mxu0 %v1098
    %1174 = vmatpush.msra.mxu0 %v1096
    %1175 = vmatpush.msra.mxu0 %v1094
    %1176 = vmatpush.msra.mxu0 %v1092
    %1177 = vmatpush.msra.mxu0 %v1090
    %1178 = vmatpush.msra.mxu0 %v1088
    %1179 = vmatpush.msra.mxu0 %v1086
    %1180 = vmatpush.msra.mxu0 %v1084
    %1181 = vmatpush.msra.mxu0 %v1082
    %1182 = vmatpush.msra.mxu0 %v1080
    %1183 = vmatpush.msra.mxu0 %v1078
    %1184 = vmatmul.f32.gmra.mxu0 %v1144
    %v1185 = vpop.f32.mrf.mxu0
    %v1186 = vadd.f32 0.0, %v1185
    %1187 = vmatmul.f32.gmra.mxu0 %v1149
    %v1188 = vpop.f32.mrf.mxu0
    %v1189 = vadd.f32 0.0, %v1188
    %1190 = vmatmul.f32.gmra.mxu0 %v1148
    %v1191 = vpop.f32.mrf.mxu0
    %v1192 = vadd.f32 0.0, %v1191
    %1193 = vdwg.mxu0
    %1194 = vmatpush.msra.mxu0 0.0
    %1195 = vmatpush.msra.mxu0 0.0
    %1196 = vmatpush.msra.mxu0 0.0
    %1197 = vmatpush.msra.mxu0 %v1163
    %1198 = vmatpush.msra.mxu0 %v1132
    %1199 = vmatpush.msra.mxu0 %v1130
    %1200 = vmatpush.msra.mxu0 %v1128
    %1201 = vmatpush.msra.mxu0 %v1126
    %1202 = vmatpush.msra.mxu0 %v1124
    %1203 = vmatpush.msra.mxu0 %v1122
    %1204 = vmatpush.msra.mxu0 %v1120
    %1205 = vmatpush.msra.mxu0 %v1118
    %1206 = vmatpush.msra.mxu0 %v1116
    %1207 = vmatpush.msra.mxu0 %v1114
    %1208 = vmatpush.msra.mxu0 %v1112
    %1209 = vmatpush.msra.mxu0 %v1110
    %1210 = vmatmul.f32.gmra.mxu0 %v1156
    %v1211 = vpop.f32.mrf.mxu0
    %v1212 = vadd.f32 %v1186, %v1211
    %1213 = vmatmul.f32.gmra.mxu0 %v1158
    %v1214 = vpop.f32.mrf.mxu0
    %v1215 = vadd.f32 %v1189, %v1214
    %1216 = vmatmul.f32.gmra.mxu0 %v1160
    %v1217 = vpop.f32.mrf.mxu0
    %v1218 = vadd.f32 %v1192, %v1217
    %1219 = vdwg.mxu0
    %1220 = vmatpush.msra.mxu0 %v1109
    %1221 = vmatpush.msra.mxu0 %v1107
    %1222 = vmatpush.msra.mxu0 %v1105
    %1223 = vmatpush.msra.mxu0 %v1103
    %1224 = vmatpush.msra.mxu0 %v1101
    %1225 = vmatpush.msra.mxu0 %v1099
    %1226 = vmatpush.msra.mxu0 %v1097
    %1227 = vmatpush.msra.mxu0 %v1095
    %1228 = vmatpush.msra.mxu0 %v1093
    %1229 = vmatpush.msra.mxu0 %v1091
    %1230 = vmatpush.msra.mxu0 %v1089
    %1231 = vmatpush.msra.mxu0 %v1087
    %1232 = vmatpush.msra.mxu0 %v1085
    %1233 = vmatpush.msra.mxu0 %v1083
    %1234 = vmatpush.msra.mxu0 %v1081
    %1235 = vmatpush.msra.mxu0 %v1079
    %1236 = vmatmul.f32.gmra.mxu0 %v1144
    %v1237 = vpop.f32.mrf.mxu0
    %v1238 = vadd.f32 0.0, %v1237
    %1239 = vmatmul.f32.gmra.mxu0 %v1149
    %v1240 = vpop.f32.mrf.mxu0
    %v1241 = vadd.f32 0.0, %v1240
    %1242 = vmatmul.f32.gmra.mxu0 %v1148
    %v1243 = vpop.f32.mrf.mxu0
    %v1244 = vadd.f32 0.0, %v1243
    %1245 = vdwg.mxu0
    %1246 = vmatpush.msra.mxu0 0.0
    %1247 = vmatpush.msra.mxu0 0.0
    %1248 = vmatpush.msra.mxu0 0.0
    %1249 = vmatpush.msra.mxu0 %v1166
    %1250 = vmatpush.msra.mxu0 %v1133
    %1251 = vmatpush.msra.mxu0 %v1131
    %1252 = vmatpush.msra.mxu0 %v1129
    %1253 = vmatpush.msra.mxu0 %v1127
    %1254 = vmatpush.msra.mxu0 %v1125
    %1255 = vmatpush.msra.mxu0 %v1123
    %1256 = vmatpush.msra.mxu0 %v1121
    %1257 = vmatpush.msra.mxu0 %v1119
    %1258 = vmatpush.msra.mxu0 %v1117
    %1259 = vmatpush.msra.mxu0 %v1115
    %1260 = vmatpush.msra.mxu0 %v1113
    %1261 = vmatpush.msra.mxu0 %v1111
    %1262 = vmatmul.f32.gmra.mxu0 %v1156
    %v1263 = vpop.f32.mrf.mxu0
    %v1264 = vadd.f32 %v1238, %v1263
    %1265 = vmatmul.f32.gmra.mxu0 %v1158
    %v1266 = vpop.f32.mrf.mxu0
    %v1267 = vadd.f32 %v1241, %v1266
    %1268 = vmatmul.f32.gmra.mxu0 %v1160
    %v1269 = vpop.f32.mrf.mxu0
    %v1270 = vadd.f32 %v1244, %v1269
    %1271 = vdwg.mxu0
    %v1272 = vsel %vm1155, %v953, 0
    %v1274 = vsel %vm1155, %v956, 0
    %v1276 = vsel %vm1155, %v959, 0
    %v1279 = vsel %vm308, %v1046, 0
    %v1282 = vsel %vm308, %v1047, 0
    %1284 = vmatpush.msra.mxu0 %v1020
    %1285 = vmatpush.msra.mxu0 %v1018
    %1286 = vmatpush.msra.mxu0 %v1016
    %1287 = vmatpush.msra.mxu0 %v1014
    %1288 = vmatpush.msra.mxu0 %v1012
    %1289 = vmatpush.msra.mxu0 %v1010
    %1290 = vmatpush.msra.mxu0 %v1008
    %1291 = vmatpush.msra.mxu0 %v1006
    %1292 = vmatpush.msra.mxu0 %v1004
    %1293 = vmatpush.msra.mxu0 %v1002
    %1294 = vmatpush.msra.mxu0 %v1000
    %1295 = vmatpush.msra.mxu0 %v998
    %1296 = vmatpush.msra.mxu0 %v996
    %1297 = vmatpush.msra.mxu0 %v994
    %1298 = vmatpush.msra.mxu0 %v992
    %1299 = vmatpush.msra.mxu0 %v990
    %1300 = vmatmul.f32.gmra.mxu0 %v927
    %v1301 = vpop.f32.mrf.mxu0
    %v1302 = vadd.f32 %v1212, %v1301
    %1303 = vmatmul.f32.gmra.mxu0 %v930
    %v1304 = vpop.f32.mrf.mxu0
    %v1305 = vadd.f32 %v1215, %v1304
    %1306 = vmatmul.f32.gmra.mxu0 %v933
    %v1307 = vpop.f32.mrf.mxu0
    %v1308 = vadd.f32 %v1218, %v1307
    %1309 = vdwg.mxu0
    %1310 = vmatpush.msra.mxu0 0.0
    %1311 = vmatpush.msra.mxu0 0.0
    %1312 = vmatpush.msra.mxu0 0.0
    %1313 = vmatpush.msra.mxu0 %v1279
    %1314 = vmatpush.msra.mxu0 %v1044
    %1315 = vmatpush.msra.mxu0 %v1042
    %1316 = vmatpush.msra.mxu0 %v1040
    %1317 = vmatpush.msra.mxu0 %v1038
    %1318 = vmatpush.msra.mxu0 %v1036
    %1319 = vmatpush.msra.mxu0 %v1034
    %1320 = vmatpush.msra.mxu0 %v1032
    %1321 = vmatpush.msra.mxu0 %v1030
    %1322 = vmatpush.msra.mxu0 %v1028
    %1323 = vmatpush.msra.mxu0 %v1026
    %1324 = vmatpush.msra.mxu0 %v1024
    %1325 = vmatpush.msra.mxu0 %v1022
    %1326 = vmatmul.f32.gmra.mxu0 %v1272
    %v1327 = vpop.f32.mrf.mxu0
    %v1328 = vadd.f32 %v1302, %v1327
    %1329 = vmatmul.f32.gmra.mxu0 %v1274
    %v1330 = vpop.f32.mrf.mxu0
    %v1331 = vadd.f32 %v1305, %v1330
    %1332 = vmatmul.f32.gmra.mxu0 %v1276
    %v1333 = vpop.f32.mrf.mxu0
    %v1334 = vadd.f32 %v1308, %v1333
    %1335 = vdwg.mxu0
    %1336 = vmatpush.msra.mxu0 %v1021
    %1337 = vmatpush.msra.mxu0 %v1019
    %1338 = vmatpush.msra.mxu0 %v1017
    %1339 = vmatpush.msra.mxu0 %v1015
    %1340 = vmatpush.msra.mxu0 %v1013
    %1341 = vmatpush.msra.mxu0 %v1011
    %1342 = vmatpush.msra.mxu0 %v1009
    %1343 = vmatpush.msra.mxu0 %v1007
    %1344 = vmatpush.msra.mxu0 %v1005
    %1345 = vmatpush.msra.mxu0 %v1003
    %1346 = vmatpush.msra.mxu0 %v1001
    %1347 = vmatpush.msra.mxu0 %v999
    %1348 = vmatpush.msra.mxu0 %v997
    %1349 = vmatpush.msra.mxu0 %v995
    %1350 = vmatpush.msra.mxu0 %v993
    %1351 = vmatpush.msra.mxu0 %v991
    %1352 = vmatmul.f32.gmra.mxu0 %v927
    %v1353 = vpop.f32.mrf.mxu0
    %v1354 = vadd.f32 %v1264, %v1353
    %1355 = vmatmul.f32.gmra.mxu0 %v930
    %v1356 = vpop.f32.mrf.mxu0
    %v1357 = vadd.f32 %v1267, %v1356
    %1358 = vmatmul.f32.gmra.mxu0 %v933
    %v1359 = vpop.f32.mrf.mxu0
    %v1360 = vadd.f32 %v1270, %v1359
    %1361 = vdwg.mxu0
    %1362 = vmatpush.msra.mxu0 0.0
    %1363 = vmatpush.msra.mxu0 0.0
    %1364 = vmatpush.msra.mxu0 0.0
    %1365 = vmatpush.msra.mxu0 %v1282
    %1366 = vmatpush.msra.mxu0 %v1045
    %1367 = vmatpush.msra.mxu0 %v1043
    %1368 = vmatpush.msra.mxu0 %v1041
    %1369 = vmatpush.msra.mxu0 %v1039
    %1370 = vmatpush.msra.mxu0 %v1037
    %1371 = vmatpush.msra.mxu0 %v1035
    %1372 = vmatpush.msra.mxu0 %v1033
    %1373 = vmatpush.msra.mxu0 %v1031
    %1374 = vmatpush.msra.mxu0 %v1029
    %1375 = vmatpush.msra.mxu0 %v1027
    %1376 = vmatpush.msra.mxu0 %v1025
    %1377 = vmatpush.msra.mxu0 %v1023
    %1378 = vmatmul.f32.gmra.mxu0 %v1272
    %v1379 = vpop.f32.mrf.mxu0
    %v1380 = vadd.f32 %v1354, %v1379
    %1381 = vmatmul.f32.gmra.mxu0 %v1274
    %v1382 = vpop.f32.mrf.mxu0
    %v1383 = vadd.f32 %v1357, %v1382
    %1384 = vmatmul.f32.gmra.mxu0 %v1276
    %v1385 = vpop.f32.mrf.mxu0
    %v1386 = vadd.f32 %v1360, %v1385
    %1387 = vdwg.mxu0
    %s1388 = scalar_lea.vmem %s2, 464
    %v1389 = vld [vmem:[%s1388] sm:$0xff]
    %v1390 = vld [vmem:[%s1388 + $0x8] sm:$0xff]
    %v1391 = vld [vmem:[%s1388 + $0x10] sm:$0xff]
    %v1392 = vld [vmem:[%s1388 + $0x18] sm:$0xff]
    %v1393 = vld [vmem:[%s1388 + $0x20] sm:$0xff]
    %v1394 = vld [vmem:[%s1388 + $0x28] sm:$0xff]
    %v1395 = vld [vmem:[%s1388 + $0x30] sm:$0xff]
    %v1396 = vld [vmem:[%s1388 + $0x38] sm:$0xff]
    %v1397 = vld [vmem:[%s1388 + $0x40] sm:$0xff]
    %v1398 = vld [vmem:[%s1388 + $0x48] sm:$0xff]
    %v1399 = vld [vmem:[%s1388 + $0x50] sm:$0xff]
    %v1400 = vld [vmem:[%s1388 + $0x58] sm:$0xff]
    %v1401 = vld [vmem:[%s1388 + $0x60] sm:$0xff]
    %v1402 = vld [vmem:[%s1388 + $0x68] sm:$0xff]
    %v1403 = vld [vmem:[%s1388 + $0x70] sm:$0xff]
    %v1404 = vld [vmem:[%s1388 + $0x78] sm:$0xff]
    %v1405 = vld [vmem:[%s1388 + $0x80] sm:$0xff]
    %v1406 = vld [vmem:[%s1388 + $0x88] sm:$0xff]
    %v1407 = vld [vmem:[%s1388 + $0x90] sm:$0xff]
    %v1408 = vld [vmem:[%s1388 + $0x98] sm:$0xff]
    %v1409 = vld [vmem:[%s1388 + $0xa0] sm:$0xff]
    %v1410 = vld [vmem:[%s1388 + $0xa8] sm:$0xff]
    %v1411 = vld [vmem:[%s1388 + $0xb0] sm:$0xff]
    %v1412 = vld [vmem:[%s1388 + $0xb8] sm:$0xff]
    %v1413 = vld [vmem:[%s1388 + $0xc0] sm:$0xff]
    %v1414 = vld [vmem:[%s1388 + $0xc8] sm:$0xff]
    %v1415 = vld [vmem:[%s1388 + $0xd0] sm:$0xff]
    %v1416 = vld [vmem:[%s1388 + $0xd8] sm:$0xff]
    %v1417 = vld [vmem:[%s1388 + $0xe0] sm:$0x77]
    %v1418 = vunpack.c.l.bf16 %v1389
    %v1419 = vunpack.c.h.bf16 %v1389
    %v1420 = vunpack.c.l.bf16 %v1390
    %v1421 = vunpack.c.h.bf16 %v1390
    %v1422 = vunpack.c.l.bf16 %v1391
    %v1423 = vunpack.c.h.bf16 %v1391
    %v1424 = vunpack.c.l.bf16 %v1392
    %v1425 = vunpack.c.h.bf16 %v1392
    %v1426 = vunpack.c.l.bf16 %v1393
    %v1427 = vunpack.c.h.bf16 %v1393
    %v1428 = vunpack.c.l.bf16 %v1394
    %v1429 = vunpack.c.h.bf16 %v1394
    %v1430 = vunpack.c.l.bf16 %v1395
    %v1431 = vunpack.c.h.bf16 %v1395
    %v1432 = vunpack.c.l.bf16 %v1396
    %v1433 = vunpack.c.h.bf16 %v1396
    %v1434 = vunpack.c.l.bf16 %v1397
    %v1435 = vunpack.c.h.bf16 %v1397
    %v1436 = vunpack.c.l.bf16 %v1398
    %v1437 = vunpack.c.h.bf16 %v1398
    %v1438 = vunpack.c.l.bf16 %v1399
    %v1439 = vunpack.c.h.bf16 %v1399
    %v1440 = vunpack.c.l.bf16 %v1400
    %v1441 = vunpack.c.h.bf16 %v1400
    %v1442 = vunpack.c.l.bf16 %v1401
    %v1443 = vunpack.c.h.bf16 %v1401
    %v1444 = vunpack.c.l.bf16 %v1402
    %v1445 = vunpack.c.h.bf16 %v1402
    %v1446 = vunpack.c.l.bf16 %v1403
    %v1447 = vunpack.c.h.bf16 %v1403
    %v1448 = vunpack.c.l.bf16 %v1404
    %v1449 = vunpack.c.h.bf16 %v1404
    %v1450 = vunpack.c.l.bf16 %v1405
    %v1451 = vunpack.c.h.bf16 %v1405
    %v1452 = vunpack.c.l.bf16 %v1406
    %v1453 = vunpack.c.h.bf16 %v1406
    %v1454 = vunpack.c.l.bf16 %v1407
    %v1455 = vunpack.c.h.bf16 %v1407
    %v1456 = vunpack.c.l.bf16 %v1408
    %v1457 = vunpack.c.h.bf16 %v1408
    %v1458 = vunpack.c.l.bf16 %v1409
    %v1459 = vunpack.c.h.bf16 %v1409
    %v1460 = vunpack.c.l.bf16 %v1410
    %v1461 = vunpack.c.h.bf16 %v1410
    %v1462 = vunpack.c.l.bf16 %v1411
    %v1463 = vunpack.c.h.bf16 %v1411
    %v1464 = vunpack.c.l.bf16 %v1412
    %v1465 = vunpack.c.h.bf16 %v1412
    %v1466 = vunpack.c.l.bf16 %v1413
    %v1467 = vunpack.c.h.bf16 %v1413
    %v1468 = vunpack.c.l.bf16 %v1414
    %v1469 = vunpack.c.h.bf16 %v1414
    %v1470 = vunpack.c.l.bf16 %v1415
    %v1471 = vunpack.c.h.bf16 %v1415
    %v1472 = vunpack.c.l.bf16 %v1416
    %v1473 = vunpack.c.h.bf16 %v1416
    %v1474 = vunpack.c.l.bf16 %v1417
    %v1475 = vunpack.c.h.bf16 %v1417
    %v1476 = vrot.slane %v927, 2
    %v1477 = vrot.slane %v930, 2
    %v1478 = vsel %vm308, %v1476, %v1477
    %v1479 = vrot.slane %v953, 2
    %v1480 = vrot.slane %v956, 2
    %v1481 = vsel %vm308, %v1479, %v1480
    %v1482 = vrot.slane %v933, 2
    %v1483 = vsel %vm308, %v1477, %v1482
    %v1484 = vrot.slane %v959, 2
    %v1485 = vsel %vm308, %v1480, %v1484
    %v1489 = vsel %vm1155, %v1481, 0
    %v1491 = vsel %vm1155, %v1485, 0
    %v1493 = vsel %vm1155, %v1484, 0
    %v1496 = vsel %vm308, %v1474, 0
    %v1499 = vsel %vm308, %v1475, 0
    %1501 = vmatpush.msra.mxu0 %v1448
    %1502 = vmatpush.msra.mxu0 %v1446
    %1503 = vmatpush.msra.mxu0 %v1444
    %1504 = vmatpush.msra.mxu0 %v1442
    %1505 = vmatpush.msra.mxu0 %v1440
    %1506 = vmatpush.msra.mxu0 %v1438
    %1507 = vmatpush.msra.mxu0 %v1436
    %1508 = vmatpush.msra.mxu0 %v1434
    %1509 = vmatpush.msra.mxu0 %v1432
    %1510 = vmatpush.msra.mxu0 %v1430
    %1511 = vmatpush.msra.mxu0 %v1428
    %1512 = vmatpush.msra.mxu0 %v1426
    %1513 = vmatpush.msra.mxu0 %v1424
    %1514 = vmatpush.msra.mxu0 %v1422
    %1515 = vmatpush.msra.mxu0 %v1420
    %1516 = vmatpush.msra.mxu0 %v1418
    %1517 = vmatmul.f32.gmra.mxu0 %v1478
    %v1518 = vpop.f32.mrf.mxu0
    %v1519 = vadd.f32 0.0, %v1518
    %1520 = vmatmul.f32.gmra.mxu0 %v1483
    %v1521 = vpop.f32.mrf.mxu0
    %v1522 = vadd.f32 0.0, %v1521
    %1523 = vmatmul.f32.gmra.mxu0 %v1482
    %v1524 = vpop.f32.mrf.mxu0
    %v1525 = vadd.f32 0.0, %v1524
    %1526 = vdwg.mxu0
    %1527 = vmatpush.msra.mxu0 0.0
    %1528 = vmatpush.msra.mxu0 0.0
    %1529 = vmatpush.msra.mxu0 0.0
    %1530 = vmatpush.msra.mxu0 %v1496
    %1531 = vmatpush.msra.mxu0 %v1472
    %1532 = vmatpush.msra.mxu0 %v1470
    %1533 = vmatpush.msra.mxu0 %v1468
    %1534 = vmatpush.msra.mxu0 %v1466
    %1535 = vmatpush.msra.mxu0 %v1464
    %1536 = vmatpush.msra.mxu0 %v1462
    %1537 = vmatpush.msra.mxu0 %v1460
    %1538 = vmatpush.msra.mxu0 %v1458
    %1539 = vmatpush.msra.mxu0 %v1456
    %1540 = vmatpush.msra.mxu0 %v1454
    %1541 = vmatpush.msra.mxu0 %v1452
    %1542 = vmatpush.msra.mxu0 %v1450
    %1543 = vmatmul.f32.gmra.mxu0 %v1489
    %v1544 = vpop.f32.mrf.mxu0
    %v1545 = vadd.f32 %v1519, %v1544
    %1546 = vmatmul.f32.gmra.mxu0 %v1491
    %v1547 = vpop.f32.mrf.mxu0
    %v1548 = vadd.f32 %v1522, %v1547
    %1549 = vmatmul.f32.gmra.mxu0 %v1493
    %v1550 = vpop.f32.mrf.mxu0
    %v1551 = vadd.f32 %v1525, %v1550
    %1552 = vdwg.mxu0
    %1553 = vmatpush.msra.mxu0 %v1449
    %1554 = vmatpush.msra.mxu0 %v1447
    %1555 = vmatpush.msra.mxu0 %v1445
    %1556 = vmatpush.msra.mxu0 %v1443
    %1557 = vmatpush.msra.mxu0 %v1441
    %1558 = vmatpush.msra.mxu0 %v1439
    %1559 = vmatpush.msra.mxu0 %v1437
    %1560 = vmatpush.msra.mxu0 %v1435
    %1561 = vmatpush.msra.mxu0 %v1433
    %1562 = vmatpush.msra.mxu0 %v1431
    %1563 = vmatpush.msra.mxu0 %v1429
    %1564 = vmatpush.msra.mxu0 %v1427
    %1565 = vmatpush.msra.mxu0 %v1425
    %1566 = vmatpush.msra.mxu0 %v1423
    %1567 = vmatpush.msra.mxu0 %v1421
    %1568 = vmatpush.msra.mxu0 %v1419
    %1569 = vmatmul.f32.gmra.mxu0 %v1478
    %v1570 = vpop.f32.mrf.mxu0
    %v1571 = vadd.f32 0.0, %v1570
    %1572 = vmatmul.f32.gmra.mxu0 %v1483
    %v1573 = vpop.f32.mrf.mxu0
    %v1574 = vadd.f32 0.0, %v1573
    %1575 = vmatmul.f32.gmra.mxu0 %v1482
    %v1576 = vpop.f32.mrf.mxu0
    %v1577 = vadd.f32 0.0, %v1576
    %1578 = vdwg.mxu0
    %1579 = vmatpush.msra.mxu0 0.0
    %1580 = vmatpush.msra.mxu0 0.0
    %1581 = vmatpush.msra.mxu0 0.0
    %1582 = vmatpush.msra.mxu0 %v1499
    %1583 = vmatpush.msra.mxu0 %v1473
    %1584 = vmatpush.msra.mxu0 %v1471
    %1585 = vmatpush.msra.mxu0 %v1469
    %1586 = vmatpush.msra.mxu0 %v1467
    %1587 = vmatpush.msra.mxu0 %v1465
    %1588 = vmatpush.msra.mxu0 %v1463
    %1589 = vmatpush.msra.mxu0 %v1461
    %1590 = vmatpush.msra.mxu0 %v1459
    %1591 = vmatpush.msra.mxu0 %v1457
    %1592 = vmatpush.msra.mxu0 %v1455
    %1593 = vmatpush.msra.mxu0 %v1453
    %1594 = vmatpush.msra.mxu0 %v1451
    %1595 = vmatmul.f32.gmra.mxu0 %v1489
    %v1596 = vpop.f32.mrf.mxu0
    %v1597 = vadd.f32 %v1571, %v1596
    %1598 = vmatmul.f32.gmra.mxu0 %v1491
    %v1599 = vpop.f32.mrf.mxu0
    %v1600 = vadd.f32 %v1574, %v1599
    %1601 = vmatmul.f32.gmra.mxu0 %v1493
    %v1602 = vpop.f32.mrf.mxu0
    %v1603 = vadd.f32 %v1577, %v1602
    %1604 = vdwg.mxu0
    %v1605 = vadd.f32 %v1328, %v1545
    %v1606 = vadd.f32 %v1380, %v1597
    %v1607 = vadd.f32 %v1331, %v1548
    %v1608 = vadd.f32 %v1383, %v1600
    %v1609 = vadd.f32 %v1334, %v1551
    %v1610 = vadd.f32 %v1386, %v1603
    %v1612 = vperm.slane %v37, 0
    %v1613 = vperm.slane %v37, 1
    %v1616 = vadd.f32 %v1605, %v1612
    %v1617 = vadd.f32 %v1606, %v1613
    %v1618 = vadd.f32 %v1607, %v1612
    %v1619 = vadd.f32 %v1608, %v1613
    %v1620 = vadd.f32 %v1609, %v1612
    %v1621 = vadd.f32 %v1610, %v1613
    %v1622 = vmax.f32 %v1616, 0.0
    %v1623 = vmax.f32 %v1617, 0.0
    %v1624 = vmax.f32 %v1618, 0.0
    %v1625 = vmax.f32 %v1619, 0.0
    %v1626 = vmax.f32 %v1620, 0.0
    %v1627 = vmax.f32 %v1621, 0.0
    %v1631 = vrot.slane %v45, 4
    %v1632 = vrot.slane %v46, 4
    %v1633 = vsel %vm116, %v1631, %v1632
    %v1634 = vrot.slane %v47, 4
    %v1635 = vsel %vm116, %v1632, %v1634
    %vm1636 = vcmask 179200
    %v1637 = vsel %vm1636, %v1633, 0
    %v1639 = vsel %vm1636, %v1635, 0
    %v1641 = vsel %vm1636, %v1634, 0
    %v1644 = vsel %vm308, %v1626, 0
    %v1647 = vsel %vm308, %v1627, 0
    %1649 = vmatpush.msra.mxu0 0.0
    %1650 = vmatpush.msra.mxu0 0.0
    %1651 = vmatpush.msra.mxu0 0.0
    %1652 = vmatpush.msra.mxu0 0.0
    %1653 = vmatpush.msra.mxu0 0.0
    %1654 = vmatpush.msra.mxu0 0.0
    %1655 = vmatpush.msra.mxu0 0.0
    %1656 = vmatpush.msra.mxu0 0.0
    %1657 = vmatpush.msra.mxu0 0.0
    %1658 = vmatpush.msra.mxu0 0.0
    %1659 = vmatpush.msra.mxu0 0.0
    %1660 = vmatpush.msra.mxu0 0.0
    %1661 = vmatpush.msra.mxu0 0.0
    %1662 = vmatpush.msra.mxu0 %v1644
    %1663 = vmatpush.msra.mxu0 %v1624
    %1664 = vmatpush.msra.mxu0 %v1622
    %1665 = vmatmul.f32.gmra.mxu0 %v1637
    %v1666 = vpop.f32.mrf.mxu0
    %v1667 = vadd.f32 0.0, %v1666
    %1668 = vmatmul.f32.gmra.mxu0 %v1639
    %v1669 = vpop.f32.mrf.mxu0
    %v1670 = vadd.f32 0.0, %v1669
    %1671 = vmatmul.f32.gmra.mxu0 %v1641
    %v1672 = vpop.f32.mrf.mxu0
    %v1673 = vadd.f32 0.0, %v1672
    %1674 = vdwg.mxu0
    %1675 = vmatpush.msra.mxu0 0.0
    %1676 = vmatpush.msra.mxu0 0.0
    %1677 = vmatpush.msra.mxu0 0.0
    %1678 = vmatpush.msra.mxu0 0.0
    %1679 = vmatpush.msra.mxu0 0.0
    %1680 = vmatpush.msra.mxu0 0.0
    %1681 = vmatpush.msra.mxu0 0.0
    %1682 = vmatpush.msra.mxu0 0.0
    %1683 = vmatpush.msra.mxu0 0.0
    %1684 = vmatpush.msra.mxu0 0.0
    %1685 = vmatpush.msra.mxu0 0.0
    %1686 = vmatpush.msra.mxu0 0.0
    %1687 = vmatpush.msra.mxu0 0.0
    %1688 = vmatpush.msra.mxu0 %v1647
    %1689 = vmatpush.msra.mxu0 %v1625
    %1690 = vmatpush.msra.mxu0 %v1623
    %1691 = vmatmul.f32.gmra.mxu0 %v1637
    %v1692 = vpop.f32.mrf.mxu0
    %v1693 = vadd.f32 0.0, %v1692
    %1694 = vmatmul.f32.gmra.mxu0 %v1639
    %v1695 = vpop.f32.mrf.mxu0
    %v1696 = vadd.f32 0.0, %v1695
    %1697 = vmatmul.f32.gmra.mxu0 %v1641
    %v1698 = vpop.f32.mrf.mxu0
    %v1699 = vadd.f32 0.0, %v1698
    %1700 = vdwg.mxu0
    %s1701 = smul.u32 2, 10
    %s1702 = smul.u32 %s1701, 25
    %s1703 = smul.u32 %s1702, 4
    %s1704 = sshll.u32 %s1703, 4
    %1705 = dma.done [#allocation3], %s1704
    %v1706 = vld [vmem:[#allocation2] sm:$0xff]
    %v1707 = vld [vmem:[#allocation2 + $0x8] sm:$0xff]
    %v1708 = vld [vmem:[#allocation2 + $0x10] sm:$0xff]
    %v1709 = vld [vmem:[#allocation2 + $0x18] sm:$0xff]
    %v1710 = vld [vmem:[#allocation2 + $0x20] sm:$0xff]
    %v1711 = vld [vmem:[#allocation2 + $0x28] sm:$0xff]
    %v1712 = vld [vmem:[#allocation2 + $0x30] sm:$0xff]
    %v1713 = vld [vmem:[#allocation2 + $0x38] sm:$0xff]
    %v1714 = vld [vmem:[#allocation2 + $0x40] sm:$0xff]
    %v1715 = vld [vmem:[#allocation2 + $0x48] sm:$0xff]
    %v1716 = vld [vmem:[#allocation2 + $0x50] sm:$0xff]
    %v1717 = vld [vmem:[#allocation2 + $0x58] sm:$0xff]
    %v1718 = vld [vmem:[#allocation2 + $0x60] sm:$0xff]
    %v1719 = vld [vmem:[#allocation2 + $0x68] sm:$0xff]
    %v1720 = vld [vmem:[#allocation2 + $0x70] sm:$0xff]
    %v1721 = vld [vmem:[#allocation2 + $0x78] sm:$0xff]
    %v1722 = vld [vmem:[#allocation2 + $0x80] sm:$0xff]
    %v1723 = vld [vmem:[#allocation2 + $0x88] sm:$0xff]
    %v1724 = vld [vmem:[#allocation2 + $0x90] sm:$0xff]
    %v1725 = vld [vmem:[#allocation2 + $0x98] sm:$0xff]
    %v1726 = vld [vmem:[#allocation2 + $0xa0] sm:$0xff]
    %v1727 = vld [vmem:[#allocation2 + $0xa8] sm:$0xff]
    %v1728 = vld [vmem:[#allocation2 + $0xb0] sm:$0xff]
    %v1729 = vld [vmem:[#allocation2 + $0xb8] sm:$0xff]
    %v1730 = vld [vmem:[#allocation2 + $0xc0] sm:$0xff]
    %v1731 = vunpack.c.0.s8 %v1706
    %v1732 = vunpack.c.1.s8 %v1706
    %v1733 = vunpack.c.2.s8 %v1706
    %v1734 = vunpack.c.3.s8 %v1706
    %v1735 = vunpack.c.0.s8 %v1707
    %v1736 = vunpack.c.1.s8 %v1707
    %v1737 = vunpack.c.2.s8 %v1707
    %v1738 = vunpack.c.3.s8 %v1707
    %v1739 = vunpack.c.0.s8 %v1708
    %v1740 = vunpack.c.1.s8 %v1708
    %v1741 = vunpack.c.2.s8 %v1708
    %v1742 = vunpack.c.3.s8 %v1708
    %v1743 = vunpack.c.0.s8 %v1709
    %v1744 = vunpack.c.1.s8 %v1709
    %v1745 = vunpack.c.2.s8 %v1709
    %v1746 = vunpack.c.3.s8 %v1709
    %v1747 = vunpack.c.0.s8 %v1710
    %v1748 = vunpack.c.1.s8 %v1710
    %v1749 = vunpack.c.2.s8 %v1710
    %v1750 = vunpack.c.3.s8 %v1710
    %v1751 = vunpack.c.0.s8 %v1711
    %v1752 = vunpack.c.1.s8 %v1711
    %v1753 = vunpack.c.2.s8 %v1711
    %v1754 = vunpack.c.3.s8 %v1711
    %v1755 = vunpack.c.0.s8 %v1712
    %v1756 = vunpack.c.1.s8 %v1712
    %v1757 = vunpack.c.2.s8 %v1712
    %v1758 = vunpack.c.3.s8 %v1712
    %v1759 = vunpack.c.0.s8 %v1713
    %v1760 = vunpack.c.1.s8 %v1713
    %v1761 = vunpack.c.2.s8 %v1713
    %v1762 = vunpack.c.3.s8 %v1713
    %v1763 = vunpack.c.0.s8 %v1714
    %v1764 = vunpack.c.1.s8 %v1714
    %v1765 = vunpack.c.2.s8 %v1714
    %v1766 = vunpack.c.3.s8 %v1714
    %v1767 = vunpack.c.0.s8 %v1715
    %v1768 = vunpack.c.1.s8 %v1715
    %v1769 = vunpack.c.2.s8 %v1715
    %v1770 = vunpack.c.3.s8 %v1715
    %v1771 = vunpack.c.0.s8 %v1716
    %v1772 = vunpack.c.1.s8 %v1716
    %v1773 = vunpack.c.2.s8 %v1716
    %v1774 = vunpack.c.3.s8 %v1716
    %v1775 = vunpack.c.0.s8 %v1717
    %v1776 = vunpack.c.1.s8 %v1717
    %v1777 = vunpack.c.2.s8 %v1717
    %v1778 = vunpack.c.3.s8 %v1717
    %v1779 = vunpack.c.0.s8 %v1718
    %v1780 = vunpack.c.1.s8 %v1718
    %v1781 = vunpack.c.2.s8 %v1718
    %v1782 = vunpack.c.3.s8 %v1718
    %v1783 = vunpack.c.0.s8 %v1719
    %v1784 = vunpack.c.1.s8 %v1719
    %v1785 = vunpack.c.2.s8 %v1719
    %v1786 = vunpack.c.3.s8 %v1719
    %v1787 = vunpack.c.0.s8 %v1720
    %v1788 = vunpack.c.1.s8 %v1720
    %v1789 = vunpack.c.2.s8 %v1720
    %v1790 = vunpack.c.3.s8 %v1720
    %v1791 = vunpack.c.0.s8 %v1721
    %v1792 = vunpack.c.1.s8 %v1721
    %v1793 = vunpack.c.2.s8 %v1721
    %v1794 = vunpack.c.3.s8 %v1721
    %v1795 = vunpack.c.0.s8 %v1722
    %v1796 = vunpack.c.1.s8 %v1722
    %v1797 = vunpack.c.2.s8 %v1722
    %v1798 = vunpack.c.3.s8 %v1722
    %v1799 = vunpack.c.0.s8 %v1723
    %v1800 = vunpack.c.1.s8 %v1723
    %v1801 = vunpack.c.2.s8 %v1723
    %v1802 = vunpack.c.3.s8 %v1723
    %v1803 = vunpack.c.0.s8 %v1724
    %v1804 = vunpack.c.1.s8 %v1724
    %v1805 = vunpack.c.2.s8 %v1724
    %v1806 = vunpack.c.3.s8 %v1724
    %v1807 = vunpack.c.0.s8 %v1725
    %v1808 = vunpack.c.1.s8 %v1725
    %v1809 = vunpack.c.2.s8 %v1725
    %v1810 = vunpack.c.3.s8 %v1725
    %v1811 = vunpack.c.0.s8 %v1726
    %v1812 = vunpack.c.1.s8 %v1726
    %v1813 = vunpack.c.2.s8 %v1726
    %v1814 = vunpack.c.3.s8 %v1726
    %v1815 = vunpack.c.0.s8 %v1727
    %v1816 = vunpack.c.1.s8 %v1727
    %v1817 = vunpack.c.2.s8 %v1727
    %v1818 = vunpack.c.3.s8 %v1727
    %v1819 = vunpack.c.0.s8 %v1728
    %v1820 = vunpack.c.1.s8 %v1728
    %v1821 = vunpack.c.2.s8 %v1728
    %v1822 = vunpack.c.3.s8 %v1728
    %v1823 = vunpack.c.0.s8 %v1729
    %v1824 = vunpack.c.1.s8 %v1729
    %v1825 = vunpack.c.2.s8 %v1729
    %v1826 = vunpack.c.3.s8 %v1729
    %v1827 = vunpack.c.0.s8 %v1730
    %v1828 = vunpack.c.1.s8 %v1730
    %v1829 = vunpack.c.2.s8 %v1730
    %v1830 = vunpack.c.3.s8 %v1730
    %v1831 = vcvt.s32.f32 %v1731
    %v1832 = vcvt.s32.f32 %v1732
    %v1833 = vcvt.s32.f32 %v1733
    %v1834 = vcvt.s32.f32 %v1734
    %v1835 = vcvt.s32.f32 %v1735
    %v1836 = vcvt.s32.f32 %v1736
    %v1837 = vcvt.s32.f32 %v1737
    %v1838 = vcvt.s32.f32 %v1738
    %v1839 = vcvt.s32.f32 %v1739
    %v1840 = vcvt.s32.f32 %v1740
    %v1841 = vcvt.s32.f32 %v1741
    %v1842 = vcvt.s32.f32 %v1742
    %v1843 = vcvt.s32.f32 %v1743
    %v1844 = vcvt.s32.f32 %v1744
    %v1845 = vcvt.s32.f32 %v1745
    %v1846 = vcvt.s32.f32 %v1746
    %v1847 = vcvt.s32.f32 %v1747
    %v1848 = vcvt.s32.f32 %v1748
    %v1849 = vcvt.s32.f32 %v1749
    %v1850 = vcvt.s32.f32 %v1750
    %v1851 = vcvt.s32.f32 %v1751
    %v1852 = vcvt.s32.f32 %v1752
    %v1853 = vcvt.s32.f32 %v1753
    %v1854 = vcvt.s32.f32 %v1754
    %v1855 = vcvt.s32.f32 %v1755
    %v1856 = vcvt.s32.f32 %v1756
    %v1857 = vcvt.s32.f32 %v1757
    %v1858 = vcvt.s32.f32 %v1758
    %v1859 = vcvt.s32.f32 %v1759
    %v1860 = vcvt.s32.f32 %v1760
    %v1861 = vcvt.s32.f32 %v1761
    %v1862 = vcvt.s32.f32 %v1762
    %v1863 = vcvt.s32.f32 %v1763
    %v1864 = vcvt.s32.f32 %v1764
    %v1865 = vcvt.s32.f32 %v1765
    %v1866 = vcvt.s32.f32 %v1766
    %v1867 = vcvt.s32.f32 %v1767
    %v1868 = vcvt.s32.f32 %v1768
    %v1869 = vcvt.s32.f32 %v1769
    %v1870 = vcvt.s32.f32 %v1770
    %v1871 = vcvt.s32.f32 %v1771
    %v1872 = vcvt.s32.f32 %v1772
    %v1873 = vcvt.s32.f32 %v1773
    %v1874 = vcvt.s32.f32 %v1774
    %v1875 = vcvt.s32.f32 %v1775
    %v1876 = vcvt.s32.f32 %v1776
    %v1877 = vcvt.s32.f32 %v1777
    %v1878 = vcvt.s32.f32 %v1778
    %v1879 = vcvt.s32.f32 %v1779
    %v1880 = vcvt.s32.f32 %v1780
    %v1881 = vcvt.s32.f32 %v1781
    %v1882 = vcvt.s32.f32 %v1782
    %v1883 = vcvt.s32.f32 %v1783
    %v1884 = vcvt.s32.f32 %v1784
    %v1885 = vcvt.s32.f32 %v1785
    %v1886 = vcvt.s32.f32 %v1786
    %v1887 = vcvt.s32.f32 %v1787
    %v1888 = vcvt.s32.f32 %v1788
    %v1889 = vcvt.s32.f32 %v1789
    %v1890 = vcvt.s32.f32 %v1790
    %v1891 = vcvt.s32.f32 %v1791
    %v1892 = vcvt.s32.f32 %v1792
    %v1893 = vcvt.s32.f32 %v1793
    %v1894 = vcvt.s32.f32 %v1794
    %v1895 = vcvt.s32.f32 %v1795
    %v1896 = vcvt.s32.f32 %v1796
    %v1897 = vcvt.s32.f32 %v1797
    %v1898 = vcvt.s32.f32 %v1798
    %v1899 = vcvt.s32.f32 %v1799
    %v1900 = vcvt.s32.f32 %v1800
    %v1901 = vcvt.s32.f32 %v1801
    %v1902 = vcvt.s32.f32 %v1802
    %v1903 = vcvt.s32.f32 %v1803
    %v1904 = vcvt.s32.f32 %v1804
    %v1905 = vcvt.s32.f32 %v1805
    %v1906 = vcvt.s32.f32 %v1806
    %v1907 = vcvt.s32.f32 %v1807
    %v1908 = vcvt.s32.f32 %v1808
    %v1909 = vcvt.s32.f32 %v1809
    %v1910 = vcvt.s32.f32 %v1810
    %v1911 = vcvt.s32.f32 %v1811
    %v1912 = vcvt.s32.f32 %v1812
    %v1913 = vcvt.s32.f32 %v1813
    %v1914 = vcvt.s32.f32 %v1814
    %v1915 = vcvt.s32.f32 %v1815
    %v1916 = vcvt.s32.f32 %v1816
    %v1917 = vcvt.s32.f32 %v1817
    %v1918 = vcvt.s32.f32 %v1818
    %v1919 = vcvt.s32.f32 %v1819
    %v1920 = vcvt.s32.f32 %v1820
    %v1921 = vcvt.s32.f32 %v1821
    %v1922 = vcvt.s32.f32 %v1822
    %v1923 = vcvt.s32.f32 %v1823
    %v1924 = vcvt.s32.f32 %v1824
    %v1925 = vcvt.s32.f32 %v1825
    %v1926 = vcvt.s32.f32 %v1826
    %v1927 = vcvt.s32.f32 %v1827
    %v1928 = vcvt.s32.f32 %v1828
    %v1929 = vcvt.s32.f32 %v1829
    %v1930 = vcvt.s32.f32 %v1830
    %s1931 = scalar_lea.vmem [#allocation2], 200
    %v1932 = vld [vmem:[%s1931] sm:$0xff]
    %v1933 = vld [vmem:[%s1931 + $0x8] sm:$0xff]
    %v1934 = vld [vmem:[%s1931 + $0x10] sm:$0xff]
    %v1935 = vld [vmem:[%s1931 + $0x18] sm:$0xff]
    %v1936 = vld [vmem:[%s1931 + $0x20] sm:$0xff]
    %v1937 = vld [vmem:[%s1931 + $0x28] sm:$0xff]
    %v1938 = vld [vmem:[%s1931 + $0x30] sm:$0xff]
    %v1939 = vld [vmem:[%s1931 + $0x38] sm:$0xff]
    %v1940 = vld [vmem:[%s1931 + $0x40] sm:$0xff]
    %v1941 = vld [vmem:[%s1931 + $0x48] sm:$0xff]
    %v1942 = vld [vmem:[%s1931 + $0x50] sm:$0xff]
    %v1943 = vld [vmem:[%s1931 + $0x58] sm:$0xff]
    %v1944 = vld [vmem:[%s1931 + $0x60] sm:$0xff]
    %v1945 = vld [vmem:[%s1931 + $0x68] sm:$0xff]
    %v1946 = vld [vmem:[%s1931 + $0x70] sm:$0xff]
    %v1947 = vld [vmem:[%s1931 + $0x78] sm:$0xff]
    %v1948 = vld [vmem:[%s1931 + $0x80] sm:$0xff]
    %v1949 = vld [vmem:[%s1931 + $0x88] sm:$0xff]
    %v1950 = vld [vmem:[%s1931 + $0x90] sm:$0xff]
    %v1951 = vld [vmem:[%s1931 + $0x98] sm:$0xff]
    %v1952 = vld [vmem:[%s1931 + $0xa0] sm:$0xff]
    %v1953 = vld [vmem:[%s1931 + $0xa8] sm:$0xff]
    %v1954 = vld [vmem:[%s1931 + $0xb0] sm:$0xff]
    %v1955 = vld [vmem:[%s1931 + $0xb8] sm:$0xff]
    %v1956 = vld [vmem:[%s1931 + $0xc0] sm:$0xff]
    %v1957 = vunpack.c.0.s8 %v1932
    %v1958 = vunpack.c.1.s8 %v1932
    %v1959 = vunpack.c.2.s8 %v1932
    %v1960 = vunpack.c.3.s8 %v1932
    %v1961 = vunpack.c.0.s8 %v1933
    %v1962 = vunpack.c.1.s8 %v1933
    %v1963 = vunpack.c.2.s8 %v1933
    %v1964 = vunpack.c.3.s8 %v1933
    %v1965 = vunpack.c.0.s8 %v1934
    %v1966 = vunpack.c.1.s8 %v1934
    %v1967 = vunpack.c.2.s8 %v1934
    %v1968 = vunpack.c.3.s8 %v1934
    %v1969 = vunpack.c.0.s8 %v1935
    %v1970 = vunpack.c.1.s8 %v1935
    %v1971 = vunpack.c.2.s8 %v1935
    %v1972 = vunpack.c.3.s8 %v1935
    %v1973 = vunpack.c.0.s8 %v1936
    %v1974 = vunpack.c.1.s8 %v1936
    %v1975 = vunpack.c.2.s8 %v1936
    %v1976 = vunpack.c.3.s8 %v1936
    %v1977 = vunpack.c.0.s8 %v1937
    %v1978 = vunpack.c.1.s8 %v1937
    %v1979 = vunpack.c.2.s8 %v1937
    %v1980 = vunpack.c.3.s8 %v1937
    %v1981 = vunpack.c.0.s8 %v1938
    %v1982 = vunpack.c.1.s8 %v1938
    %v1983 = vunpack.c.2.s8 %v1938
    %v1984 = vunpack.c.3.s8 %v1938
    %v1985 = vunpack.c.0.s8 %v1939
    %v1986 = vunpack.c.1.s8 %v1939
    %v1987 = vunpack.c.2.s8 %v1939
    %v1988 = vunpack.c.3.s8 %v1939
    %v1989 = vunpack.c.0.s8 %v1940
    %v1990 = vunpack.c.1.s8 %v1940
    %v1991 = vunpack.c.2.s8 %v1940
    %v1992 = vunpack.c.3.s8 %v1940
    %v1993 = vunpack.c.0.s8 %v1941
    %v1994 = vunpack.c.1.s8 %v1941
    %v1995 = vunpack.c.2.s8 %v1941
    %v1996 = vunpack.c.3.s8 %v1941
    %v1997 = vunpack.c.0.s8 %v1942
    %v1998 = vunpack.c.1.s8 %v1942
    %v1999 = vunpack.c.2.s8 %v1942
    %v2000 = vunpack.c.3.s8 %v1942
    %v2001 = vunpack.c.0.s8 %v1943
    %v2002 = vunpack.c.1.s8 %v1943
    %v2003 = vunpack.c.2.s8 %v1943
    %v2004 = vunpack.c.3.s8 %v1943
    %v2005 = vunpack.c.0.s8 %v1944
    %v2006 = vunpack.c.1.s8 %v1944
    %v2007 = vunpack.c.2.s8 %v1944
    %v2008 = vunpack.c.3.s8 %v1944
    %v2009 = vunpack.c.0.s8 %v1945
    %v2010 = vunpack.c.1.s8 %v1945
    %v2011 = vunpack.c.2.s8 %v1945
    %v2012 = vunpack.c.3.s8 %v1945
    %v2013 = vunpack.c.0.s8 %v1946
    %v2014 = vunpack.c.1.s8 %v1946
    %v2015 = vunpack.c.2.s8 %v1946
    %v2016 = vunpack.c.3.s8 %v1946
    %v2017 = vunpack.c.0.s8 %v1947
    %v2018 = vunpack.c.1.s8 %v1947
    %v2019 = vunpack.c.2.s8 %v1947
    %v2020 = vunpack.c.3.s8 %v1947
    %v2021 = vunpack.c.0.s8 %v1948
    %v2022 = vunpack.c.1.s8 %v1948
    %v2023 = vunpack.c.2.s8 %v1948
    %v2024 = vunpack.c.3.s8 %v1948
    %v2025 = vunpack.c.0.s8 %v1949
    %v2026 = vunpack.c.1.s8 %v1949
    %v2027 = vunpack.c.2.s8 %v1949
    %v2028 = vunpack.c.3.s8 %v1949
    %v2029 = vunpack.c.0.s8 %v1950
    %v2030 = vunpack.c.1.s8 %v1950
    %v2031 = vunpack.c.2.s8 %v1950
    %v2032 = vunpack.c.3.s8 %v1950
    %v2033 = vunpack.c.0.s8 %v1951
    %v2034 = vunpack.c.1.s8 %v1951
    %v2035 = vunpack.c.2.s8 %v1951
    %v2036 = vunpack.c.3.s8 %v1951
    %v2037 = vunpack.c.0.s8 %v1952
    %v2038 = vunpack.c.1.s8 %v1952
    %v2039 = vunpack.c.2.s8 %v1952
    %v2040 = vunpack.c.3.s8 %v1952
    %v2041 = vunpack.c.0.s8 %v1953
    %v2042 = vunpack.c.1.s8 %v1953
    %v2043 = vunpack.c.2.s8 %v1953
    %v2044 = vunpack.c.3.s8 %v1953
    %v2045 = vunpack.c.0.s8 %v1954
    %v2046 = vunpack.c.1.s8 %v1954
    %v2047 = vunpack.c.2.s8 %v1954
    %v2048 = vunpack.c.3.s8 %v1954
    %v2049 = vunpack.c.0.s8 %v1955
    %v2050 = vunpack.c.1.s8 %v1955
    %v2051 = vunpack.c.2.s8 %v1955
    %v2052 = vunpack.c.3.s8 %v1955
    %v2053 = vunpack.c.0.s8 %v1956
    %v2054 = vunpack.c.1.s8 %v1956
    %v2055 = vunpack.c.2.s8 %v1956
    %v2056 = vunpack.c.3.s8 %v1956
    %v2057 = vcvt.s32.f32 %v1957
    %v2058 = vcvt.s32.f32 %v1958
    %v2059 = vcvt.s32.f32 %v1959
    %v2060 = vcvt.s32.f32 %v1960
    %v2061 = vcvt.s32.f32 %v1961
    %v2062 = vcvt.s32.f32 %v1962
    %v2063 = vcvt.s32.f32 %v1963
    %v2064 = vcvt.s32.f32 %v1964
    %v2065 = vcvt.s32.f32 %v1965
    %v2066 = vcvt.s32.f32 %v1966
    %v2067 = vcvt.s32.f32 %v1967
    %v2068 = vcvt.s32.f32 %v1968
    %v2069 = vcvt.s32.f32 %v1969
    %v2070 = vcvt.s32.f32 %v1970
    %v2071 = vcvt.s32.f32 %v1971
    %v2072 = vcvt.s32.f32 %v1972
    %v2073 = vcvt.s32.f32 %v1973
    %v2074 = vcvt.s32.f32 %v1974
    %v2075 = vcvt.s32.f32 %v1975
    %v2076 = vcvt.s32.f32 %v1976
    %v2077 = vcvt.s32.f32 %v1977
    %v2078 = vcvt.s32.f32 %v1978
    %v2079 = vcvt.s32.f32 %v1979
    %v2080 = vcvt.s32.f32 %v1980
    %v2081 = vcvt.s32.f32 %v1981
    %v2082 = vcvt.s32.f32 %v1982
    %v2083 = vcvt.s32.f32 %v1983
    %v2084 = vcvt.s32.f32 %v1984
    %v2085 = vcvt.s32.f32 %v1985
    %v2086 = vcvt.s32.f32 %v1986
    %v2087 = vcvt.s32.f32 %v1987
    %v2088 = vcvt.s32.f32 %v1988
    %v2089 = vcvt.s32.f32 %v1989
    %v2090 = vcvt.s32.f32 %v1990
    %v2091 = vcvt.s32.f32 %v1991
    %v2092 = vcvt.s32.f32 %v1992
    %v2093 = vcvt.s32.f32 %v1993
    %v2094 = vcvt.s32.f32 %v1994
    %v2095 = vcvt.s32.f32 %v1995
    %v2096 = vcvt.s32.f32 %v1996
    %v2097 = vcvt.s32.f32 %v1997
    %v2098 = vcvt.s32.f32 %v1998
    %v2099 = vcvt.s32.f32 %v1999
    %v2100 = vcvt.s32.f32 %v2000
    %v2101 = vcvt.s32.f32 %v2001
    %v2102 = vcvt.s32.f32 %v2002
    %v2103 = vcvt.s32.f32 %v2003
    %v2104 = vcvt.s32.f32 %v2004
    %v2105 = vcvt.s32.f32 %v2005
    %v2106 = vcvt.s32.f32 %v2006
    %v2107 = vcvt.s32.f32 %v2007
    %v2108 = vcvt.s32.f32 %v2008
    %v2109 = vcvt.s32.f32 %v2009
    %v2110 = vcvt.s32.f32 %v2010
    %v2111 = vcvt.s32.f32 %v2011
    %v2112 = vcvt.s32.f32 %v2012
    %v2113 = vcvt.s32.f32 %v2013
    %v2114 = vcvt.s32.f32 %v2014
    %v2115 = vcvt.s32.f32 %v2015
    %v2116 = vcvt.s32.f32 %v2016
    %v2117 = vcvt.s32.f32 %v2017
    %v2118 = vcvt.s32.f32 %v2018
    %v2119 = vcvt.s32.f32 %v2019
    %v2120 = vcvt.s32.f32 %v2020
    %v2121 = vcvt.s32.f32 %v2021
    %v2122 = vcvt.s32.f32 %v2022
    %v2123 = vcvt.s32.f32 %v2023
    %v2124 = vcvt.s32.f32 %v2024
    %v2125 = vcvt.s32.f32 %v2025
    %v2126 = vcvt.s32.f32 %v2026
    %v2127 = vcvt.s32.f32 %v2027
    %v2128 = vcvt.s32.f32 %v2028
    %v2129 = vcvt.s32.f32 %v2029
    %v2130 = vcvt.s32.f32 %v2030
    %v2131 = vcvt.s32.f32 %v2031
    %v2132 = vcvt.s32.f32 %v2032
    %v2133 = vcvt.s32.f32 %v2033
    %v2134 = vcvt.s32.f32 %v2034
    %v2135 = vcvt.s32.f32 %v2035
    %v2136 = vcvt.s32.f32 %v2036
    %v2137 = vcvt.s32.f32 %v2037
    %v2138 = vcvt.s32.f32 %v2038
    %v2139 = vcvt.s32.f32 %v2039
    %v2140 = vcvt.s32.f32 %v2040
    %v2141 = vcvt.s32.f32 %v2041
    %v2142 = vcvt.s32.f32 %v2042
    %v2143 = vcvt.s32.f32 %v2043
    %v2144 = vcvt.s32.f32 %v2044
    %v2145 = vcvt.s32.f32 %v2045
    %v2146 = vcvt.s32.f32 %v2046
    %v2147 = vcvt.s32.f32 %v2047
    %v2148 = vcvt.s32.f32 %v2048
    %v2149 = vcvt.s32.f32 %v2049
    %v2150 = vcvt.s32.f32 %v2050
    %v2151 = vcvt.s32.f32 %v2051
    %v2152 = vcvt.s32.f32 %v2052
    %v2153 = vcvt.s32.f32 %v2053
    %v2154 = vcvt.s32.f32 %v2054
    %v2155 = vcvt.s32.f32 %v2055
    %v2156 = vcvt.s32.f32 %v2056
    %v2159 = vrot.slane %v1667, 2
    %v2160 = vrot.slane %v1693, 2
    %vm2162 = vcmask 588800
    %v2163 = vsel %vm2162, %v2160, 0
    %2165 = vmatpush.msra.mxu0 %v2117
    %2166 = vmatpush.msra.mxu0 %v2113
    %2167 = vmatpush.msra.mxu0 %v2109
    %2168 = vmatpush.msra.mxu0 %v2105
    %2169 = vmatpush.msra.mxu0 %v2101
    %2170 = vmatpush.msra.mxu0 %v2097
    %2171 = vmatpush.msra.mxu0 %v2093
    %2172 = vmatpush.msra.mxu0 %v2089
    %2173 = vmatpush.msra.mxu0 %v2085
    %2174 = vmatpush.msra.mxu0 %v2081
    %2175 = vmatpush.msra.mxu0 %v2077
    %2176 = vmatpush.msra.mxu0 %v2073
    %2177 = vmatpush.msra.mxu0 %v2069
    %2178 = vmatpush.msra.mxu0 %v2065
    %2179 = vmatpush.msra.mxu0 %v2061
    %2180 = vmatpush.msra.mxu0 %v2057
    %2181 = vmatmul.f32.gmra.mxu0 %v2159
    %v2182 = vpop.f32.mrf.mxu0
    %v2183 = vadd.f32 0.0, %v2182
    %2184 = vdwg.mxu0
    %2185 = vmatpush.msra.mxu0 0.0
    %2186 = vmatpush.msra.mxu0 0.0
    %2187 = vmatpush.msra.mxu0 0.0
    %2188 = vmatpush.msra.mxu0 0.0
    %2189 = vmatpush.msra.mxu0 0.0
    %2190 = vmatpush.msra.mxu0 0.0
    %2191 = vmatpush.msra.mxu0 0.0
    %2192 = vmatpush.msra.mxu0 %v2153
    %2193 = vmatpush.msra.mxu0 %v2149
    %2194 = vmatpush.msra.mxu0 %v2145
    %2195 = vmatpush.msra.mxu0 %v2141
    %2196 = vmatpush.msra.mxu0 %v2137
    %2197 = vmatpush.msra.mxu0 %v2133
    %2198 = vmatpush.msra.mxu0 %v2129
    %2199 = vmatpush.msra.mxu0 %v2125
    %2200 = vmatpush.msra.mxu0 %v2121
    %2201 = vmatmul.f32.gmra.mxu0 %v2163
    %v2202 = vpop.f32.mrf.mxu0
    %v2203 = vadd.f32 %v2183, %v2202
    %2204 = vdwg.mxu0
    %2205 = vmatpush.msra.mxu0 %v2118
    %2206 = vmatpush.msra.mxu0 %v2114
    %2207 = vmatpush.msra.mxu0 %v2110
    %2208 = vmatpush.msra.mxu0 %v2106
    %2209 = vmatpush.msra.mxu0 %v2102
    %2210 = vmatpush.msra.mxu0 %v2098
    %2211 = vmatpush.msra.mxu0 %v2094
    %2212 = vmatpush.msra.mxu0 %v2090
    %2213 = vmatpush.msra.mxu0 %v2086
    %2214 = vmatpush.msra.mxu0 %v2082
    %2215 = vmatpush.msra.mxu0 %v2078
    %2216 = vmatpush.msra.mxu0 %v2074
    %2217 = vmatpush.msra.mxu0 %v2070
    %2218 = vmatpush.msra.mxu0 %v2066
    %2219 = vmatpush.msra.mxu0 %v2062
    %2220 = vmatpush.msra.mxu0 %v2058
    %2221 = vmatmul.f32.gmra.mxu0 %v2159
    %v2222 = vpop.f32.mrf.mxu0
    %v2223 = vadd.f32 0.0, %v2222
    %2224 = vdwg.mxu0
    %2225 = vmatpush.msra.mxu0 0.0
    %2226 = vmatpush.msra.mxu0 0.0
    %2227 = vmatpush.msra.mxu0 0.0
    %2228 = vmatpush.msra.mxu0 0.0
    %2229 = vmatpush.msra.mxu0 0.0
    %2230 = vmatpush.msra.mxu0 0.0
    %2231 = vmatpush.msra.mxu0 0.0
    %2232 = vmatpush.msra.mxu0 %v2154
    %2233 = vmatpush.msra.mxu0 %v2150
    %2234 = vmatpush.msra.mxu0 %v2146
    %2235 = vmatpush.msra.mxu0 %v2142
    %2236 = vmatpush.msra.mxu0 %v2138
    %2237 = vmatpush.msra.mxu0 %v2134
    %2238 = vmatpush.msra.mxu0 %v2130
    %2239 = vmatpush.msra.mxu0 %v2126
    %2240 = vmatpush.msra.mxu0 %v2122
    %2241 = vmatmul.f32.gmra.mxu0 %v2163
    %v2242 = vpop.f32.mrf.mxu0
    %v2243 = vadd.f32 %v2223, %v2242
    %2244 = vdwg.mxu0
    %2245 = vmatpush.msra.mxu0 %v2119
    %2246 = vmatpush.msra.mxu0 %v2115
    %2247 = vmatpush.msra.mxu0 %v2111
    %2248 = vmatpush.msra.mxu0 %v2107
    %2249 = vmatpush.msra.mxu0 %v2103
    %2250 = vmatpush.msra.mxu0 %v2099
    %2251 = vmatpush.msra.mxu0 %v2095
    %2252 = vmatpush.msra.mxu0 %v2091
    %2253 = vmatpush.msra.mxu0 %v2087
    %2254 = vmatpush.msra.mxu0 %v2083
    %2255 = vmatpush.msra.mxu0 %v2079
    %2256 = vmatpush.msra.mxu0 %v2075
    %2257 = vmatpush.msra.mxu0 %v2071
    %2258 = vmatpush.msra.mxu0 %v2067
    %2259 = vmatpush.msra.mxu0 %v2063
    %2260 = vmatpush.msra.mxu0 %v2059
    %2261 = vmatmul.f32.gmra.mxu0 %v2159
    %v2262 = vpop.f32.mrf.mxu0
    %v2263 = vadd.f32 0.0, %v2262
    %2264 = vdwg.mxu0
    %2265 = vmatpush.msra.mxu0 0.0
    %2266 = vmatpush.msra.mxu0 0.0
    %2267 = vmatpush.msra.mxu0 0.0
    %2268 = vmatpush.msra.mxu0 0.0
    %2269 = vmatpush.msra.mxu0 0.0
    %2270 = vmatpush.msra.mxu0 0.0
    %2271 = vmatpush.msra.mxu0 0.0
    %2272 = vmatpush.msra.mxu0 %v2155
    %2273 = vmatpush.msra.mxu0 %v2151
    %2274 = vmatpush.msra.mxu0 %v2147
    %2275 = vmatpush.msra.mxu0 %v2143
    %2276 = vmatpush.msra.mxu0 %v2139
    %2277 = vmatpush.msra.mxu0 %v2135
    %2278 = vmatpush.msra.mxu0 %v2131
    %2279 = vmatpush.msra.mxu0 %v2127
    %2280 = vmatpush.msra.mxu0 %v2123
    %2281 = vmatmul.f32.gmra.mxu0 %v2163
    %v2282 = vpop.f32.mrf.mxu0
    %v2283 = vadd.f32 %v2263, %v2282
    %2284 = vdwg.mxu0
    %2285 = vmatpush.msra.mxu0 %v2120
    %2286 = vmatpush.msra.mxu0 %v2116
    %2287 = vmatpush.msra.mxu0 %v2112
    %2288 = vmatpush.msra.mxu0 %v2108
    %2289 = vmatpush.msra.mxu0 %v2104
    %2290 = vmatpush.msra.mxu0 %v2100
    %2291 = vmatpush.msra.mxu0 %v2096
    %2292 = vmatpush.msra.mxu0 %v2092
    %2293 = vmatpush.msra.mxu0 %v2088
    %2294 = vmatpush.msra.mxu0 %v2084
    %2295 = vmatpush.msra.mxu0 %v2080
    %2296 = vmatpush.msra.mxu0 %v2076
    %2297 = vmatpush.msra.mxu0 %v2072
    %2298 = vmatpush.msra.mxu0 %v2068
    %2299 = vmatpush.msra.mxu0 %v2064
    %2300 = vmatpush.msra.mxu0 %v2060
    %2301 = vmatmul.f32.gmra.mxu0 %v2159
    %v2302 = vpop.f32.mrf.mxu0
    %v2303 = vadd.f32 0.0, %v2302
    %2304 = vdwg.mxu0
    %2305 = vmatpush.msra.mxu0 0.0
    %2306 = vmatpush.msra.mxu0 0.0
    %2307 = vmatpush.msra.mxu0 0.0
    %2308 = vmatpush.msra.mxu0 0.0
    %2309 = vmatpush.msra.mxu0 0.0
    %2310 = vmatpush.msra.mxu0 0.0
    %2311 = vmatpush.msra.mxu0 0.0
    %2312 = vmatpush.msra.mxu0 %v2156
    %2313 = vmatpush.msra.mxu0 %v2152
    %2314 = vmatpush.msra.mxu0 %v2148
    %2315 = vmatpush.msra.mxu0 %v2144
    %2316 = vmatpush.msra.mxu0 %v2140
    %2317 = vmatpush.msra.mxu0 %v2136
    %2318 = vmatpush.msra.mxu0 %v2132
    %2319 = vmatpush.msra.mxu0 %v2128
    %2320 = vmatpush.msra.mxu0 %v2124
    %2321 = vmatmul.f32.gmra.mxu0 %v2163
    %v2322 = vpop.f32.mrf.mxu0
    %v2323 = vadd.f32 %v2303, %v2322
    %2324 = vdwg.mxu0
    %v2325 = vsel %vm2162, %v1693, 0
    %2327 = vmatpush.msra.mxu0 %v1891
    %2328 = vmatpush.msra.mxu0 %v1887
    %2329 = vmatpush.msra.mxu0 %v1883
    %2330 = vmatpush.msra.mxu0 %v1879
    %2331 = vmatpush.msra.mxu0 %v1875
    %2332 = vmatpush.msra.mxu0 %v1871
    %2333 = vmatpush.msra.mxu0 %v1867
    %2334 = vmatpush.msra.mxu0 %v1863
    %2335 = vmatpush.msra.mxu0 %v1859
    %2336 = vmatpush.msra.mxu0 %v1855
    %2337 = vmatpush.msra.mxu0 %v1851
    %2338 = vmatpush.msra.mxu0 %v1847
    %2339 = vmatpush.msra.mxu0 %v1843
    %2340 = vmatpush.msra.mxu0 %v1839
    %2341 = vmatpush.msra.mxu0 %v1835
    %2342 = vmatpush.msra.mxu0 %v1831
    %2343 = vmatmul.f32.gmra.mxu0 %v1667
    %v2344 = vpop.f32.mrf.mxu0
    %v2345 = vadd.f32 %v2203, %v2344
    %2346 = vdwg.mxu0
    %2347 = vmatpush.msra.mxu0 0.0
    %2348 = vmatpush.msra.mxu0 0.0
    %2349 = vmatpush.msra.mxu0 0.0
    %2350 = vmatpush.msra.mxu0 0.0
    %2351 = vmatpush.msra.mxu0 0.0
    %2352 = vmatpush.msra.mxu0 0.0
    %2353 = vmatpush.msra.mxu0 0.0
    %2354 = vmatpush.msra.mxu0 %v1927
    %2355 = vmatpush.msra.mxu0 %v1923
    %2356 = vmatpush.msra.mxu0 %v1919
    %2357 = vmatpush.msra.mxu0 %v1915
    %2358 = vmatpush.msra.mxu0 %v1911
    %2359 = vmatpush.msra.mxu0 %v1907
    %2360 = vmatpush.msra.mxu0 %v1903
    %2361 = vmatpush.msra.mxu0 %v1899
    %2362 = vmatpush.msra.mxu0 %v1895
    %2363 = vmatmul.f32.gmra.mxu0 %v2325
    %v2364 = vpop.f32.mrf.mxu0
    %v2365 = vadd.f32 %v2345, %v2364
    %2366 = vdwg.mxu0
    %2367 = vmatpush.msra.mxu0 %v1892
    %2368 = vmatpush.msra.mxu0 %v1888
    %2369 = vmatpush.msra.mxu0 %v1884
    %2370 = vmatpush.msra.mxu0 %v1880
    %2371 = vmatpush.msra.mxu0 %v1876
    %2372 = vmatpush.msra.mxu0 %v1872
    %2373 = vmatpush.msra.mxu0 %v1868
    %2374 = vmatpush.msra.mxu0 %v1864
    %2375 = vmatpush.msra.mxu0 %v1860
    %2376 = vmatpush.msra.mxu0 %v1856
    %2377 = vmatpush.msra.mxu0 %v1852
    %2378 = vmatpush.msra.mxu0 %v1848
    %2379 = vmatpush.msra.mxu0 %v1844
    %2380 = vmatpush.msra.mxu0 %v1840
    %2381 = vmatpush.msra.mxu0 %v1836
    %2382 = vmatpush.msra.mxu0 %v1832
    %2383 = vmatmul.f32.gmra.mxu0 %v1667
    %v2384 = vpop.f32.mrf.mxu0
    %v2385 = vadd.f32 %v2243, %v2384
    %2386 = vdwg.mxu0
    %2387 = vmatpush.msra.mxu0 0.0
    %2388 = vmatpush.msra.mxu0 0.0
    %2389 = vmatpush.msra.mxu0 0.0
    %2390 = vmatpush.msra.mxu0 0.0
    %2391 = vmatpush.msra.mxu0 0.0
    %2392 = vmatpush.msra.mxu0 0.0
    %2393 = vmatpush.msra.mxu0 0.0
    %2394 = vmatpush.msra.mxu0 %v1928
    %2395 = vmatpush.msra.mxu0 %v1924
    %2396 = vmatpush.msra.mxu0 %v1920
    %2397 = vmatpush.msra.mxu0 %v1916
    %2398 = vmatpush.msra.mxu0 %v1912
    %2399 = vmatpush.msra.mxu0 %v1908
    %2400 = vmatpush.msra.mxu0 %v1904
    %2401 = vmatpush.msra.mxu0 %v1900
    %2402 = vmatpush.msra.mxu0 %v1896
    %2403 = vmatmul.f32.gmra.mxu0 %v2325
    %v2404 = vpop.f32.mrf.mxu0
    %v2405 = vadd.f32 %v2385, %v2404
    %2406 = vdwg.mxu0
    %2407 = vmatpush.msra.mxu0 %v1893
    %2408 = vmatpush.msra.mxu0 %v1889
    %2409 = vmatpush.msra.mxu0 %v1885
    %2410 = vmatpush.msra.mxu0 %v1881
    %2411 = vmatpush.msra.mxu0 %v1877
    %2412 = vmatpush.msra.mxu0 %v1873
    %2413 = vmatpush.msra.mxu0 %v1869
    %2414 = vmatpush.msra.mxu0 %v1865
    %2415 = vmatpush.msra.mxu0 %v1861
    %2416 = vmatpush.msra.mxu0 %v1857
    %2417 = vmatpush.msra.mxu0 %v1853
    %2418 = vmatpush.msra.mxu0 %v1849
    %2419 = vmatpush.msra.mxu0 %v1845
    %2420 = vmatpush.msra.mxu0 %v1841
    %2421 = vmatpush.msra.mxu0 %v1837
    %2422 = vmatpush.msra.mxu0 %v1833
    %2423 = vmatmul.f32.gmra.mxu0 %v1667
    %v2424 = vpop.f32.mrf.mxu0
    %v2425 = vadd.f32 %v2283, %v2424
    %2426 = vdwg.mxu0
    %2427 = vmatpush.msra.mxu0 0.0
    %2428 = vmatpush.msra.mxu0 0.0
    %2429 = vmatpush.msra.mxu0 0.0
    %2430 = vmatpush.msra.mxu0 0.0
    %2431 = vmatpush.msra.mxu0 0.0
    %2432 = vmatpush.msra.mxu0 0.0
    %2433 = vmatpush.msra.mxu0 0.0
    %2434 = vmatpush.msra.mxu0 %v1929
    %2435 = vmatpush.msra.mxu0 %v1925
    %2436 = vmatpush.msra.mxu0 %v1921
    %2437 = vmatpush.msra.mxu0 %v1917
    %2438 = vmatpush.msra.mxu0 %v1913
    %2439 = vmatpush.msra.mxu0 %v1909
    %2440 = vmatpush.msra.mxu0 %v1905
    %2441 = vmatpush.msra.mxu0 %v1901
    %2442 = vmatpush.msra.mxu0 %v1897
    %2443 = vmatmul.f32.gmra.mxu0 %v2325
    %v2444 = vpop.f32.mrf.mxu0
    %v2445 = vadd.f32 %v2425, %v2444
    %2446 = vdwg.mxu0
    %2447 = vmatpush.msra.mxu0 %v1894
    %2448 = vmatpush.msra.mxu0 %v1890
    %2449 = vmatpush.msra.mxu0 %v1886
    %2450 = vmatpush.msra.mxu0 %v1882
    %2451 = vmatpush.msra.mxu0 %v1878
    %2452 = vmatpush.msra.mxu0 %v1874
    %2453 = vmatpush.msra.mxu0 %v1870
    %2454 = vmatpush.msra.mxu0 %v1866
    %2455 = vmatpush.msra.mxu0 %v1862
    %2456 = vmatpush.msra.mxu0 %v1858
    %2457 = vmatpush.msra.mxu0 %v1854
    %2458 = vmatpush.msra.mxu0 %v1850
    %2459 = vmatpush.msra.mxu0 %v1846
    %2460 = vmatpush.msra.mxu0 %v1842
    %2461 = vmatpush.msra.mxu0 %v1838
    %2462 = vmatpush.msra.mxu0 %v1834
    %2463 = vmatmul.f32.gmra.mxu0 %v1667
    %v2464 = vpop.f32.mrf.mxu0
    %v2465 = vadd.f32 %v2323, %v2464
    %2466 = vdwg.mxu0
    %2467 = vmatpush.msra.mxu0 0.0
    %2468 = vmatpush.msra.mxu0 0.0
    %2469 = vmatpush.msra.mxu0 0.0
    %2470 = vmatpush.msra.mxu0 0.0
    %2471 = vmatpush.msra.mxu0 0.0
    %2472 = vmatpush.msra.mxu0 0.0
    %2473 = vmatpush.msra.mxu0 0.0
    %2474 = vmatpush.msra.mxu0 %v1930
    %2475 = vmatpush.msra.mxu0 %v1926
    %2476 = vmatpush.msra.mxu0 %v1922
    %2477 = vmatpush.msra.mxu0 %v1918
    %2478 = vmatpush.msra.mxu0 %v1914
    %2479 = vmatpush.msra.mxu0 %v1910
    %2480 = vmatpush.msra.mxu0 %v1906
    %2481 = vmatpush.msra.mxu0 %v1902
    %2482 = vmatpush.msra.mxu0 %v1898
    %2483 = vmatmul.f32.gmra.mxu0 %v2325
    %v2484 = vpop.f32.mrf.mxu0
    %v2485 = vadd.f32 %v2465, %v2484
    %2486 = vdwg.mxu0
    %s2487 = scalar_lea.vmem [#allocation2], 400
    %v2488 = vld [vmem:[%s2487] sm:$0xff]
    %v2489 = vld [vmem:[%s2487 + $0x8] sm:$0xff]
    %v2490 = vld [vmem:[%s2487 + $0x10] sm:$0xff]
    %v2491 = vld [vmem:[%s2487 + $0x18] sm:$0xff]
    %v2492 = vld [vmem:[%s2487 + $0x20] sm:$0xff]
    %v2493 = vld [vmem:[%s2487 + $0x28] sm:$0xff]
    %v2494 = vld [vmem:[%s2487 + $0x30] sm:$0xff]
    %v2495 = vld [vmem:[%s2487 + $0x38] sm:$0xff]
    %v2496 = vld [vmem:[%s2487 + $0x40] sm:$0xff]
    %v2497 = vld [vmem:[%s2487 + $0x48] sm:$0xff]
    %v2498 = vld [vmem:[%s2487 + $0x50] sm:$0xff]
    %v2499 = vld [vmem:[%s2487 + $0x58] sm:$0xff]
    %v2500 = vld [vmem:[%s2487 + $0x60] sm:$0xff]
    %v2501 = vld [vmem:[%s2487 + $0x68] sm:$0xff]
    %v2502 = vld [vmem:[%s2487 + $0x70] sm:$0xff]
    %v2503 = vld [vmem:[%s2487 + $0x78] sm:$0xff]
    %v2504 = vld [vmem:[%s2487 + $0x80] sm:$0xff]
    %v2505 = vld [vmem:[%s2487 + $0x88] sm:$0xff]
    %v2506 = vld [vmem:[%s2487 + $0x90] sm:$0xff]
    %v2507 = vld [vmem:[%s2487 + $0x98] sm:$0xff]
    %v2508 = vld [vmem:[%s2487 + $0xa0] sm:$0xff]
    %v2509 = vld [vmem:[%s2487 + $0xa8] sm:$0xff]
    %v2510 = vld [vmem:[%s2487 + $0xb0] sm:$0xff]
    %v2511 = vld [vmem:[%s2487 + $0xb8] sm:$0xff]
    %v2512 = vld [vmem:[%s2487 + $0xc0] sm:$0xff]
    %v2513 = vunpack.c.0.s8 %v2488
    %v2514 = vunpack.c.1.s8 %v2488
    %v2515 = vunpack.c.2.s8 %v2488
    %v2516 = vunpack.c.3.s8 %v2488
    %v2517 = vunpack.c.0.s8 %v2489
    %v2518 = vunpack.c.1.s8 %v2489
    %v2519 = vunpack.c.2.s8 %v2489
    %v2520 = vunpack.c.3.s8 %v2489
    %v2521 = vunpack.c.0.s8 %v2490
    %v2522 = vunpack.c.1.s8 %v2490
    %v2523 = vunpack.c.2.s8 %v2490
    %v2524 = vunpack.c.3.s8 %v2490
    %v2525 = vunpack.c.0.s8 %v2491
    %v2526 = vunpack.c.1.s8 %v2491
    %v2527 = vunpack.c.2.s8 %v2491
    %v2528 = vunpack.c.3.s8 %v2491
    %v2529 = vunpack.c.0.s8 %v2492
    %v2530 = vunpack.c.1.s8 %v2492
    %v2531 = vunpack.c.2.s8 %v2492
    %v2532 = vunpack.c.3.s8 %v2492
    %v2533 = vunpack.c.0.s8 %v2493
    %v2534 = vunpack.c.1.s8 %v2493
    %v2535 = vunpack.c.2.s8 %v2493
    %v2536 = vunpack.c.3.s8 %v2493
    %v2537 = vunpack.c.0.s8 %v2494
    %v2538 = vunpack.c.1.s8 %v2494
    %v2539 = vunpack.c.2.s8 %v2494
    %v2540 = vunpack.c.3.s8 %v2494
    %v2541 = vunpack.c.0.s8 %v2495
    %v2542 = vunpack.c.1.s8 %v2495
    %v2543 = vunpack.c.2.s8 %v2495
    %v2544 = vunpack.c.3.s8 %v2495
    %v2545 = vunpack.c.0.s8 %v2496
    %v2546 = vunpack.c.1.s8 %v2496
    %v2547 = vunpack.c.2.s8 %v2496
    %v2548 = vunpack.c.3.s8 %v2496
    %v2549 = vunpack.c.0.s8 %v2497
    %v2550 = vunpack.c.1.s8 %v2497
    %v2551 = vunpack.c.2.s8 %v2497
    %v2552 = vunpack.c.3.s8 %v2497
    %v2553 = vunpack.c.0.s8 %v2498
    %v2554 = vunpack.c.1.s8 %v2498
    %v2555 = vunpack.c.2.s8 %v2498
    %v2556 = vunpack.c.3.s8 %v2498
    %v2557 = vunpack.c.0.s8 %v2499
    %v2558 = vunpack.c.1.s8 %v2499
    %v2559 = vunpack.c.2.s8 %v2499
    %v2560 = vunpack.c.3.s8 %v2499
    %v2561 = vunpack.c.0.s8 %v2500
    %v2562 = vunpack.c.1.s8 %v2500
    %v2563 = vunpack.c.2.s8 %v2500
    %v2564 = vunpack.c.3.s8 %v2500
    %v2565 = vunpack.c.0.s8 %v2501
    %v2566 = vunpack.c.1.s8 %v2501
    %v2567 = vunpack.c.2.s8 %v2501
    %v2568 = vunpack.c.3.s8 %v2501
    %v2569 = vunpack.c.0.s8 %v2502
    %v2570 = vunpack.c.1.s8 %v2502
    %v2571 = vunpack.c.2.s8 %v2502
    %v2572 = vunpack.c.3.s8 %v2502
    %v2573 = vunpack.c.0.s8 %v2503
    %v2574 = vunpack.c.1.s8 %v2503
    %v2575 = vunpack.c.2.s8 %v2503
    %v2576 = vunpack.c.3.s8 %v2503
    %v2577 = vunpack.c.0.s8 %v2504
    %v2578 = vunpack.c.1.s8 %v2504
    %v2579 = vunpack.c.2.s8 %v2504
    %v2580 = vunpack.c.3.s8 %v2504
    %v2581 = vunpack.c.0.s8 %v2505
    %v2582 = vunpack.c.1.s8 %v2505
    %v2583 = vunpack.c.2.s8 %v2505
    %v2584 = vunpack.c.3.s8 %v2505
    %v2585 = vunpack.c.0.s8 %v2506
    %v2586 = vunpack.c.1.s8 %v2506
    %v2587 = vunpack.c.2.s8 %v2506
    %v2588 = vunpack.c.3.s8 %v2506
    %v2589 = vunpack.c.0.s8 %v2507
    %v2590 = vunpack.c.1.s8 %v2507
    %v2591 = vunpack.c.2.s8 %v2507
    %v2592 = vunpack.c.3.s8 %v2507
    %v2593 = vunpack.c.0.s8 %v2508
    %v2594 = vunpack.c.1.s8 %v2508
    %v2595 = vunpack.c.2.s8 %v2508
    %v2596 = vunpack.c.3.s8 %v2508
    %v2597 = vunpack.c.0.s8 %v2509
    %v2598 = vunpack.c.1.s8 %v2509
    %v2599 = vunpack.c.2.s8 %v2509
    %v2600 = vunpack.c.3.s8 %v2509
    %v2601 = vunpack.c.0.s8 %v2510
    %v2602 = vunpack.c.1.s8 %v2510
    %v2603 = vunpack.c.2.s8 %v2510
    %v2604 = vunpack.c.3.s8 %v2510
    %v2605 = vunpack.c.0.s8 %v2511
    %v2606 = vunpack.c.1.s8 %v2511
    %v2607 = vunpack.c.2.s8 %v2511
    %v2608 = vunpack.c.3.s8 %v2511
    %v2609 = vunpack.c.0.s8 %v2512
    %v2610 = vunpack.c.1.s8 %v2512
    %v2611 = vunpack.c.2.s8 %v2512
    %v2612 = vunpack.c.3.s8 %v2512
    %v2613 = vcvt.s32.f32 %v2513
    %v2614 = vcvt.s32.f32 %v2514
    %v2615 = vcvt.s32.f32 %v2515
    %v2616 = vcvt.s32.f32 %v2516
    %v2617 = vcvt.s32.f32 %v2517
    %v2618 = vcvt.s32.f32 %v2518
    %v2619 = vcvt.s32.f32 %v2519
    %v2620 = vcvt.s32.f32 %v2520
    %v2621 = vcvt.s32.f32 %v2521
    %v2622 = vcvt.s32.f32 %v2522
    %v2623 = vcvt.s32.f32 %v2523
    %v2624 = vcvt.s32.f32 %v2524
    %v2625 = vcvt.s32.f32 %v2525
    %v2626 = vcvt.s32.f32 %v2526
    %v2627 = vcvt.s32.f32 %v2527
    %v2628 = vcvt.s32.f32 %v2528
    %v2629 = vcvt.s32.f32 %v2529
    %v2630 = vcvt.s32.f32 %v2530
    %v2631 = vcvt.s32.f32 %v2531
    %v2632 = vcvt.s32.f32 %v2532
    %v2633 = vcvt.s32.f32 %v2533
    %v2634 = vcvt.s32.f32 %v2534
    %v2635 = vcvt.s32.f32 %v2535
    %v2636 = vcvt.s32.f32 %v2536
    %v2637 = vcvt.s32.f32 %v2537
    %v2638 = vcvt.s32.f32 %v2538
    %v2639 = vcvt.s32.f32 %v2539
    %v2640 = vcvt.s32.f32 %v2540
    %v2641 = vcvt.s32.f32 %v2541
    %v2642 = vcvt.s32.f32 %v2542
    %v2643 = vcvt.s32.f32 %v2543
    %v2644 = vcvt.s32.f32 %v2544
    %v2645 = vcvt.s32.f32 %v2545
    %v2646 = vcvt.s32.f32 %v2546
    %v2647 = vcvt.s32.f32 %v2547
    %v2648 = vcvt.s32.f32 %v2548
    %v2649 = vcvt.s32.f32 %v2549
    %v2650 = vcvt.s32.f32 %v2550
    %v2651 = vcvt.s32.f32 %v2551
    %v2652 = vcvt.s32.f32 %v2552
    %v2653 = vcvt.s32.f32 %v2553
    %v2654 = vcvt.s32.f32 %v2554
    %v2655 = vcvt.s32.f32 %v2555
    %v2656 = vcvt.s32.f32 %v2556
    %v2657 = vcvt.s32.f32 %v2557
    %v2658 = vcvt.s32.f32 %v2558
    %v2659 = vcvt.s32.f32 %v2559
    %v2660 = vcvt.s32.f32 %v2560
    %v2661 = vcvt.s32.f32 %v2561
    %v2662 = vcvt.s32.f32 %v2562
    %v2663 = vcvt.s32.f32 %v2563
    %v2664 = vcvt.s32.f32 %v2564
    %v2665 = vcvt.s32.f32 %v2565
    %v2666 = vcvt.s32.f32 %v2566
    %v2667 = vcvt.s32.f32 %v2567
    %v2668 = vcvt.s32.f32 %v2568
    %v2669 = vcvt.s32.f32 %v2569
    %v2670 = vcvt.s32.f32 %v2570
    %v2671 = vcvt.s32.f32 %v2571
    %v2672 = vcvt.s32.f32 %v2572
    %v2673 = vcvt.s32.f32 %v2573
    %v2674 = vcvt.s32.f32 %v2574
    %v2675 = vcvt.s32.f32 %v2575
    %v2676 = vcvt.s32.f32 %v2576
    %v2677 = vcvt.s32.f32 %v2577
    %v2678 = vcvt.s32.f32 %v2578
    %v2679 = vcvt.s32.f32 %v2579
    %v2680 = vcvt.s32.f32 %v2580
    %v2681 = vcvt.s32.f32 %v2581
    %v2682 = vcvt.s32.f32 %v2582
    %v2683 = vcvt.s32.f32 %v2583
    %v2684 = vcvt.s32.f32 %v2584
    %v2685 = vcvt.s32.f32 %v2585
    %v2686 = vcvt.s32.f32 %v2586
    %v2687 = vcvt.s32.f32 %v2587
    %v2688 = vcvt.s32.f32 %v2588
    %v2689 = vcvt.s32.f32 %v2589
    %v2690 = vcvt.s32.f32 %v2590
    %v2691 = vcvt.s32.f32 %v2591
    %v2692 = vcvt.s32.f32 %v2592
    %v2693 = vcvt.s32.f32 %v2593
    %v2694 = vcvt.s32.f32 %v2594
    %v2695 = vcvt.s32.f32 %v2595
    %v2696 = vcvt.s32.f32 %v2596
    %v2697 = vcvt.s32.f32 %v2597
    %v2698 = vcvt.s32.f32 %v2598
    %v2699 = vcvt.s32.f32 %v2599
    %v2700 = vcvt.s32.f32 %v2600
    %v2701 = vcvt.s32.f32 %v2601
    %v2702 = vcvt.s32.f32 %v2602
    %v2703 = vcvt.s32.f32 %v2603
    %v2704 = vcvt.s32.f32 %v2604
    %v2705 = vcvt.s32.f32 %v2605
    %v2706 = vcvt.s32.f32 %v2606
    %v2707 = vcvt.s32.f32 %v2607
    %v2708 = vcvt.s32.f32 %v2608
    %v2709 = vcvt.s32.f32 %v2609
    %v2710 = vcvt.s32.f32 %v2610
    %v2711 = vcvt.s32.f32 %v2611
    %v2712 = vcvt.s32.f32 %v2612
    %v2713 = vrot.slane %v1667, 4
    %v2714 = vrot.slane %v1693, 4
    %v2716 = vsel %vm2162, %v2714, 0
    %2718 = vmatpush.msra.mxu0 %v2673
    %2719 = vmatpush.msra.mxu0 %v2669
    %2720 = vmatpush.msra.mxu0 %v2665
    %2721 = vmatpush.msra.mxu0 %v2661
    %2722 = vmatpush.msra.mxu0 %v2657
    %2723 = vmatpush.msra.mxu0 %v2653
    %2724 = vmatpush.msra.mxu0 %v2649
    %2725 = vmatpush.msra.mxu0 %v2645
    %2726 = vmatpush.msra.mxu0 %v2641
    %2727 = vmatpush.msra.mxu0 %v2637
    %2728 = vmatpush.msra.mxu0 %v2633
    %2729 = vmatpush.msra.mxu0 %v2629
    %2730 = vmatpush.msra.mxu0 %v2625
    %2731 = vmatpush.msra.mxu0 %v2621
    %2732 = vmatpush.msra.mxu0 %v2617
    %2733 = vmatpush.msra.mxu0 %v2613
    %2734 = vmatmul.f32.gmra.mxu0 %v2713
    %v2735 = vpop.f32.mrf.mxu0
    %v2736 = vadd.f32 0.0, %v2735
    %2737 = vdwg.mxu0
    %2738 = vmatpush.msra.mxu0 0.0
    %2739 = vmatpush.msra.mxu0 0.0
    %2740 = vmatpush.msra.mxu0 0.0
    %2741 = vmatpush.msra.mxu0 0.0
    %2742 = vmatpush.msra.mxu0 0.0
    %2743 = vmatpush.msra.mxu0 0.0
    %2744 = vmatpush.msra.mxu0 0.0
    %2745 = vmatpush.msra.mxu0 %v2709
    %2746 = vmatpush.msra.mxu0 %v2705
    %2747 = vmatpush.msra.mxu0 %v2701
    %2748 = vmatpush.msra.mxu0 %v2697
    %2749 = vmatpush.msra.mxu0 %v2693
    %2750 = vmatpush.msra.mxu0 %v2689
    %2751 = vmatpush.msra.mxu0 %v2685
    %2752 = vmatpush.msra.mxu0 %v2681
    %2753 = vmatpush.msra.mxu0 %v2677
    %2754 = vmatmul.f32.gmra.mxu0 %v2716
    %v2755 = vpop.f32.mrf.mxu0
    %v2756 = vadd.f32 %v2736, %v2755
    %2757 = vdwg.mxu0
    %2758 = vmatpush.msra.mxu0 %v2674
    %2759 = vmatpush.msra.mxu0 %v2670
    %2760 = vmatpush.msra.mxu0 %v2666
    %2761 = vmatpush.msra.mxu0 %v2662
    %2762 = vmatpush.msra.mxu0 %v2658
    %2763 = vmatpush.msra.mxu0 %v2654
    %2764 = vmatpush.msra.mxu0 %v2650
    %2765 = vmatpush.msra.mxu0 %v2646
    %2766 = vmatpush.msra.mxu0 %v2642
    %2767 = vmatpush.msra.mxu0 %v2638
    %2768 = vmatpush.msra.mxu0 %v2634
    %2769 = vmatpush.msra.mxu0 %v2630
    %2770 = vmatpush.msra.mxu0 %v2626
    %2771 = vmatpush.msra.mxu0 %v2622
    %2772 = vmatpush.msra.mxu0 %v2618
    %2773 = vmatpush.msra.mxu0 %v2614
    %2774 = vmatmul.f32.gmra.mxu0 %v2713
    %v2775 = vpop.f32.mrf.mxu0
    %v2776 = vadd.f32 0.0, %v2775
    %2777 = vdwg.mxu0
    %2778 = vmatpush.msra.mxu0 0.0
    %2779 = vmatpush.msra.mxu0 0.0
    %2780 = vmatpush.msra.mxu0 0.0
    %2781 = vmatpush.msra.mxu0 0.0
    %2782 = vmatpush.msra.mxu0 0.0
    %2783 = vmatpush.msra.mxu0 0.0
    %2784 = vmatpush.msra.mxu0 0.0
    %2785 = vmatpush.msra.mxu0 %v2710
    %2786 = vmatpush.msra.mxu0 %v2706
    %2787 = vmatpush.msra.mxu0 %v2702
    %2788 = vmatpush.msra.mxu0 %v2698
    %2789 = vmatpush.msra.mxu0 %v2694
    %2790 = vmatpush.msra.mxu0 %v2690
    %2791 = vmatpush.msra.mxu0 %v2686
    %2792 = vmatpush.msra.mxu0 %v2682
    %2793 = vmatpush.msra.mxu0 %v2678
    %2794 = vmatmul.f32.gmra.mxu0 %v2716
    %v2795 = vpop.f32.mrf.mxu0
    %v2796 = vadd.f32 %v2776, %v2795
    %2797 = vdwg.mxu0
    %2798 = vmatpush.msra.mxu0 %v2675
    %2799 = vmatpush.msra.mxu0 %v2671
    %2800 = vmatpush.msra.mxu0 %v2667
    %2801 = vmatpush.msra.mxu0 %v2663
    %2802 = vmatpush.msra.mxu0 %v2659
    %2803 = vmatpush.msra.mxu0 %v2655
    %2804 = vmatpush.msra.mxu0 %v2651
    %2805 = vmatpush.msra.mxu0 %v2647
    %2806 = vmatpush.msra.mxu0 %v2643
    %2807 = vmatpush.msra.mxu0 %v2639
    %2808 = vmatpush.msra.mxu0 %v2635
    %2809 = vmatpush.msra.mxu0 %v2631
    %2810 = vmatpush.msra.mxu0 %v2627
    %2811 = vmatpush.msra.mxu0 %v2623
    %2812 = vmatpush.msra.mxu0 %v2619
    %2813 = vmatpush.msra.mxu0 %v2615
    %2814 = vmatmul.f32.gmra.mxu0 %v2713
    %v2815 = vpop.f32.mrf.mxu0
    %v2816 = vadd.f32 0.0, %v2815
    %2817 = vdwg.mxu0
    %2818 = vmatpush.msra.mxu0 0.0
    %2819 = vmatpush.msra.mxu0 0.0
    %2820 = vmatpush.msra.mxu0 0.0
    %2821 = vmatpush.msra.mxu0 0.0
    %2822 = vmatpush.msra.mxu0 0.0
    %2823 = vmatpush.msra.mxu0 0.0
    %2824 = vmatpush.msra.mxu0 0.0
    %2825 = vmatpush.msra.mxu0 %v2711
    %2826 = vmatpush.msra.mxu0 %v2707
    %2827 = vmatpush.msra.mxu0 %v2703
    %2828 = vmatpush.msra.mxu0 %v2699
    %2829 = vmatpush.msra.mxu0 %v2695
    %2830 = vmatpush.msra.mxu0 %v2691
    %2831 = vmatpush.msra.mxu0 %v2687
    %2832 = vmatpush.msra.mxu0 %v2683
    %2833 = vmatpush.msra.mxu0 %v2679
    %2834 = vmatmul.f32.gmra.mxu0 %v2716
    %v2835 = vpop.f32.mrf.mxu0
    %v2836 = vadd.f32 %v2816, %v2835
    %2837 = vdwg.mxu0
    %2838 = vmatpush.msra.mxu0 %v2676
    %2839 = vmatpush.msra.mxu0 %v2672
    %2840 = vmatpush.msra.mxu0 %v2668
    %2841 = vmatpush.msra.mxu0 %v2664
    %2842 = vmatpush.msra.mxu0 %v2660
    %2843 = vmatpush.msra.mxu0 %v2656
    %2844 = vmatpush.msra.mxu0 %v2652
    %2845 = vmatpush.msra.mxu0 %v2648
    %2846 = vmatpush.msra.mxu0 %v2644
    %2847 = vmatpush.msra.mxu0 %v2640
    %2848 = vmatpush.msra.mxu0 %v2636
    %2849 = vmatpush.msra.mxu0 %v2632
    %2850 = vmatpush.msra.mxu0 %v2628
    %2851 = vmatpush.msra.mxu0 %v2624
    %2852 = vmatpush.msra.mxu0 %v2620
    %2853 = vmatpush.msra.mxu0 %v2616
    %2854 = vmatmul.f32.gmra.mxu0 %v2713
    %v2855 = vpop.f32.mrf.mxu0
    %v2856 = vadd.f32 0.0, %v2855
    %2857 = vdwg.mxu0
    %2858 = vmatpush.msra.mxu0 0.0
    %2859 = vmatpush.msra.mxu0 0.0
    %2860 = vmatpush.msra.mxu0 0.0
    %2861 = vmatpush.msra.mxu0 0.0
    %2862 = vmatpush.msra.mxu0 0.0
    %2863 = vmatpush.msra.mxu0 0.0
    %2864 = vmatpush.msra.mxu0 0.0
    %2865 = vmatpush.msra.mxu0 %v2712
    %2866 = vmatpush.msra.mxu0 %v2708
    %2867 = vmatpush.msra.mxu0 %v2704
    %2868 = vmatpush.msra.mxu0 %v2700
    %2869 = vmatpush.msra.mxu0 %v2696
    %2870 = vmatpush.msra.mxu0 %v2692
    %2871 = vmatpush.msra.mxu0 %v2688
    %2872 = vmatpush.msra.mxu0 %v2684
    %2873 = vmatpush.msra.mxu0 %v2680
    %2874 = vmatmul.f32.gmra.mxu0 %v2716
    %v2875 = vpop.f32.mrf.mxu0
    %v2876 = vadd.f32 %v2856, %v2875
    %2877 = vdwg.mxu0
    %v2878 = vadd.f32 %v2365, %v2756
    %v2879 = vadd.f32 %v2405, %v2796
    %v2880 = vadd.f32 %v2445, %v2836
    %v2881 = vadd.f32 %v2485, %v2876
    %s2882 = scalar_lea.vmem [#allocation2], 600
    %v2883 = vld [vmem:[%s2882] sm:$0xff]
    %v2884 = vld [vmem:[%s2882 + $0x8] sm:$0xff]
    %v2885 = vld [vmem:[%s2882 + $0x10] sm:$0xff]
    %v2886 = vld [vmem:[%s2882 + $0x18] sm:$0xff]
    %v2887 = vld [vmem:[%s2882 + $0x20] sm:$0xff]
    %v2888 = vld [vmem:[%s2882 + $0x28] sm:$0xff]
    %v2889 = vld [vmem:[%s2882 + $0x30] sm:$0xff]
    %v2890 = vld [vmem:[%s2882 + $0x38] sm:$0xff]
    %v2891 = vld [vmem:[%s2882 + $0x40] sm:$0xff]
    %v2892 = vld [vmem:[%s2882 + $0x48] sm:$0xff]
    %v2893 = vld [vmem:[%s2882 + $0x50] sm:$0xff]
    %v2894 = vld [vmem:[%s2882 + $0x58] sm:$0xff]
    %v2895 = vld [vmem:[%s2882 + $0x60] sm:$0xff]
    %v2896 = vld [vmem:[%s2882 + $0x68] sm:$0xff]
    %v2897 = vld [vmem:[%s2882 + $0x70] sm:$0xff]
    %v2898 = vld [vmem:[%s2882 + $0x78] sm:$0xff]
    %v2899 = vld [vmem:[%s2882 + $0x80] sm:$0xff]
    %v2900 = vld [vmem:[%s2882 + $0x88] sm:$0xff]
    %v2901 = vld [vmem:[%s2882 + $0x90] sm:$0xff]
    %v2902 = vld [vmem:[%s2882 + $0x98] sm:$0xff]
    %v2903 = vld [vmem:[%s2882 + $0xa0] sm:$0xff]
    %v2904 = vld [vmem:[%s2882 + $0xa8] sm:$0xff]
    %v2905 = vld [vmem:[%s2882 + $0xb0] sm:$0xff]
    %v2906 = vld [vmem:[%s2882 + $0xb8] sm:$0xff]
    %v2907 = vld [vmem:[%s2882 + $0xc0] sm:$0xff]
    %v2908 = vunpack.c.0.s8 %v2883
    %v2909 = vunpack.c.1.s8 %v2883
    %v2910 = vunpack.c.2.s8 %v2883
    %v2911 = vunpack.c.3.s8 %v2883
    %v2912 = vunpack.c.0.s8 %v2884
    %v2913 = vunpack.c.1.s8 %v2884
    %v2914 = vunpack.c.2.s8 %v2884
    %v2915 = vunpack.c.3.s8 %v2884
    %v2916 = vunpack.c.0.s8 %v2885
    %v2917 = vunpack.c.1.s8 %v2885
    %v2918 = vunpack.c.2.s8 %v2885
    %v2919 = vunpack.c.3.s8 %v2885
    %v2920 = vunpack.c.0.s8 %v2886
    %v2921 = vunpack.c.1.s8 %v2886
    %v2922 = vunpack.c.2.s8 %v2886
    %v2923 = vunpack.c.3.s8 %v2886
    %v2924 = vunpack.c.0.s8 %v2887
    %v2925 = vunpack.c.1.s8 %v2887
    %v2926 = vunpack.c.2.s8 %v2887
    %v2927 = vunpack.c.3.s8 %v2887
    %v2928 = vunpack.c.0.s8 %v2888
    %v2929 = vunpack.c.1.s8 %v2888
    %v2930 = vunpack.c.2.s8 %v2888
    %v2931 = vunpack.c.3.s8 %v2888
    %v2932 = vunpack.c.0.s8 %v2889
    %v2933 = vunpack.c.1.s8 %v2889
    %v2934 = vunpack.c.2.s8 %v2889
    %v2935 = vunpack.c.3.s8 %v2889
    %v2936 = vunpack.c.0.s8 %v2890
    %v2937 = vunpack.c.1.s8 %v2890
    %v2938 = vunpack.c.2.s8 %v2890
    %v2939 = vunpack.c.3.s8 %v2890
    %v2940 = vunpack.c.0.s8 %v2891
    %v2941 = vunpack.c.1.s8 %v2891
    %v2942 = vunpack.c.2.s8 %v2891
    %v2943 = vunpack.c.3.s8 %v2891
    %v2944 = vunpack.c.0.s8 %v2892
    %v2945 = vunpack.c.1.s8 %v2892
    %v2946 = vunpack.c.2.s8 %v2892
    %v2947 = vunpack.c.3.s8 %v2892
    %v2948 = vunpack.c.0.s8 %v2893
    %v2949 = vunpack.c.1.s8 %v2893
    %v2950 = vunpack.c.2.s8 %v2893
    %v2951 = vunpack.c.3.s8 %v2893
    %v2952 = vunpack.c.0.s8 %v2894
    %v2953 = vunpack.c.1.s8 %v2894
    %v2954 = vunpack.c.2.s8 %v2894
    %v2955 = vunpack.c.3.s8 %v2894
    %v2956 = vunpack.c.0.s8 %v2895
    %v2957 = vunpack.c.1.s8 %v2895
    %v2958 = vunpack.c.2.s8 %v2895
    %v2959 = vunpack.c.3.s8 %v2895
    %v2960 = vunpack.c.0.s8 %v2896
    %v2961 = vunpack.c.1.s8 %v2896
    %v2962 = vunpack.c.2.s8 %v2896
    %v2963 = vunpack.c.3.s8 %v2896
    %v2964 = vunpack.c.0.s8 %v2897
    %v2965 = vunpack.c.1.s8 %v2897
    %v2966 = vunpack.c.2.s8 %v2897
    %v2967 = vunpack.c.3.s8 %v2897
    %v2968 = vunpack.c.0.s8 %v2898
    %v2969 = vunpack.c.1.s8 %v2898
    %v2970 = vunpack.c.2.s8 %v2898
    %v2971 = vunpack.c.3.s8 %v2898
    %v2972 = vunpack.c.0.s8 %v2899
    %v2973 = vunpack.c.1.s8 %v2899
    %v2974 = vunpack.c.2.s8 %v2899
    %v2975 = vunpack.c.3.s8 %v2899
    %v2976 = vunpack.c.0.s8 %v2900
    %v2977 = vunpack.c.1.s8 %v2900
    %v2978 = vunpack.c.2.s8 %v2900
    %v2979 = vunpack.c.3.s8 %v2900
    %v2980 = vunpack.c.0.s8 %v2901
    %v2981 = vunpack.c.1.s8 %v2901
    %v2982 = vunpack.c.2.s8 %v2901
    %v2983 = vunpack.c.3.s8 %v2901
    %v2984 = vunpack.c.0.s8 %v2902
    %v2985 = vunpack.c.1.s8 %v2902
    %v2986 = vunpack.c.2.s8 %v2902
    %v2987 = vunpack.c.3.s8 %v2902
    %v2988 = vunpack.c.0.s8 %v2903
    %v2989 = vunpack.c.1.s8 %v2903
    %v2990 = vunpack.c.2.s8 %v2903
    %v2991 = vunpack.c.3.s8 %v2903
    %v2992 = vunpack.c.0.s8 %v2904
    %v2993 = vunpack.c.1.s8 %v2904
    %v2994 = vunpack.c.2.s8 %v2904
    %v2995 = vunpack.c.3.s8 %v2904
    %v2996 = vunpack.c.0.s8 %v2905
    %v2997 = vunpack.c.1.s8 %v2905
    %v2998 = vunpack.c.2.s8 %v2905
    %v2999 = vunpack.c.3.s8 %v2905
    %v3000 = vunpack.c.0.s8 %v2906
    %v3001 = vunpack.c.1.s8 %v2906
    %v3002 = vunpack.c.2.s8 %v2906
    %v3003 = vunpack.c.3.s8 %v2906
    %v3004 = vunpack.c.0.s8 %v2907
    %v3005 = vunpack.c.1.s8 %v2907
    %v3006 = vunpack.c.2.s8 %v2907
    %v3007 = vunpack.c.3.s8 %v2907
    %v3008 = vcvt.s32.f32 %v2908
    %v3009 = vcvt.s32.f32 %v2909
    %v3010 = vcvt.s32.f32 %v2910
    %v3011 = vcvt.s32.f32 %v2911
    %v3012 = vcvt.s32.f32 %v2912
    %v3013 = vcvt.s32.f32 %v2913
    %v3014 = vcvt.s32.f32 %v2914
    %v3015 = vcvt.s32.f32 %v2915
    %v3016 = vcvt.s32.f32 %v2916
    %v3017 = vcvt.s32.f32 %v2917
    %v3018 = vcvt.s32.f32 %v2918
    %v3019 = vcvt.s32.f32 %v2919
    %v3020 = vcvt.s32.f32 %v2920
    %v3021 = vcvt.s32.f32 %v2921
    %v3022 = vcvt.s32.f32 %v2922
    %v3023 = vcvt.s32.f32 %v2923
    %v3024 = vcvt.s32.f32 %v2924
    %v3025 = vcvt.s32.f32 %v2925
    %v3026 = vcvt.s32.f32 %v2926
    %v3027 = vcvt.s32.f32 %v2927
    %v3028 = vcvt.s32.f32 %v2928
    %v3029 = vcvt.s32.f32 %v2929
    %v3030 = vcvt.s32.f32 %v2930
    %v3031 = vcvt.s32.f32 %v2931
    %v3032 = vcvt.s32.f32 %v2932
    %v3033 = vcvt.s32.f32 %v2933
    %v3034 = vcvt.s32.f32 %v2934
    %v3035 = vcvt.s32.f32 %v2935
    %v3036 = vcvt.s32.f32 %v2936
    %v3037 = vcvt.s32.f32 %v2937
    %v3038 = vcvt.s32.f32 %v2938
    %v3039 = vcvt.s32.f32 %v2939
    %v3040 = vcvt.s32.f32 %v2940
    %v3041 = vcvt.s32.f32 %v2941
    %v3042 = vcvt.s32.f32 %v2942
    %v3043 = vcvt.s32.f32 %v2943
    %v3044 = vcvt.s32.f32 %v2944
    %v3045 = vcvt.s32.f32 %v2945
    %v3046 = vcvt.s32.f32 %v2946
    %v3047 = vcvt.s32.f32 %v2947
    %v3048 = vcvt.s32.f32 %v2948
    %v3049 = vcvt.s32.f32 %v2949
    %v3050 = vcvt.s32.f32 %v2950
    %v3051 = vcvt.s32.f32 %v2951
    %v3052 = vcvt.s32.f32 %v2952
    %v3053 = vcvt.s32.f32 %v2953
    %v3054 = vcvt.s32.f32 %v2954
    %v3055 = vcvt.s32.f32 %v2955
    %v3056 = vcvt.s32.f32 %v2956
    %v3057 = vcvt.s32.f32 %v2957
    %v3058 = vcvt.s32.f32 %v2958
    %v3059 = vcvt.s32.f32 %v2959
    %v3060 = vcvt.s32.f32 %v2960
    %v3061 = vcvt.s32.f32 %v2961
    %v3062 = vcvt.s32.f32 %v2962
    %v3063 = vcvt.s32.f32 %v2963
    %v3064 = vcvt.s32.f32 %v2964
    %v3065 = vcvt.s32.f32 %v2965
    %v3066 = vcvt.s32.f32 %v2966
    %v3067 = vcvt.s32.f32 %v2967
    %v3068 = vcvt.s32.f32 %v2968
    %v3069 = vcvt.s32.f32 %v2969
    %v3070 = vcvt.s32.f32 %v2970
    %v3071 = vcvt.s32.f32 %v2971
    %v3072 = vcvt.s32.f32 %v2972
    %v3073 = vcvt.s32.f32 %v2973
    %v3074 = vcvt.s32.f32 %v2974
    %v3075 = vcvt.s32.f32 %v2975
    %v3076 = vcvt.s32.f32 %v2976
    %v3077 = vcvt.s32.f32 %v2977
    %v3078 = vcvt.s32.f32 %v2978
    %v3079 = vcvt.s32.f32 %v2979
    %v3080 = vcvt.s32.f32 %v2980
    %v3081 = vcvt.s32.f32 %v2981
    %v3082 = vcvt.s32.f32 %v2982
    %v3083 = vcvt.s32.f32 %v2983
    %v3084 = vcvt.s32.f32 %v2984
    %v3085 = vcvt.s32.f32 %v2985
    %v3086 = vcvt.s32.f32 %v2986
    %v3087 = vcvt.s32.f32 %v2987
    %v3088 = vcvt.s32.f32 %v2988
    %v3089 = vcvt.s32.f32 %v2989
    %v3090 = vcvt.s32.f32 %v2990
    %v3091 = vcvt.s32.f32 %v2991
    %v3092 = vcvt.s32.f32 %v2992
    %v3093 = vcvt.s32.f32 %v2993
    %v3094 = vcvt.s32.f32 %v2994
    %v3095 = vcvt.s32.f32 %v2995
    %v3096 = vcvt.s32.f32 %v2996
    %v3097 = vcvt.s32.f32 %v2997
    %v3098 = vcvt.s32.f32 %v2998
    %v3099 = vcvt.s32.f32 %v2999
    %v3100 = vcvt.s32.f32 %v3000
    %v3101 = vcvt.s32.f32 %v3001
    %v3102 = vcvt.s32.f32 %v3002
    %v3103 = vcvt.s32.f32 %v3003
    %v3104 = vcvt.s32.f32 %v3004
    %v3105 = vcvt.s32.f32 %v3005
    %v3106 = vcvt.s32.f32 %v3006
    %v3107 = vcvt.s32.f32 %v3007
    %v3108 = vrot.slane %v1667, 6
    %v3109 = vrot.slane %v1693, 6
    %v3111 = vsel %vm2162, %v3109, 0
    %3113 = vmatpush.msra.mxu0 %v3068
    %3114 = vmatpush.msra.mxu0 %v3064
    %3115 = vmatpush.msra.mxu0 %v3060
    %3116 = vmatpush.msra.mxu0 %v3056
    %3117 = vmatpush.msra.mxu0 %v3052
    %3118 = vmatpush.msra.mxu0 %v3048
    %3119 = vmatpush.msra.mxu0 %v3044
    %3120 = vmatpush.msra.mxu0 %v3040
    %3121 = vmatpush.msra.mxu0 %v3036
    %3122 = vmatpush.msra.mxu0 %v3032
    %3123 = vmatpush.msra.mxu0 %v3028
    %3124 = vmatpush.msra.mxu0 %v3024
    %3125 = vmatpush.msra.mxu0 %v3020
    %3126 = vmatpush.msra.mxu0 %v3016
    %3127 = vmatpush.msra.mxu0 %v3012
    %3128 = vmatpush.msra.mxu0 %v3008
    %3129 = vmatmul.f32.gmra.mxu0 %v3108
    %v3130 = vpop.f32.mrf.mxu0
    %v3131 = vadd.f32 0.0, %v3130
    %3132 = vdwg.mxu0
    %3133 = vmatpush.msra.mxu0 0.0
    %3134 = vmatpush.msra.mxu0 0.0
    %3135 = vmatpush.msra.mxu0 0.0
    %3136 = vmatpush.msra.mxu0 0.0
    %3137 = vmatpush.msra.mxu0 0.0
    %3138 = vmatpush.msra.mxu0 0.0
    %3139 = vmatpush.msra.mxu0 0.0
    %3140 = vmatpush.msra.mxu0 %v3104
    %3141 = vmatpush.msra.mxu0 %v3100
    %3142 = vmatpush.msra.mxu0 %v3096
    %3143 = vmatpush.msra.mxu0 %v3092
    %3144 = vmatpush.msra.mxu0 %v3088
    %3145 = vmatpush.msra.mxu0 %v3084
    %3146 = vmatpush.msra.mxu0 %v3080
    %3147 = vmatpush.msra.mxu0 %v3076
    %3148 = vmatpush.msra.mxu0 %v3072
    %3149 = vmatmul.f32.gmra.mxu0 %v3111
    %v3150 = vpop.f32.mrf.mxu0
    %v3151 = vadd.f32 %v3131, %v3150
    %3152 = vdwg.mxu0
    %3153 = vmatpush.msra.mxu0 %v3069
    %3154 = vmatpush.msra.mxu0 %v3065
    %3155 = vmatpush.msra.mxu0 %v3061
    %3156 = vmatpush.msra.mxu0 %v3057
    %3157 = vmatpush.msra.mxu0 %v3053
    %3158 = vmatpush.msra.mxu0 %v3049
    %3159 = vmatpush.msra.mxu0 %v3045
    %3160 = vmatpush.msra.mxu0 %v3041
    %3161 = vmatpush.msra.mxu0 %v3037
    %3162 = vmatpush.msra.mxu0 %v3033
    %3163 = vmatpush.msra.mxu0 %v3029
    %3164 = vmatpush.msra.mxu0 %v3025
    %3165 = vmatpush.msra.mxu0 %v3021
    %3166 = vmatpush.msra.mxu0 %v3017
    %3167 = vmatpush.msra.mxu0 %v3013
    %3168 = vmatpush.msra.mxu0 %v3009
    %3169 = vmatmul.f32.gmra.mxu0 %v3108
    %v3170 = vpop.f32.mrf.mxu0
    %v3171 = vadd.f32 0.0, %v3170
    %3172 = vdwg.mxu0
    %3173 = vmatpush.msra.mxu0 0.0
    %3174 = vmatpush.msra.mxu0 0.0
    %3175 = vmatpush.msra.mxu0 0.0
    %3176 = vmatpush.msra.mxu0 0.0
    %3177 = vmatpush.msra.mxu0 0.0
    %3178 = vmatpush.msra.mxu0 0.0
    %3179 = vmatpush.msra.mxu0 0.0
    %3180 = vmatpush.msra.mxu0 %v3105
    %3181 = vmatpush.msra.mxu0 %v3101
    %3182 = vmatpush.msra.mxu0 %v3097
    %3183 = vmatpush.msra.mxu0 %v3093
    %3184 = vmatpush.msra.mxu0 %v3089
    %3185 = vmatpush.msra.mxu0 %v3085
    %3186 = vmatpush.msra.mxu0 %v3081
    %3187 = vmatpush.msra.mxu0 %v3077
    %3188 = vmatpush.msra.mxu0 %v3073
    %3189 = vmatmul.f32.gmra.mxu0 %v3111
    %v3190 = vpop.f32.mrf.mxu0
    %v3191 = vadd.f32 %v3171, %v3190
    %3192 = vdwg.mxu0
    %3193 = vmatpush.msra.mxu0 %v3070
    %3194 = vmatpush.msra.mxu0 %v3066
    %3195 = vmatpush.msra.mxu0 %v3062
    %3196 = vmatpush.msra.mxu0 %v3058
    %3197 = vmatpush.msra.mxu0 %v3054
    %3198 = vmatpush.msra.mxu0 %v3050
    %3199 = vmatpush.msra.mxu0 %v3046
    %3200 = vmatpush.msra.mxu0 %v3042
    %3201 = vmatpush.msra.mxu0 %v3038
    %3202 = vmatpush.msra.mxu0 %v3034
    %3203 = vmatpush.msra.mxu0 %v3030
    %3204 = vmatpush.msra.mxu0 %v3026
    %3205 = vmatpush.msra.mxu0 %v3022
    %3206 = vmatpush.msra.mxu0 %v3018
    %3207 = vmatpush.msra.mxu0 %v3014
    %3208 = vmatpush.msra.mxu0 %v3010
    %3209 = vmatmul.f32.gmra.mxu0 %v3108
    %v3210 = vpop.f32.mrf.mxu0
    %v3211 = vadd.f32 0.0, %v3210
    %3212 = vdwg.mxu0
    %3213 = vmatpush.msra.mxu0 0.0
    %3214 = vmatpush.msra.mxu0 0.0
    %3215 = vmatpush.msra.mxu0 0.0
    %3216 = vmatpush.msra.mxu0 0.0
    %3217 = vmatpush.msra.mxu0 0.0
    %3218 = vmatpush.msra.mxu0 0.0
    %3219 = vmatpush.msra.mxu0 0.0
    %3220 = vmatpush.msra.mxu0 %v3106
    %3221 = vmatpush.msra.mxu0 %v3102
    %3222 = vmatpush.msra.mxu0 %v3098
    %3223 = vmatpush.msra.mxu0 %v3094
    %3224 = vmatpush.msra.mxu0 %v3090
    %3225 = vmatpush.msra.mxu0 %v3086
    %3226 = vmatpush.msra.mxu0 %v3082
    %3227 = vmatpush.msra.mxu0 %v3078
    %3228 = vmatpush.msra.mxu0 %v3074
    %3229 = vmatmul.f32.gmra.mxu0 %v3111
    %v3230 = vpop.f32.mrf.mxu0
    %v3231 = vadd.f32 %v3211, %v3230
    %3232 = vdwg.mxu0
    %3233 = vmatpush.msra.mxu0 %v3071
    %3234 = vmatpush.msra.mxu0 %v3067
    %3235 = vmatpush.msra.mxu0 %v3063
    %3236 = vmatpush.msra.mxu0 %v3059
    %3237 = vmatpush.msra.mxu0 %v3055
    %3238 = vmatpush.msra.mxu0 %v3051
    %3239 = vmatpush.msra.mxu0 %v3047
    %3240 = vmatpush.msra.mxu0 %v3043
    %3241 = vmatpush.msra.mxu0 %v3039
    %3242 = vmatpush.msra.mxu0 %v3035
    %3243 = vmatpush.msra.mxu0 %v3031
    %3244 = vmatpush.msra.mxu0 %v3027
    %3245 = vmatpush.msra.mxu0 %v3023
    %3246 = vmatpush.msra.mxu0 %v3019
    %3247 = vmatpush.msra.mxu0 %v3015
    %3248 = vmatpush.msra.mxu0 %v3011
    %3249 = vmatmul.f32.gmra.mxu0 %v3108
    %v3250 = vpop.f32.mrf.mxu0
    %v3251 = vadd.f32 0.0, %v3250
    %3252 = vdwg.mxu0
    %3253 = vmatpush.msra.mxu0 0.0
    %3254 = vmatpush.msra.mxu0 0.0
    %3255 = vmatpush.msra.mxu0 0.0
    %3256 = vmatpush.msra.mxu0 0.0
    %3257 = vmatpush.msra.mxu0 0.0
    %3258 = vmatpush.msra.mxu0 0.0
    %3259 = vmatpush.msra.mxu0 0.0
    %3260 = vmatpush.msra.mxu0 %v3107
    %3261 = vmatpush.msra.mxu0 %v3103
    %3262 = vmatpush.msra.mxu0 %v3099
    %3263 = vmatpush.msra.mxu0 %v3095
    %3264 = vmatpush.msra.mxu0 %v3091
    %3265 = vmatpush.msra.mxu0 %v3087
    %3266 = vmatpush.msra.mxu0 %v3083
    %3267 = vmatpush.msra.mxu0 %v3079
    %3268 = vmatpush.msra.mxu0 %v3075
    %3269 = vmatmul.f32.gmra.mxu0 %v3111
    %v3270 = vpop.f32.mrf.mxu0
    %v3271 = vadd.f32 %v3251, %v3270
    %3272 = vdwg.mxu0
    %v3273 = vadd.f32 %v2878, %v3151
    %v3274 = vadd.f32 %v2879, %v3191
    %v3275 = vadd.f32 %v2880, %v3231
    %v3276 = vadd.f32 %v2881, %v3271
    %s3277 = scalar_lea.vmem [#allocation2], 800
    %v3278 = vld [vmem:[%s3277] sm:$0xff]
    %v3279 = vld [vmem:[%s3277 + $0x8] sm:$0xff]
    %v3280 = vld [vmem:[%s3277 + $0x10] sm:$0xff]
    %v3281 = vld [vmem:[%s3277 + $0x18] sm:$0xff]
    %v3282 = vld [vmem:[%s3277 + $0x20] sm:$0xff]
    %v3283 = vld [vmem:[%s3277 + $0x28] sm:$0xff]
    %v3284 = vld [vmem:[%s3277 + $0x30] sm:$0xff]
    %v3285 = vld [vmem:[%s3277 + $0x38] sm:$0xff]
    %v3286 = vld [vmem:[%s3277 + $0x40] sm:$0xff]
    %v3287 = vld [vmem:[%s3277 + $0x48] sm:$0xff]
    %v3288 = vld [vmem:[%s3277 + $0x50] sm:$0xff]
    %v3289 = vld [vmem:[%s3277 + $0x58] sm:$0xff]
    %v3290 = vld [vmem:[%s3277 + $0x60] sm:$0xff]
    %v3291 = vld [vmem:[%s3277 + $0x68] sm:$0xff]
    %v3292 = vld [vmem:[%s3277 + $0x70] sm:$0xff]
    %v3293 = vld [vmem:[%s3277 + $0x78] sm:$0xff]
    %v3294 = vld [vmem:[%s3277 + $0x80] sm:$0xff]
    %v3295 = vld [vmem:[%s3277 + $0x88] sm:$0xff]
    %v3296 = vld [vmem:[%s3277 + $0x90] sm:$0xff]
    %v3297 = vld [vmem:[%s3277 + $0x98] sm:$0xff]
    %v3298 = vld [vmem:[%s3277 + $0xa0] sm:$0xff]
    %v3299 = vld [vmem:[%s3277 + $0xa8] sm:$0xff]
    %v3300 = vld [vmem:[%s3277 + $0xb0] sm:$0xff]
    %v3301 = vld [vmem:[%s3277 + $0xb8] sm:$0xff]
    %v3302 = vld [vmem:[%s3277 + $0xc0] sm:$0xff]
    %v3303 = vunpack.c.0.s8 %v3278
    %v3304 = vunpack.c.1.s8 %v3278
    %v3305 = vunpack.c.2.s8 %v3278
    %v3306 = vunpack.c.3.s8 %v3278
    %v3307 = vunpack.c.0.s8 %v3279
    %v3308 = vunpack.c.1.s8 %v3279
    %v3309 = vunpack.c.2.s8 %v3279
    %v3310 = vunpack.c.3.s8 %v3279
    %v3311 = vunpack.c.0.s8 %v3280
    %v3312 = vunpack.c.1.s8 %v3280
    %v3313 = vunpack.c.2.s8 %v3280
    %v3314 = vunpack.c.3.s8 %v3280
    %v3315 = vunpack.c.0.s8 %v3281
    %v3316 = vunpack.c.1.s8 %v3281
    %v3317 = vunpack.c.2.s8 %v3281
    %v3318 = vunpack.c.3.s8 %v3281
    %v3319 = vunpack.c.0.s8 %v3282
    %v3320 = vunpack.c.1.s8 %v3282
    %v3321 = vunpack.c.2.s8 %v3282
    %v3322 = vunpack.c.3.s8 %v3282
    %v3323 = vunpack.c.0.s8 %v3283
    %v3324 = vunpack.c.1.s8 %v3283
    %v3325 = vunpack.c.2.s8 %v3283
    %v3326 = vunpack.c.3.s8 %v3283
    %v3327 = vunpack.c.0.s8 %v3284
    %v3328 = vunpack.c.1.s8 %v3284
    %v3329 = vunpack.c.2.s8 %v3284
    %v3330 = vunpack.c.3.s8 %v3284
    %v3331 = vunpack.c.0.s8 %v3285
    %v3332 = vunpack.c.1.s8 %v3285
    %v3333 = vunpack.c.2.s8 %v3285
    %v3334 = vunpack.c.3.s8 %v3285
    %v3335 = vunpack.c.0.s8 %v3286
    %v3336 = vunpack.c.1.s8 %v3286
    %v3337 = vunpack.c.2.s8 %v3286
    %v3338 = vunpack.c.3.s8 %v3286
    %v3339 = vunpack.c.0.s8 %v3287
    %v3340 = vunpack.c.1.s8 %v3287
    %v3341 = vunpack.c.2.s8 %v3287
    %v3342 = vunpack.c.3.s8 %v3287
    %v3343 = vunpack.c.0.s8 %v3288
    %v3344 = vunpack.c.1.s8 %v3288
    %v3345 = vunpack.c.2.s8 %v3288
    %v3346 = vunpack.c.3.s8 %v3288
    %v3347 = vunpack.c.0.s8 %v3289
    %v3348 = vunpack.c.1.s8 %v3289
    %v3349 = vunpack.c.2.s8 %v3289
    %v3350 = vunpack.c.3.s8 %v3289
    %v3351 = vunpack.c.0.s8 %v3290
    %v3352 = vunpack.c.1.s8 %v3290
    %v3353 = vunpack.c.2.s8 %v3290
    %v3354 = vunpack.c.3.s8 %v3290
    %v3355 = vunpack.c.0.s8 %v3291
    %v3356 = vunpack.c.1.s8 %v3291
    %v3357 = vunpack.c.2.s8 %v3291
    %v3358 = vunpack.c.3.s8 %v3291
    %v3359 = vunpack.c.0.s8 %v3292
    %v3360 = vunpack.c.1.s8 %v3292
    %v3361 = vunpack.c.2.s8 %v3292
    %v3362 = vunpack.c.3.s8 %v3292
    %v3363 = vunpack.c.0.s8 %v3293
    %v3364 = vunpack.c.1.s8 %v3293
    %v3365 = vunpack.c.2.s8 %v3293
    %v3366 = vunpack.c.3.s8 %v3293
    %v3367 = vunpack.c.0.s8 %v3294
    %v3368 = vunpack.c.1.s8 %v3294
    %v3369 = vunpack.c.2.s8 %v3294
    %v3370 = vunpack.c.3.s8 %v3294
    %v3371 = vunpack.c.0.s8 %v3295
    %v3372 = vunpack.c.1.s8 %v3295
    %v3373 = vunpack.c.2.s8 %v3295
    %v3374 = vunpack.c.3.s8 %v3295
    %v3375 = vunpack.c.0.s8 %v3296
    %v3376 = vunpack.c.1.s8 %v3296
    %v3377 = vunpack.c.2.s8 %v3296
    %v3378 = vunpack.c.3.s8 %v3296
    %v3379 = vunpack.c.0.s8 %v3297
    %v3380 = vunpack.c.1.s8 %v3297
    %v3381 = vunpack.c.2.s8 %v3297
    %v3382 = vunpack.c.3.s8 %v3297
    %v3383 = vunpack.c.0.s8 %v3298
    %v3384 = vunpack.c.1.s8 %v3298
    %v3385 = vunpack.c.2.s8 %v3298
    %v3386 = vunpack.c.3.s8 %v3298
    %v3387 = vunpack.c.0.s8 %v3299
    %v3388 = vunpack.c.1.s8 %v3299
    %v3389 = vunpack.c.2.s8 %v3299
    %v3390 = vunpack.c.3.s8 %v3299
    %v3391 = vunpack.c.0.s8 %v3300
    %v3392 = vunpack.c.1.s8 %v3300
    %v3393 = vunpack.c.2.s8 %v3300
    %v3394 = vunpack.c.3.s8 %v3300
    %v3395 = vunpack.c.0.s8 %v3301
    %v3396 = vunpack.c.1.s8 %v3301
    %v3397 = vunpack.c.2.s8 %v3301
    %v3398 = vunpack.c.3.s8 %v3301
    %v3399 = vunpack.c.0.s8 %v3302
    %v3400 = vunpack.c.1.s8 %v3302
    %v3401 = vunpack.c.2.s8 %v3302
    %v3402 = vunpack.c.3.s8 %v3302
    %v3403 = vcvt.s32.f32 %v3303
    %v3404 = vcvt.s32.f32 %v3304
    %v3405 = vcvt.s32.f32 %v3305
    %v3406 = vcvt.s32.f32 %v3306
    %v3407 = vcvt.s32.f32 %v3307
    %v3408 = vcvt.s32.f32 %v3308
    %v3409 = vcvt.s32.f32 %v3309
    %v3410 = vcvt.s32.f32 %v3310
    %v3411 = vcvt.s32.f32 %v3311
    %v3412 = vcvt.s32.f32 %v3312
    %v3413 = vcvt.s32.f32 %v3313
    %v3414 = vcvt.s32.f32 %v3314
    %v3415 = vcvt.s32.f32 %v3315
    %v3416 = vcvt.s32.f32 %v3316
    %v3417 = vcvt.s32.f32 %v3317
    %v3418 = vcvt.s32.f32 %v3318
    %v3419 = vcvt.s32.f32 %v3319
    %v3420 = vcvt.s32.f32 %v3320
    %v3421 = vcvt.s32.f32 %v3321
    %v3422 = vcvt.s32.f32 %v3322
    %v3423 = vcvt.s32.f32 %v3323
    %v3424 = vcvt.s32.f32 %v3324
    %v3425 = vcvt.s32.f32 %v3325
    %v3426 = vcvt.s32.f32 %v3326
    %v3427 = vcvt.s32.f32 %v3327
    %v3428 = vcvt.s32.f32 %v3328
    %v3429 = vcvt.s32.f32 %v3329
    %v3430 = vcvt.s32.f32 %v3330
    %v3431 = vcvt.s32.f32 %v3331
    %v3432 = vcvt.s32.f32 %v3332
    %v3433 = vcvt.s32.f32 %v3333
    %v3434 = vcvt.s32.f32 %v3334
    %v3435 = vcvt.s32.f32 %v3335
    %v3436 = vcvt.s32.f32 %v3336
    %v3437 = vcvt.s32.f32 %v3337
    %v3438 = vcvt.s32.f32 %v3338
    %v3439 = vcvt.s32.f32 %v3339
    %v3440 = vcvt.s32.f32 %v3340
    %v3441 = vcvt.s32.f32 %v3341
    %v3442 = vcvt.s32.f32 %v3342
    %v3443 = vcvt.s32.f32 %v3343
    %v3444 = vcvt.s32.f32 %v3344
    %v3445 = vcvt.s32.f32 %v3345
    %v3446 = vcvt.s32.f32 %v3346
    %v3447 = vcvt.s32.f32 %v3347
    %v3448 = vcvt.s32.f32 %v3348
    %v3449 = vcvt.s32.f32 %v3349
    %v3450 = vcvt.s32.f32 %v3350
    %v3451 = vcvt.s32.f32 %v3351
    %v3452 = vcvt.s32.f32 %v3352
    %v3453 = vcvt.s32.f32 %v3353
    %v3454 = vcvt.s32.f32 %v3354
    %v3455 = vcvt.s32.f32 %v3355
    %v3456 = vcvt.s32.f32 %v3356
    %v3457 = vcvt.s32.f32 %v3357
    %v3458 = vcvt.s32.f32 %v3358
    %v3459 = vcvt.s32.f32 %v3359
    %v3460 = vcvt.s32.f32 %v3360
    %v3461 = vcvt.s32.f32 %v3361
    %v3462 = vcvt.s32.f32 %v3362
    %v3463 = vcvt.s32.f32 %v3363
    %v3464 = vcvt.s32.f32 %v3364
    %v3465 = vcvt.s32.f32 %v3365
    %v3466 = vcvt.s32.f32 %v3366
    %v3467 = vcvt.s32.f32 %v3367
    %v3468 = vcvt.s32.f32 %v3368
    %v3469 = vcvt.s32.f32 %v3369
    %v3470 = vcvt.s32.f32 %v3370
    %v3471 = vcvt.s32.f32 %v3371
    %v3472 = vcvt.s32.f32 %v3372
    %v3473 = vcvt.s32.f32 %v3373
    %v3474 = vcvt.s32.f32 %v3374
    %v3475 = vcvt.s32.f32 %v3375
    %v3476 = vcvt.s32.f32 %v3376
    %v3477 = vcvt.s32.f32 %v3377
    %v3478 = vcvt.s32.f32 %v3378
    %v3479 = vcvt.s32.f32 %v3379
    %v3480 = vcvt.s32.f32 %v3380
    %v3481 = vcvt.s32.f32 %v3381
    %v3482 = vcvt.s32.f32 %v3382
    %v3483 = vcvt.s32.f32 %v3383
    %v3484 = vcvt.s32.f32 %v3384
    %v3485 = vcvt.s32.f32 %v3385
    %v3486 = vcvt.s32.f32 %v3386
    %v3487 = vcvt.s32.f32 %v3387
    %v3488 = vcvt.s32.f32 %v3388
    %v3489 = vcvt.s32.f32 %v3389
    %v3490 = vcvt.s32.f32 %v3390
    %v3491 = vcvt.s32.f32 %v3391
    %v3492 = vcvt.s32.f32 %v3392
    %v3493 = vcvt.s32.f32 %v3393
    %v3494 = vcvt.s32.f32 %v3394
    %v3495 = vcvt.s32.f32 %v3395
    %v3496 = vcvt.s32.f32 %v3396
    %v3497 = vcvt.s32.f32 %v3397
    %v3498 = vcvt.s32.f32 %v3398
    %v3499 = vcvt.s32.f32 %v3399
    %v3500 = vcvt.s32.f32 %v3400
    %v3501 = vcvt.s32.f32 %v3401
    %v3502 = vcvt.s32.f32 %v3402
    %v3504 = vsel %vm2162, %v1696, 0
    %3506 = vmatpush.msra.mxu0 %v3463
    %3507 = vmatpush.msra.mxu0 %v3459
    %3508 = vmatpush.msra.mxu0 %v3455
    %3509 = vmatpush.msra.mxu0 %v3451
    %3510 = vmatpush.msra.mxu0 %v3447
    %3511 = vmatpush.msra.mxu0 %v3443
    %3512 = vmatpush.msra.mxu0 %v3439
    %3513 = vmatpush.msra.mxu0 %v3435
    %3514 = vmatpush.msra.mxu0 %v3431
    %3515 = vmatpush.msra.mxu0 %v3427
    %3516 = vmatpush.msra.mxu0 %v3423
    %3517 = vmatpush.msra.mxu0 %v3419
    %3518 = vmatpush.msra.mxu0 %v3415
    %3519 = vmatpush.msra.mxu0 %v3411
    %3520 = vmatpush.msra.mxu0 %v3407
    %3521 = vmatpush.msra.mxu0 %v3403
    %3522 = vmatmul.f32.gmra.mxu0 %v1670
    %v3523 = vpop.f32.mrf.mxu0
    %v3524 = vadd.f32 0.0, %v3523
    %3525 = vdwg.mxu0
    %3526 = vmatpush.msra.mxu0 0.0
    %3527 = vmatpush.msra.mxu0 0.0
    %3528 = vmatpush.msra.mxu0 0.0
    %3529 = vmatpush.msra.mxu0 0.0
    %3530 = vmatpush.msra.mxu0 0.0
    %3531 = vmatpush.msra.mxu0 0.0
    %3532 = vmatpush.msra.mxu0 0.0
    %3533 = vmatpush.msra.mxu0 %v3499
    %3534 = vmatpush.msra.mxu0 %v3495
    %3535 = vmatpush.msra.mxu0 %v3491
    %3536 = vmatpush.msra.mxu0 %v3487
    %3537 = vmatpush.msra.mxu0 %v3483
    %3538 = vmatpush.msra.mxu0 %v3479
    %3539 = vmatpush.msra.mxu0 %v3475
    %3540 = vmatpush.msra.mxu0 %v3471
    %3541 = vmatpush.msra.mxu0 %v3467
    %3542 = vmatmul.f32.gmra.mxu0 %v3504
    %v3543 = vpop.f32.mrf.mxu0
    %v3544 = vadd.f32 %v3524, %v3543
    %3545 = vdwg.mxu0
    %3546 = vmatpush.msra.mxu0 %v3464
    %3547 = vmatpush.msra.mxu0 %v3460
    %3548 = vmatpush.msra.mxu0 %v3456
    %3549 = vmatpush.msra.mxu0 %v3452
    %3550 = vmatpush.msra.mxu0 %v3448
    %3551 = vmatpush.msra.mxu0 %v3444
    %3552 = vmatpush.msra.mxu0 %v3440
    %3553 = vmatpush.msra.mxu0 %v3436
    %3554 = vmatpush.msra.mxu0 %v3432
    %3555 = vmatpush.msra.mxu0 %v3428
    %3556 = vmatpush.msra.mxu0 %v3424
    %3557 = vmatpush.msra.mxu0 %v3420
    %3558 = vmatpush.msra.mxu0 %v3416
    %3559 = vmatpush.msra.mxu0 %v3412
    %3560 = vmatpush.msra.mxu0 %v3408
    %3561 = vmatpush.msra.mxu0 %v3404
    %3562 = vmatmul.f32.gmra.mxu0 %v1670
    %v3563 = vpop.f32.mrf.mxu0
    %v3564 = vadd.f32 0.0, %v3563
    %3565 = vdwg.mxu0
    %3566 = vmatpush.msra.mxu0 0.0
    %3567 = vmatpush.msra.mxu0 0.0
    %3568 = vmatpush.msra.mxu0 0.0
    %3569 = vmatpush.msra.mxu0 0.0
    %3570 = vmatpush.msra.mxu0 0.0
    %3571 = vmatpush.msra.mxu0 0.0
    %3572 = vmatpush.msra.mxu0 0.0
    %3573 = vmatpush.msra.mxu0 %v3500
    %3574 = vmatpush.msra.mxu0 %v3496
    %3575 = vmatpush.msra.mxu0 %v3492
    %3576 = vmatpush.msra.mxu0 %v3488
    %3577 = vmatpush.msra.mxu0 %v3484
    %3578 = vmatpush.msra.mxu0 %v3480
    %3579 = vmatpush.msra.mxu0 %v3476
    %3580 = vmatpush.msra.mxu0 %v3472
    %3581 = vmatpush.msra.mxu0 %v3468
    %3582 = vmatmul.f32.gmra.mxu0 %v3504
    %v3583 = vpop.f32.mrf.mxu0
    %v3584 = vadd.f32 %v3564, %v3583
    %3585 = vdwg.mxu0
    %3586 = vmatpush.msra.mxu0 %v3465
    %3587 = vmatpush.msra.mxu0 %v3461
    %3588 = vmatpush.msra.mxu0 %v3457
    %3589 = vmatpush.msra.mxu0 %v3453
    %3590 = vmatpush.msra.mxu0 %v3449
    %3591 = vmatpush.msra.mxu0 %v3445
    %3592 = vmatpush.msra.mxu0 %v3441
    %3593 = vmatpush.msra.mxu0 %v3437
    %3594 = vmatpush.msra.mxu0 %v3433
    %3595 = vmatpush.msra.mxu0 %v3429
    %3596 = vmatpush.msra.mxu0 %v3425
    %3597 = vmatpush.msra.mxu0 %v3421
    %3598 = vmatpush.msra.mxu0 %v3417
    %3599 = vmatpush.msra.mxu0 %v3413
    %3600 = vmatpush.msra.mxu0 %v3409
    %3601 = vmatpush.msra.mxu0 %v3405
    %3602 = vmatmul.f32.gmra.mxu0 %v1670
    %v3603 = vpop.f32.mrf.mxu0
    %v3604 = vadd.f32 0.0, %v3603
    %3605 = vdwg.mxu0
    %3606 = vmatpush.msra.mxu0 0.0
    %3607 = vmatpush.msra.mxu0 0.0
    %3608 = vmatpush.msra.mxu0 0.0
    %3609 = vmatpush.msra.mxu0 0.0
    %3610 = vmatpush.msra.mxu0 0.0
    %3611 = vmatpush.msra.mxu0 0.0
    %3612 = vmatpush.msra.mxu0 0.0
    %3613 = vmatpush.msra.mxu0 %v3501
    %3614 = vmatpush.msra.mxu0 %v3497
    %3615 = vmatpush.msra.mxu0 %v3493
    %3616 = vmatpush.msra.mxu0 %v3489
    %3617 = vmatpush.msra.mxu0 %v3485
    %3618 = vmatpush.msra.mxu0 %v3481
    %3619 = vmatpush.msra.mxu0 %v3477
    %3620 = vmatpush.msra.mxu0 %v3473
    %3621 = vmatpush.msra.mxu0 %v3469
    %3622 = vmatmul.f32.gmra.mxu0 %v3504
    %v3623 = vpop.f32.mrf.mxu0
    %v3624 = vadd.f32 %v3604, %v3623
    %3625 = vdwg.mxu0
    %3626 = vmatpush.msra.mxu0 %v3466
    %3627 = vmatpush.msra.mxu0 %v3462
    %3628 = vmatpush.msra.mxu0 %v3458
    %3629 = vmatpush.msra.mxu0 %v3454
    %3630 = vmatpush.msra.mxu0 %v3450
    %3631 = vmatpush.msra.mxu0 %v3446
    %3632 = vmatpush.msra.mxu0 %v3442
    %3633 = vmatpush.msra.mxu0 %v3438
    %3634 = vmatpush.msra.mxu0 %v3434
    %3635 = vmatpush.msra.mxu0 %v3430
    %3636 = vmatpush.msra.mxu0 %v3426
    %3637 = vmatpush.msra.mxu0 %v3422
    %3638 = vmatpush.msra.mxu0 %v3418
    %3639 = vmatpush.msra.mxu0 %v3414
    %3640 = vmatpush.msra.mxu0 %v3410
    %3641 = vmatpush.msra.mxu0 %v3406
    %3642 = vmatmul.f32.gmra.mxu0 %v1670
    %v3643 = vpop.f32.mrf.mxu0
    %v3644 = vadd.f32 0.0, %v3643
    %3645 = vdwg.mxu0
    %3646 = vmatpush.msra.mxu0 0.0
    %3647 = vmatpush.msra.mxu0 0.0
    %3648 = vmatpush.msra.mxu0 0.0
    %3649 = vmatpush.msra.mxu0 0.0
    %3650 = vmatpush.msra.mxu0 0.0
    %3651 = vmatpush.msra.mxu0 0.0
    %3652 = vmatpush.msra.mxu0 0.0
    %3653 = vmatpush.msra.mxu0 %v3502
    %3654 = vmatpush.msra.mxu0 %v3498
    %3655 = vmatpush.msra.mxu0 %v3494
    %3656 = vmatpush.msra.mxu0 %v3490
    %3657 = vmatpush.msra.mxu0 %v3486
    %3658 = vmatpush.msra.mxu0 %v3482
    %3659 = vmatpush.msra.mxu0 %v3478
    %3660 = vmatpush.msra.mxu0 %v3474
    %3661 = vmatpush.msra.mxu0 %v3470
    %3662 = vmatmul.f32.gmra.mxu0 %v3504
    %v3663 = vpop.f32.mrf.mxu0
    %v3664 = vadd.f32 %v3644, %v3663
    %3665 = vdwg.mxu0
    %v3666 = vadd.f32 %v3273, %v3544
    %v3667 = vadd.f32 %v3274, %v3584
    %v3668 = vadd.f32 %v3275, %v3624
    %v3669 = vadd.f32 %v3276, %v3664
    %s3670 = scalar_lea.vmem [#allocation2], 1000
    %v3671 = vld [vmem:[%s3670] sm:$0xff]
    %v3672 = vld [vmem:[%s3670 + $0x8] sm:$0xff]
    %v3673 = vld [vmem:[%s3670 + $0x10] sm:$0xff]
    %v3674 = vld [vmem:[%s3670 + $0x18] sm:$0xff]
    %v3675 = vld [vmem:[%s3670 + $0x20] sm:$0xff]
    %v3676 = vld [vmem:[%s3670 + $0x28] sm:$0xff]
    %v3677 = vld [vmem:[%s3670 + $0x30] sm:$0xff]
    %v3678 = vld [vmem:[%s3670 + $0x38] sm:$0xff]
    %v3679 = vld [vmem:[%s3670 + $0x40] sm:$0xff]
    %v3680 = vld [vmem:[%s3670 + $0x48] sm:$0xff]
    %v3681 = vld [vmem:[%s3670 + $0x50] sm:$0xff]
    %v3682 = vld [vmem:[%s3670 + $0x58] sm:$0xff]
    %v3683 = vld [vmem:[%s3670 + $0x60] sm:$0xff]
    %v3684 = vld [vmem:[%s3670 + $0x68] sm:$0xff]
    %v3685 = vld [vmem:[%s3670 + $0x70] sm:$0xff]
    %v3686 = vld [vmem:[%s3670 + $0x78] sm:$0xff]
    %v3687 = vld [vmem:[%s3670 + $0x80] sm:$0xff]
    %v3688 = vld [vmem:[%s3670 + $0x88] sm:$0xff]
    %v3689 = vld [vmem:[%s3670 + $0x90] sm:$0xff]
    %v3690 = vld [vmem:[%s3670 + $0x98] sm:$0xff]
    %v3691 = vld [vmem:[%s3670 + $0xa0] sm:$0xff]
    %v3692 = vld [vmem:[%s3670 + $0xa8] sm:$0xff]
    %v3693 = vld [vmem:[%s3670 + $0xb0] sm:$0xff]
    %v3694 = vld [vmem:[%s3670 + $0xb8] sm:$0xff]
    %v3695 = vld [vmem:[%s3670 + $0xc0] sm:$0xff]
    %v3696 = vunpack.c.0.s8 %v3671
    %v3697 = vunpack.c.1.s8 %v3671
    %v3698 = vunpack.c.2.s8 %v3671
    %v3699 = vunpack.c.3.s8 %v3671
    %v3700 = vunpack.c.0.s8 %v3672
    %v3701 = vunpack.c.1.s8 %v3672
    %v3702 = vunpack.c.2.s8 %v3672
    %v3703 = vunpack.c.3.s8 %v3672
    %v3704 = vunpack.c.0.s8 %v3673
    %v3705 = vunpack.c.1.s8 %v3673
    %v3706 = vunpack.c.2.s8 %v3673
    %v3707 = vunpack.c.3.s8 %v3673
    %v3708 = vunpack.c.0.s8 %v3674
    %v3709 = vunpack.c.1.s8 %v3674
    %v3710 = vunpack.c.2.s8 %v3674
    %v3711 = vunpack.c.3.s8 %v3674
    %v3712 = vunpack.c.0.s8 %v3675
    %v3713 = vunpack.c.1.s8 %v3675
    %v3714 = vunpack.c.2.s8 %v3675
    %v3715 = vunpack.c.3.s8 %v3675
    %v3716 = vunpack.c.0.s8 %v3676
    %v3717 = vunpack.c.1.s8 %v3676
    %v3718 = vunpack.c.2.s8 %v3676
    %v3719 = vunpack.c.3.s8 %v3676
    %v3720 = vunpack.c.0.s8 %v3677
    %v3721 = vunpack.c.1.s8 %v3677
    %v3722 = vunpack.c.2.s8 %v3677
    %v3723 = vunpack.c.3.s8 %v3677
    %v3724 = vunpack.c.0.s8 %v3678
    %v3725 = vunpack.c.1.s8 %v3678
    %v3726 = vunpack.c.2.s8 %v3678
    %v3727 = vunpack.c.3.s8 %v3678
    %v3728 = vunpack.c.0.s8 %v3679
    %v3729 = vunpack.c.1.s8 %v3679
    %v3730 = vunpack.c.2.s8 %v3679
    %v3731 = vunpack.c.3.s8 %v3679
    %v3732 = vunpack.c.0.s8 %v3680
    %v3733 = vunpack.c.1.s8 %v3680
    %v3734 = vunpack.c.2.s8 %v3680
    %v3735 = vunpack.c.3.s8 %v3680
    %v3736 = vunpack.c.0.s8 %v3681
    %v3737 = vunpack.c.1.s8 %v3681
    %v3738 = vunpack.c.2.s8 %v3681
    %v3739 = vunpack.c.3.s8 %v3681
    %v3740 = vunpack.c.0.s8 %v3682
    %v3741 = vunpack.c.1.s8 %v3682
    %v3742 = vunpack.c.2.s8 %v3682
    %v3743 = vunpack.c.3.s8 %v3682
    %v3744 = vunpack.c.0.s8 %v3683
    %v3745 = vunpack.c.1.s8 %v3683
    %v3746 = vunpack.c.2.s8 %v3683
    %v3747 = vunpack.c.3.s8 %v3683
    %v3748 = vunpack.c.0.s8 %v3684
    %v3749 = vunpack.c.1.s8 %v3684
    %v3750 = vunpack.c.2.s8 %v3684
    %v3751 = vunpack.c.3.s8 %v3684
    %v3752 = vunpack.c.0.s8 %v3685
    %v3753 = vunpack.c.1.s8 %v3685
    %v3754 = vunpack.c.2.s8 %v3685
    %v3755 = vunpack.c.3.s8 %v3685
    %v3756 = vunpack.c.0.s8 %v3686
    %v3757 = vunpack.c.1.s8 %v3686
    %v3758 = vunpack.c.2.s8 %v3686
    %v3759 = vunpack.c.3.s8 %v3686
    %v3760 = vunpack.c.0.s8 %v3687
    %v3761 = vunpack.c.1.s8 %v3687
    %v3762 = vunpack.c.2.s8 %v3687
    %v3763 = vunpack.c.3.s8 %v3687
    %v3764 = vunpack.c.0.s8 %v3688
    %v3765 = vunpack.c.1.s8 %v3688
    %v3766 = vunpack.c.2.s8 %v3688
    %v3767 = vunpack.c.3.s8 %v3688
    %v3768 = vunpack.c.0.s8 %v3689
    %v3769 = vunpack.c.1.s8 %v3689
    %v3770 = vunpack.c.2.s8 %v3689
    %v3771 = vunpack.c.3.s8 %v3689
    %v3772 = vunpack.c.0.s8 %v3690
    %v3773 = vunpack.c.1.s8 %v3690
    %v3774 = vunpack.c.2.s8 %v3690
    %v3775 = vunpack.c.3.s8 %v3690
    %v3776 = vunpack.c.0.s8 %v3691
    %v3777 = vunpack.c.1.s8 %v3691
    %v3778 = vunpack.c.2.s8 %v3691
    %v3779 = vunpack.c.3.s8 %v3691
    %v3780 = vunpack.c.0.s8 %v3692
    %v3781 = vunpack.c.1.s8 %v3692
    %v3782 = vunpack.c.2.s8 %v3692
    %v3783 = vunpack.c.3.s8 %v3692
    %v3784 = vunpack.c.0.s8 %v3693
    %v3785 = vunpack.c.1.s8 %v3693
    %v3786 = vunpack.c.2.s8 %v3693
    %v3787 = vunpack.c.3.s8 %v3693
    %v3788 = vunpack.c.0.s8 %v3694
    %v3789 = vunpack.c.1.s8 %v3694
    %v3790 = vunpack.c.2.s8 %v3694
    %v3791 = vunpack.c.3.s8 %v3694
    %v3792 = vunpack.c.0.s8 %v3695
    %v3793 = vunpack.c.1.s8 %v3695
    %v3794 = vunpack.c.2.s8 %v3695
    %v3795 = vunpack.c.3.s8 %v3695
    %v3796 = vcvt.s32.f32 %v3696
    %v3797 = vcvt.s32.f32 %v3697
    %v3798 = vcvt.s32.f32 %v3698
    %v3799 = vcvt.s32.f32 %v3699
    %v3800 = vcvt.s32.f32 %v3700
    %v3801 = vcvt.s32.f32 %v3701
    %v3802 = vcvt.s32.f32 %v3702
    %v3803 = vcvt.s32.f32 %v3703
    %v3804 = vcvt.s32.f32 %v3704
    %v3805 = vcvt.s32.f32 %v3705
    %v3806 = vcvt.s32.f32 %v3706
    %v3807 = vcvt.s32.f32 %v3707
    %v3808 = vcvt.s32.f32 %v3708
    %v3809 = vcvt.s32.f32 %v3709
    %v3810 = vcvt.s32.f32 %v3710
    %v3811 = vcvt.s32.f32 %v3711
    %v3812 = vcvt.s32.f32 %v3712
    %v3813 = vcvt.s32.f32 %v3713
    %v3814 = vcvt.s32.f32 %v3714
    %v3815 = vcvt.s32.f32 %v3715
    %v3816 = vcvt.s32.f32 %v3716
    %v3817 = vcvt.s32.f32 %v3717
    %v3818 = vcvt.s32.f32 %v3718
    %v3819 = vcvt.s32.f32 %v3719
    %v3820 = vcvt.s32.f32 %v3720
    %v3821 = vcvt.s32.f32 %v3721
    %v3822 = vcvt.s32.f32 %v3722
    %v3823 = vcvt.s32.f32 %v3723
    %v3824 = vcvt.s32.f32 %v3724
    %v3825 = vcvt.s32.f32 %v3725
    %v3826 = vcvt.s32.f32 %v3726
    %v3827 = vcvt.s32.f32 %v3727
    %v3828 = vcvt.s32.f32 %v3728
    %v3829 = vcvt.s32.f32 %v3729
    %v3830 = vcvt.s32.f32 %v3730
    %v3831 = vcvt.s32.f32 %v3731
    %v3832 = vcvt.s32.f32 %v3732
    %v3833 = vcvt.s32.f32 %v3733
    %v3834 = vcvt.s32.f32 %v3734
    %v3835 = vcvt.s32.f32 %v3735
    %v3836 = vcvt.s32.f32 %v3736
    %v3837 = vcvt.s32.f32 %v3737
    %v3838 = vcvt.s32.f32 %v3738
    %v3839 = vcvt.s32.f32 %v3739
    %v3840 = vcvt.s32.f32 %v3740
    %v3841 = vcvt.s32.f32 %v3741
    %v3842 = vcvt.s32.f32 %v3742
    %v3843 = vcvt.s32.f32 %v3743
    %v3844 = vcvt.s32.f32 %v3744
    %v3845 = vcvt.s32.f32 %v3745
    %v3846 = vcvt.s32.f32 %v3746
    %v3847 = vcvt.s32.f32 %v3747
    %v3848 = vcvt.s32.f32 %v3748
    %v3849 = vcvt.s32.f32 %v3749
    %v3850 = vcvt.s32.f32 %v3750
    %v3851 = vcvt.s32.f32 %v3751
    %v3852 = vcvt.s32.f32 %v3752
    %v3853 = vcvt.s32.f32 %v3753
    %v3854 = vcvt.s32.f32 %v3754
    %v3855 = vcvt.s32.f32 %v3755
    %v3856 = vcvt.s32.f32 %v3756
    %v3857 = vcvt.s32.f32 %v3757
    %v3858 = vcvt.s32.f32 %v3758
    %v3859 = vcvt.s32.f32 %v3759
    %v3860 = vcvt.s32.f32 %v3760
    %v3861 = vcvt.s32.f32 %v3761
    %v3862 = vcvt.s32.f32 %v3762
    %v3863 = vcvt.s32.f32 %v3763
    %v3864 = vcvt.s32.f32 %v3764
    %v3865 = vcvt.s32.f32 %v3765
    %v3866 = vcvt.s32.f32 %v3766
    %v3867 = vcvt.s32.f32 %v3767
    %v3868 = vcvt.s32.f32 %v3768
    %v3869 = vcvt.s32.f32 %v3769
    %v3870 = vcvt.s32.f32 %v3770
    %v3871 = vcvt.s32.f32 %v3771
    %v3872 = vcvt.s32.f32 %v3772
    %v3873 = vcvt.s32.f32 %v3773
    %v3874 = vcvt.s32.f32 %v3774
    %v3875 = vcvt.s32.f32 %v3775
    %v3876 = vcvt.s32.f32 %v3776
    %v3877 = vcvt.s32.f32 %v3777
    %v3878 = vcvt.s32.f32 %v3778
    %v3879 = vcvt.s32.f32 %v3779
    %v3880 = vcvt.s32.f32 %v3780
    %v3881 = vcvt.s32.f32 %v3781
    %v3882 = vcvt.s32.f32 %v3782
    %v3883 = vcvt.s32.f32 %v3783
    %v3884 = vcvt.s32.f32 %v3784
    %v3885 = vcvt.s32.f32 %v3785
    %v3886 = vcvt.s32.f32 %v3786
    %v3887 = vcvt.s32.f32 %v3787
    %v3888 = vcvt.s32.f32 %v3788
    %v3889 = vcvt.s32.f32 %v3789
    %v3890 = vcvt.s32.f32 %v3790
    %v3891 = vcvt.s32.f32 %v3791
    %v3892 = vcvt.s32.f32 %v3792
    %v3893 = vcvt.s32.f32 %v3793
    %v3894 = vcvt.s32.f32 %v3794
    %v3895 = vcvt.s32.f32 %v3795
    %v3897 = vrot.slane %v1670, 2
    %v3898 = vrot.slane %v1696, 2
    %v3900 = vsel %vm2162, %v3898, 0
    %3902 = vmatpush.msra.mxu0 %v3856
    %3903 = vmatpush.msra.mxu0 %v3852
    %3904 = vmatpush.msra.mxu0 %v3848
    %3905 = vmatpush.msra.mxu0 %v3844
    %3906 = vmatpush.msra.mxu0 %v3840
    %3907 = vmatpush.msra.mxu0 %v3836
    %3908 = vmatpush.msra.mxu0 %v3832
    %3909 = vmatpush.msra.mxu0 %v3828
    %3910 = vmatpush.msra.mxu0 %v3824
    %3911 = vmatpush.msra.mxu0 %v3820
    %3912 = vmatpush.msra.mxu0 %v3816
    %3913 = vmatpush.msra.mxu0 %v3812
    %3914 = vmatpush.msra.mxu0 %v3808
    %3915 = vmatpush.msra.mxu0 %v3804
    %3916 = vmatpush.msra.mxu0 %v3800
    %3917 = vmatpush.msra.mxu0 %v3796
    %3918 = vmatmul.f32.gmra.mxu0 %v3897
    %v3919 = vpop.f32.mrf.mxu0
    %v3920 = vadd.f32 0.0, %v3919
    %3921 = vdwg.mxu0
    %3922 = vmatpush.msra.mxu0 0.0
    %3923 = vmatpush.msra.mxu0 0.0
    %3924 = vmatpush.msra.mxu0 0.0
    %3925 = vmatpush.msra.mxu0 0.0
    %3926 = vmatpush.msra.mxu0 0.0
    %3927 = vmatpush.msra.mxu0 0.0
    %3928 = vmatpush.msra.mxu0 0.0
    %3929 = vmatpush.msra.mxu0 %v3892
    %3930 = vmatpush.msra.mxu0 %v3888
    %3931 = vmatpush.msra.mxu0 %v3884
    %3932 = vmatpush.msra.mxu0 %v3880
    %3933 = vmatpush.msra.mxu0 %v3876
    %3934 = vmatpush.msra.mxu0 %v3872
    %3935 = vmatpush.msra.mxu0 %v3868
    %3936 = vmatpush.msra.mxu0 %v3864
    %3937 = vmatpush.msra.mxu0 %v3860
    %3938 = vmatmul.f32.gmra.mxu0 %v3900
    %v3939 = vpop.f32.mrf.mxu0
    %v3940 = vadd.f32 %v3920, %v3939
    %3941 = vdwg.mxu0
    %3942 = vmatpush.msra.mxu0 %v3857
    %3943 = vmatpush.msra.mxu0 %v3853
    %3944 = vmatpush.msra.mxu0 %v3849
    %3945 = vmatpush.msra.mxu0 %v3845
    %3946 = vmatpush.msra.mxu0 %v3841
    %3947 = vmatpush.msra.mxu0 %v3837
    %3948 = vmatpush.msra.mxu0 %v3833
    %3949 = vmatpush.msra.mxu0 %v3829
    %3950 = vmatpush.msra.mxu0 %v3825
    %3951 = vmatpush.msra.mxu0 %v3821
    %3952 = vmatpush.msra.mxu0 %v3817
    %3953 = vmatpush.msra.mxu0 %v3813
    %3954 = vmatpush.msra.mxu0 %v3809
    %3955 = vmatpush.msra.mxu0 %v3805
    %3956 = vmatpush.msra.mxu0 %v3801
    %3957 = vmatpush.msra.mxu0 %v3797
    %3958 = vmatmul.f32.gmra.mxu0 %v3897
    %v3959 = vpop.f32.mrf.mxu0
    %v3960 = vadd.f32 0.0, %v3959
    %3961 = vdwg.mxu0
    %3962 = vmatpush.msra.mxu0 0.0
    %3963 = vmatpush.msra.mxu0 0.0
    %3964 = vmatpush.msra.mxu0 0.0
    %3965 = vmatpush.msra.mxu0 0.0
    %3966 = vmatpush.msra.mxu0 0.0
    %3967 = vmatpush.msra.mxu0 0.0
    %3968 = vmatpush.msra.mxu0 0.0
    %3969 = vmatpush.msra.mxu0 %v3893
    %3970 = vmatpush.msra.mxu0 %v3889
    %3971 = vmatpush.msra.mxu0 %v3885
    %3972 = vmatpush.msra.mxu0 %v3881
    %3973 = vmatpush.msra.mxu0 %v3877
    %3974 = vmatpush.msra.mxu0 %v3873
    %3975 = vmatpush.msra.mxu0 %v3869
    %3976 = vmatpush.msra.mxu0 %v3865
    %3977 = vmatpush.msra.mxu0 %v3861
    %3978 = vmatmul.f32.gmra.mxu0 %v3900
    %v3979 = vpop.f32.mrf.mxu0
    %v3980 = vadd.f32 %v3960, %v3979
    %3981 = vdwg.mxu0
    %3982 = vmatpush.msra.mxu0 %v3858
    %3983 = vmatpush.msra.mxu0 %v3854
    %3984 = vmatpush.msra.mxu0 %v3850
    %3985 = vmatpush.msra.mxu0 %v3846
    %3986 = vmatpush.msra.mxu0 %v3842
    %3987 = vmatpush.msra.mxu0 %v3838
    %3988 = vmatpush.msra.mxu0 %v3834
    %3989 = vmatpush.msra.mxu0 %v3830
    %3990 = vmatpush.msra.mxu0 %v3826
    %3991 = vmatpush.msra.mxu0 %v3822
    %3992 = vmatpush.msra.mxu0 %v3818
    %3993 = vmatpush.msra.mxu0 %v3814
    %3994 = vmatpush.msra.mxu0 %v3810
    %3995 = vmatpush.msra.mxu0 %v3806
    %3996 = vmatpush.msra.mxu0 %v3802
    %3997 = vmatpush.msra.mxu0 %v3798
    %3998 = vmatmul.f32.gmra.mxu0 %v3897
    %v3999 = vpop.f32.mrf.mxu0
    %v4000 = vadd.f32 0.0, %v3999
    %4001 = vdwg.mxu0
    %4002 = vmatpush.msra.mxu0 0.0
    %4003 = vmatpush.msra.mxu0 0.0
    %4004 = vmatpush.msra.mxu0 0.0
    %4005 = vmatpush.msra.mxu0 0.0
    %4006 = vmatpush.msra.mxu0 0.0
    %4007 = vmatpush.msra.mxu0 0.0
    %4008 = vmatpush.msra.mxu0 0.0
    %4009 = vmatpush.msra.mxu0 %v3894
    %4010 = vmatpush.msra.mxu0 %v3890
    %4011 = vmatpush.msra.mxu0 %v3886
    %4012 = vmatpush.msra.mxu0 %v3882
    %4013 = vmatpush.msra.mxu0 %v3878
    %4014 = vmatpush.msra.mxu0 %v3874
    %4015 = vmatpush.msra.mxu0 %v3870
    %4016 = vmatpush.msra.mxu0 %v3866
    %4017 = vmatpush.msra.mxu0 %v3862
    %4018 = vmatmul.f32.gmra.mxu0 %v3900
    %v4019 = vpop.f32.mrf.mxu0
    %v4020 = vadd.f32 %v4000, %v4019
    %4021 = vdwg.mxu0
    %4022 = vmatpush.msra.mxu0 %v3859
    %4023 = vmatpush.msra.mxu0 %v3855
    %4024 = vmatpush.msra.mxu0 %v3851
    %4025 = vmatpush.msra.mxu0 %v3847
    %4026 = vmatpush.msra.mxu0 %v3843
    %4027 = vmatpush.msra.mxu0 %v3839
    %4028 = vmatpush.msra.mxu0 %v3835
    %4029 = vmatpush.msra.mxu0 %v3831
    %4030 = vmatpush.msra.mxu0 %v3827
    %4031 = vmatpush.msra.mxu0 %v3823
    %4032 = vmatpush.msra.mxu0 %v3819
    %4033 = vmatpush.msra.mxu0 %v3815
    %4034 = vmatpush.msra.mxu0 %v3811
    %4035 = vmatpush.msra.mxu0 %v3807
    %4036 = vmatpush.msra.mxu0 %v3803
    %4037 = vmatpush.msra.mxu0 %v3799
    %4038 = vmatmul.f32.gmra.mxu0 %v3897
    %v4039 = vpop.f32.mrf.mxu0
    %v4040 = vadd.f32 0.0, %v4039
    %4041 = vdwg.mxu0
    %4042 = vmatpush.msra.mxu0 0.0
    %4043 = vmatpush.msra.mxu0 0.0
    %4044 = vmatpush.msra.mxu0 0.0
    %4045 = vmatpush.msra.mxu0 0.0
    %4046 = vmatpush.msra.mxu0 0.0
    %4047 = vmatpush.msra.mxu0 0.0
    %4048 = vmatpush.msra.mxu0 0.0
    %4049 = vmatpush.msra.mxu0 %v3895
    %4050 = vmatpush.msra.mxu0 %v3891
    %4051 = vmatpush.msra.mxu0 %v3887
    %4052 = vmatpush.msra.mxu0 %v3883
    %4053 = vmatpush.msra.mxu0 %v3879
    %4054 = vmatpush.msra.mxu0 %v3875
    %4055 = vmatpush.msra.mxu0 %v3871
    %4056 = vmatpush.msra.mxu0 %v3867
    %4057 = vmatpush.msra.mxu0 %v3863
    %4058 = vmatmul.f32.gmra.mxu0 %v3900
    %v4059 = vpop.f32.mrf.mxu0
    %v4060 = vadd.f32 %v4040, %v4059
    %4061 = vdwg.mxu0
    %v4062 = vadd.f32 %v3666, %v3940
    %v4063 = vadd.f32 %v3667, %v3980
    %v4064 = vadd.f32 %v3668, %v4020
    %v4065 = vadd.f32 %v3669, %v4060
    %s4066 = scalar_lea.vmem [#allocation2], 1200
    %v4067 = vld [vmem:[%s4066] sm:$0xff]
    %v4068 = vld [vmem:[%s4066 + $0x8] sm:$0xff]
    %v4069 = vld [vmem:[%s4066 + $0x10] sm:$0xff]
    %v4070 = vld [vmem:[%s4066 + $0x18] sm:$0xff]
    %v4071 = vld [vmem:[%s4066 + $0x20] sm:$0xff]
    %v4072 = vld [vmem:[%s4066 + $0x28] sm:$0xff]
    %v4073 = vld [vmem:[%s4066 + $0x30] sm:$0xff]
    %v4074 = vld [vmem:[%s4066 + $0x38] sm:$0xff]
    %v4075 = vld [vmem:[%s4066 + $0x40] sm:$0xff]
    %v4076 = vld [vmem:[%s4066 + $0x48] sm:$0xff]
    %v4077 = vld [vmem:[%s4066 + $0x50] sm:$0xff]
    %v4078 = vld [vmem:[%s4066 + $0x58] sm:$0xff]
    %v4079 = vld [vmem:[%s4066 + $0x60] sm:$0xff]
    %v4080 = vld [vmem:[%s4066 + $0x68] sm:$0xff]
    %v4081 = vld [vmem:[%s4066 + $0x70] sm:$0xff]
    %v4082 = vld [vmem:[%s4066 + $0x78] sm:$0xff]
    %v4083 = vld [vmem:[%s4066 + $0x80] sm:$0xff]
    %v4084 = vld [vmem:[%s4066 + $0x88] sm:$0xff]
    %v4085 = vld [vmem:[%s4066 + $0x90] sm:$0xff]
    %v4086 = vld [vmem:[%s4066 + $0x98] sm:$0xff]
    %v4087 = vld [vmem:[%s4066 + $0xa0] sm:$0xff]
    %v4088 = vld [vmem:[%s4066 + $0xa8] sm:$0xff]
    %v4089 = vld [vmem:[%s4066 + $0xb0] sm:$0xff]
    %v4090 = vld [vmem:[%s4066 + $0xb8] sm:$0xff]
    %v4091 = vld [vmem:[%s4066 + $0xc0] sm:$0xff]
    %v4092 = vunpack.c.0.s8 %v4067
    %v4093 = vunpack.c.1.s8 %v4067
    %v4094 = vunpack.c.2.s8 %v4067
    %v4095 = vunpack.c.3.s8 %v4067
    %v4096 = vunpack.c.0.s8 %v4068
    %v4097 = vunpack.c.1.s8 %v4068
    %v4098 = vunpack.c.2.s8 %v4068
    %v4099 = vunpack.c.3.s8 %v4068
    %v4100 = vunpack.c.0.s8 %v4069
    %v4101 = vunpack.c.1.s8 %v4069
    %v4102 = vunpack.c.2.s8 %v4069
    %v4103 = vunpack.c.3.s8 %v4069
    %v4104 = vunpack.c.0.s8 %v4070
    %v4105 = vunpack.c.1.s8 %v4070
    %v4106 = vunpack.c.2.s8 %v4070
    %v4107 = vunpack.c.3.s8 %v4070
    %v4108 = vunpack.c.0.s8 %v4071
    %v4109 = vunpack.c.1.s8 %v4071
    %v4110 = vunpack.c.2.s8 %v4071
    %v4111 = vunpack.c.3.s8 %v4071
    %v4112 = vunpack.c.0.s8 %v4072
    %v4113 = vunpack.c.1.s8 %v4072
    %v4114 = vunpack.c.2.s8 %v4072
    %v4115 = vunpack.c.3.s8 %v4072
    %v4116 = vunpack.c.0.s8 %v4073
    %v4117 = vunpack.c.1.s8 %v4073
    %v4118 = vunpack.c.2.s8 %v4073
    %v4119 = vunpack.c.3.s8 %v4073
    %v4120 = vunpack.c.0.s8 %v4074
    %v4121 = vunpack.c.1.s8 %v4074
    %v4122 = vunpack.c.2.s8 %v4074
    %v4123 = vunpack.c.3.s8 %v4074
    %v4124 = vunpack.c.0.s8 %v4075
    %v4125 = vunpack.c.1.s8 %v4075
    %v4126 = vunpack.c.2.s8 %v4075
    %v4127 = vunpack.c.3.s8 %v4075
    %v4128 = vunpack.c.0.s8 %v4076
    %v4129 = vunpack.c.1.s8 %v4076
    %v4130 = vunpack.c.2.s8 %v4076
    %v4131 = vunpack.c.3.s8 %v4076
    %v4132 = vunpack.c.0.s8 %v4077
    %v4133 = vunpack.c.1.s8 %v4077
    %v4134 = vunpack.c.2.s8 %v4077
    %v4135 = vunpack.c.3.s8 %v4077
    %v4136 = vunpack.c.0.s8 %v4078
    %v4137 = vunpack.c.1.s8 %v4078
    %v4138 = vunpack.c.2.s8 %v4078
    %v4139 = vunpack.c.3.s8 %v4078
    %v4140 = vunpack.c.0.s8 %v4079
    %v4141 = vunpack.c.1.s8 %v4079
    %v4142 = vunpack.c.2.s8 %v4079
    %v4143 = vunpack.c.3.s8 %v4079
    %v4144 = vunpack.c.0.s8 %v4080
    %v4145 = vunpack.c.1.s8 %v4080
    %v4146 = vunpack.c.2.s8 %v4080
    %v4147 = vunpack.c.3.s8 %v4080
    %v4148 = vunpack.c.0.s8 %v4081
    %v4149 = vunpack.c.1.s8 %v4081
    %v4150 = vunpack.c.2.s8 %v4081
    %v4151 = vunpack.c.3.s8 %v4081
    %v4152 = vunpack.c.0.s8 %v4082
    %v4153 = vunpack.c.1.s8 %v4082
    %v4154 = vunpack.c.2.s8 %v4082
    %v4155 = vunpack.c.3.s8 %v4082
    %v4156 = vunpack.c.0.s8 %v4083
    %v4157 = vunpack.c.1.s8 %v4083
    %v4158 = vunpack.c.2.s8 %v4083
    %v4159 = vunpack.c.3.s8 %v4083
    %v4160 = vunpack.c.0.s8 %v4084
    %v4161 = vunpack.c.1.s8 %v4084
    %v4162 = vunpack.c.2.s8 %v4084
    %v4163 = vunpack.c.3.s8 %v4084
    %v4164 = vunpack.c.0.s8 %v4085
    %v4165 = vunpack.c.1.s8 %v4085
    %v4166 = vunpack.c.2.s8 %v4085
    %v4167 = vunpack.c.3.s8 %v4085
    %v4168 = vunpack.c.0.s8 %v4086
    %v4169 = vunpack.c.1.s8 %v4086
    %v4170 = vunpack.c.2.s8 %v4086
    %v4171 = vunpack.c.3.s8 %v4086
    %v4172 = vunpack.c.0.s8 %v4087
    %v4173 = vunpack.c.1.s8 %v4087
    %v4174 = vunpack.c.2.s8 %v4087
    %v4175 = vunpack.c.3.s8 %v4087
    %v4176 = vunpack.c.0.s8 %v4088
    %v4177 = vunpack.c.1.s8 %v4088
    %v4178 = vunpack.c.2.s8 %v4088
    %v4179 = vunpack.c.3.s8 %v4088
    %v4180 = vunpack.c.0.s8 %v4089
    %v4181 = vunpack.c.1.s8 %v4089
    %v4182 = vunpack.c.2.s8 %v4089
    %v4183 = vunpack.c.3.s8 %v4089
    %v4184 = vunpack.c.0.s8 %v4090
    %v4185 = vunpack.c.1.s8 %v4090
    %v4186 = vunpack.c.2.s8 %v4090
    %v4187 = vunpack.c.3.s8 %v4090
    %v4188 = vunpack.c.0.s8 %v4091
    %v4189 = vunpack.c.1.s8 %v4091
    %v4190 = vunpack.c.2.s8 %v4091
    %v4191 = vunpack.c.3.s8 %v4091
    %v4192 = vcvt.s32.f32 %v4092
    %v4193 = vcvt.s32.f32 %v4093
    %v4194 = vcvt.s32.f32 %v4094
    %v4195 = vcvt.s32.f32 %v4095
    %v4196 = vcvt.s32.f32 %v4096
    %v4197 = vcvt.s32.f32 %v4097
    %v4198 = vcvt.s32.f32 %v4098
    %v4199 = vcvt.s32.f32 %v4099
    %v4200 = vcvt.s32.f32 %v4100
    %v4201 = vcvt.s32.f32 %v4101
    %v4202 = vcvt.s32.f32 %v4102
    %v4203 = vcvt.s32.f32 %v4103
    %v4204 = vcvt.s32.f32 %v4104
    %v4205 = vcvt.s32.f32 %v4105
    %v4206 = vcvt.s32.f32 %v4106
    %v4207 = vcvt.s32.f32 %v4107
    %v4208 = vcvt.s32.f32 %v4108
    %v4209 = vcvt.s32.f32 %v4109
    %v4210 = vcvt.s32.f32 %v4110
    %v4211 = vcvt.s32.f32 %v4111
    %v4212 = vcvt.s32.f32 %v4112
    %v4213 = vcvt.s32.f32 %v4113
    %v4214 = vcvt.s32.f32 %v4114
    %v4215 = vcvt.s32.f32 %v4115
    %v4216 = vcvt.s32.f32 %v4116
    %v4217 = vcvt.s32.f32 %v4117
    %v4218 = vcvt.s32.f32 %v4118
    %v4219 = vcvt.s32.f32 %v4119
    %v4220 = vcvt.s32.f32 %v4120
    %v4221 = vcvt.s32.f32 %v4121
    %v4222 = vcvt.s32.f32 %v4122
    %v4223 = vcvt.s32.f32 %v4123
    %v4224 = vcvt.s32.f32 %v4124
    %v4225 = vcvt.s32.f32 %v4125
    %v4226 = vcvt.s32.f32 %v4126
    %v4227 = vcvt.s32.f32 %v4127
    %v4228 = vcvt.s32.f32 %v4128
    %v4229 = vcvt.s32.f32 %v4129
    %v4230 = vcvt.s32.f32 %v4130
    %v4231 = vcvt.s32.f32 %v4131
    %v4232 = vcvt.s32.f32 %v4132
    %v4233 = vcvt.s32.f32 %v4133
    %v4234 = vcvt.s32.f32 %v4134
    %v4235 = vcvt.s32.f32 %v4135
    %v4236 = vcvt.s32.f32 %v4136
    %v4237 = vcvt.s32.f32 %v4137
    %v4238 = vcvt.s32.f32 %v4138
    %v4239 = vcvt.s32.f32 %v4139
    %v4240 = vcvt.s32.f32 %v4140
    %v4241 = vcvt.s32.f32 %v4141
    %v4242 = vcvt.s32.f32 %v4142
    %v4243 = vcvt.s32.f32 %v4143
    %v4244 = vcvt.s32.f32 %v4144
    %v4245 = vcvt.s32.f32 %v4145
    %v4246 = vcvt.s32.f32 %v4146
    %v4247 = vcvt.s32.f32 %v4147
    %v4248 = vcvt.s32.f32 %v4148
    %v4249 = vcvt.s32.f32 %v4149
    %v4250 = vcvt.s32.f32 %v4150
    %v4251 = vcvt.s32.f32 %v4151
    %v4252 = vcvt.s32.f32 %v4152
    %v4253 = vcvt.s32.f32 %v4153
    %v4254 = vcvt.s32.f32 %v4154
    %v4255 = vcvt.s32.f32 %v4155
    %v4256 = vcvt.s32.f32 %v4156
    %v4257 = vcvt.s32.f32 %v4157
    %v4258 = vcvt.s32.f32 %v4158
    %v4259 = vcvt.s32.f32 %v4159
    %v4260 = vcvt.s32.f32 %v4160
    %v4261 = vcvt.s32.f32 %v4161
    %v4262 = vcvt.s32.f32 %v4162
    %v4263 = vcvt.s32.f32 %v4163
    %v4264 = vcvt.s32.f32 %v4164
    %v4265 = vcvt.s32.f32 %v4165
    %v4266 = vcvt.s32.f32 %v4166
    %v4267 = vcvt.s32.f32 %v4167
    %v4268 = vcvt.s32.f32 %v4168
    %v4269 = vcvt.s32.f32 %v4169
    %v4270 = vcvt.s32.f32 %v4170
    %v4271 = vcvt.s32.f32 %v4171
    %v4272 = vcvt.s32.f32 %v4172
    %v4273 = vcvt.s32.f32 %v4173
    %v4274 = vcvt.s32.f32 %v4174
    %v4275 = vcvt.s32.f32 %v4175
    %v4276 = vcvt.s32.f32 %v4176
    %v4277 = vcvt.s32.f32 %v4177
    %v4278 = vcvt.s32.f32 %v4178
    %v4279 = vcvt.s32.f32 %v4179
    %v4280 = vcvt.s32.f32 %v4180
    %v4281 = vcvt.s32.f32 %v4181
    %v4282 = vcvt.s32.f32 %v4182
    %v4283 = vcvt.s32.f32 %v4183
    %v4284 = vcvt.s32.f32 %v4184
    %v4285 = vcvt.s32.f32 %v4185
    %v4286 = vcvt.s32.f32 %v4186
    %v4287 = vcvt.s32.f32 %v4187
    %v4288 = vcvt.s32.f32 %v4188
    %v4289 = vcvt.s32.f32 %v4189
    %v4290 = vcvt.s32.f32 %v4190
    %v4291 = vcvt.s32.f32 %v4191
    %v4292 = vrot.slane %v1670, 4
    %v4293 = vrot.slane %v1696, 4
    %v4295 = vsel %vm2162, %v4293, 0
    %4297 = vmatpush.msra.mxu0 %v4252
    %4298 = vmatpush.msra.mxu0 %v4248
    %4299 = vmatpush.msra.mxu0 %v4244
    %4300 = vmatpush.msra.mxu0 %v4240
    %4301 = vmatpush.msra.mxu0 %v4236
    %4302 = vmatpush.msra.mxu0 %v4232
    %4303 = vmatpush.msra.mxu0 %v4228
    %4304 = vmatpush.msra.mxu0 %v4224
    %4305 = vmatpush.msra.mxu0 %v4220
    %4306 = vmatpush.msra.mxu0 %v4216
    %4307 = vmatpush.msra.mxu0 %v4212
    %4308 = vmatpush.msra.mxu0 %v4208
    %4309 = vmatpush.msra.mxu0 %v4204
    %4310 = vmatpush.msra.mxu0 %v4200
    %4311 = vmatpush.msra.mxu0 %v4196
    %4312 = vmatpush.msra.mxu0 %v4192
    %4313 = vmatmul.f32.gmra.mxu0 %v4292
    %v4314 = vpop.f32.mrf.mxu0
    %v4315 = vadd.f32 0.0, %v4314
    %4316 = vdwg.mxu0
    %4317 = vmatpush.msra.mxu0 0.0
    %4318 = vmatpush.msra.mxu0 0.0
    %4319 = vmatpush.msra.mxu0 0.0
    %4320 = vmatpush.msra.mxu0 0.0
    %4321 = vmatpush.msra.mxu0 0.0
    %4322 = vmatpush.msra.mxu0 0.0
    %4323 = vmatpush.msra.mxu0 0.0
    %4324 = vmatpush.msra.mxu0 %v4288
    %4325 = vmatpush.msra.mxu0 %v4284
    %4326 = vmatpush.msra.mxu0 %v4280
    %4327 = vmatpush.msra.mxu0 %v4276
    %4328 = vmatpush.msra.mxu0 %v4272
    %4329 = vmatpush.msra.mxu0 %v4268
    %4330 = vmatpush.msra.mxu0 %v4264
    %4331 = vmatpush.msra.mxu0 %v4260
    %4332 = vmatpush.msra.mxu0 %v4256
    %4333 = vmatmul.f32.gmra.mxu0 %v4295
    %v4334 = vpop.f32.mrf.mxu0
    %v4335 = vadd.f32 %v4315, %v4334
    %4336 = vdwg.mxu0
    %4337 = vmatpush.msra.mxu0 %v4253
    %4338 = vmatpush.msra.mxu0 %v4249
    %4339 = vmatpush.msra.mxu0 %v4245
    %4340 = vmatpush.msra.mxu0 %v4241
    %4341 = vmatpush.msra.mxu0 %v4237
    %4342 = vmatpush.msra.mxu0 %v4233
    %4343 = vmatpush.msra.mxu0 %v4229
    %4344 = vmatpush.msra.mxu0 %v4225
    %4345 = vmatpush.msra.mxu0 %v4221
    %4346 = vmatpush.msra.mxu0 %v4217
    %4347 = vmatpush.msra.mxu0 %v4213
    %4348 = vmatpush.msra.mxu0 %v4209
    %4349 = vmatpush.msra.mxu0 %v4205
    %4350 = vmatpush.msra.mxu0 %v4201
    %4351 = vmatpush.msra.mxu0 %v4197
    %4352 = vmatpush.msra.mxu0 %v4193
    %4353 = vmatmul.f32.gmra.mxu0 %v4292
    %v4354 = vpop.f32.mrf.mxu0
    %v4355 = vadd.f32 0.0, %v4354
    %4356 = vdwg.mxu0
    %4357 = vmatpush.msra.mxu0 0.0
    %4358 = vmatpush.msra.mxu0 0.0
    %4359 = vmatpush.msra.mxu0 0.0
    %4360 = vmatpush.msra.mxu0 0.0
    %4361 = vmatpush.msra.mxu0 0.0
    %4362 = vmatpush.msra.mxu0 0.0
    %4363 = vmatpush.msra.mxu0 0.0
    %4364 = vmatpush.msra.mxu0 %v4289
    %4365 = vmatpush.msra.mxu0 %v4285
    %4366 = vmatpush.msra.mxu0 %v4281
    %4367 = vmatpush.msra.mxu0 %v4277
    %4368 = vmatpush.msra.mxu0 %v4273
    %4369 = vmatpush.msra.mxu0 %v4269
    %4370 = vmatpush.msra.mxu0 %v4265
    %4371 = vmatpush.msra.mxu0 %v4261
    %4372 = vmatpush.msra.mxu0 %v4257
    %4373 = vmatmul.f32.gmra.mxu0 %v4295
    %v4374 = vpop.f32.mrf.mxu0
    %v4375 = vadd.f32 %v4355, %v4374
    %4376 = vdwg.mxu0
    %4377 = vmatpush.msra.mxu0 %v4254
    %4378 = vmatpush.msra.mxu0 %v4250
    %4379 = vmatpush.msra.mxu0 %v4246
    %4380 = vmatpush.msra.mxu0 %v4242
    %4381 = vmatpush.msra.mxu0 %v4238
    %4382 = vmatpush.msra.mxu0 %v4234
    %4383 = vmatpush.msra.mxu0 %v4230
    %4384 = vmatpush.msra.mxu0 %v4226
    %4385 = vmatpush.msra.mxu0 %v4222
    %4386 = vmatpush.msra.mxu0 %v4218
    %4387 = vmatpush.msra.mxu0 %v4214
    %4388 = vmatpush.msra.mxu0 %v4210
    %4389 = vmatpush.msra.mxu0 %v4206
    %4390 = vmatpush.msra.mxu0 %v4202
    %4391 = vmatpush.msra.mxu0 %v4198
    %4392 = vmatpush.msra.mxu0 %v4194
    %4393 = vmatmul.f32.gmra.mxu0 %v4292
    %v4394 = vpop.f32.mrf.mxu0
    %v4395 = vadd.f32 0.0, %v4394
    %4396 = vdwg.mxu0
    %4397 = vmatpush.msra.mxu0 0.0
    %4398 = vmatpush.msra.mxu0 0.0
    %4399 = vmatpush.msra.mxu0 0.0
    %4400 = vmatpush.msra.mxu0 0.0
    %4401 = vmatpush.msra.mxu0 0.0
    %4402 = vmatpush.msra.mxu0 0.0
    %4403 = vmatpush.msra.mxu0 0.0
    %4404 = vmatpush.msra.mxu0 %v4290
    %4405 = vmatpush.msra.mxu0 %v4286
    %4406 = vmatpush.msra.mxu0 %v4282
    %4407 = vmatpush.msra.mxu0 %v4278
    %4408 = vmatpush.msra.mxu0 %v4274
    %4409 = vmatpush.msra.mxu0 %v4270
    %4410 = vmatpush.msra.mxu0 %v4266
    %4411 = vmatpush.msra.mxu0 %v4262
    %4412 = vmatpush.msra.mxu0 %v4258
    %4413 = vmatmul.f32.gmra.mxu0 %v4295
    %v4414 = vpop.f32.mrf.mxu0
    %v4415 = vadd.f32 %v4395, %v4414
    %4416 = vdwg.mxu0
    %4417 = vmatpush.msra.mxu0 %v4255
    %4418 = vmatpush.msra.mxu0 %v4251
    %4419 = vmatpush.msra.mxu0 %v4247
    %4420 = vmatpush.msra.mxu0 %v4243
    %4421 = vmatpush.msra.mxu0 %v4239
    %4422 = vmatpush.msra.mxu0 %v4235
    %4423 = vmatpush.msra.mxu0 %v4231
    %4424 = vmatpush.msra.mxu0 %v4227
    %4425 = vmatpush.msra.mxu0 %v4223
    %4426 = vmatpush.msra.mxu0 %v4219
    %4427 = vmatpush.msra.mxu0 %v4215
    %4428 = vmatpush.msra.mxu0 %v4211
    %4429 = vmatpush.msra.mxu0 %v4207
    %4430 = vmatpush.msra.mxu0 %v4203
    %4431 = vmatpush.msra.mxu0 %v4199
    %4432 = vmatpush.msra.mxu0 %v4195
    %4433 = vmatmul.f32.gmra.mxu0 %v4292
    %v4434 = vpop.f32.mrf.mxu0
    %v4435 = vadd.f32 0.0, %v4434
    %4436 = vdwg.mxu0
    %4437 = vmatpush.msra.mxu0 0.0
    %4438 = vmatpush.msra.mxu0 0.0
    %4439 = vmatpush.msra.mxu0 0.0
    %4440 = vmatpush.msra.mxu0 0.0
    %4441 = vmatpush.msra.mxu0 0.0
    %4442 = vmatpush.msra.mxu0 0.0
    %4443 = vmatpush.msra.mxu0 0.0
    %4444 = vmatpush.msra.mxu0 %v4291
    %4445 = vmatpush.msra.mxu0 %v4287
    %4446 = vmatpush.msra.mxu0 %v4283
    %4447 = vmatpush.msra.mxu0 %v4279
    %4448 = vmatpush.msra.mxu0 %v4275
    %4449 = vmatpush.msra.mxu0 %v4271
    %4450 = vmatpush.msra.mxu0 %v4267
    %4451 = vmatpush.msra.mxu0 %v4263
    %4452 = vmatpush.msra.mxu0 %v4259
    %4453 = vmatmul.f32.gmra.mxu0 %v4295
    %v4454 = vpop.f32.mrf.mxu0
    %v4455 = vadd.f32 %v4435, %v4454
    %4456 = vdwg.mxu0
    %v4457 = vadd.f32 %v4062, %v4335
    %v4458 = vadd.f32 %v4063, %v4375
    %v4459 = vadd.f32 %v4064, %v4415
    %v4460 = vadd.f32 %v4065, %v4455
    %s4461 = scalar_lea.vmem [#allocation2], 1400
    %v4462 = vld [vmem:[%s4461] sm:$0xff]
    %v4463 = vld [vmem:[%s4461 + $0x8] sm:$0xff]
    %v4464 = vld [vmem:[%s4461 + $0x10] sm:$0xff]
    %v4465 = vld [vmem:[%s4461 + $0x18] sm:$0xff]
    %v4466 = vld [vmem:[%s4461 + $0x20] sm:$0xff]
    %v4467 = vld [vmem:[%s4461 + $0x28] sm:$0xff]
    %v4468 = vld [vmem:[%s4461 + $0x30] sm:$0xff]
    %v4469 = vld [vmem:[%s4461 + $0x38] sm:$0xff]
    %v4470 = vld [vmem:[%s4461 + $0x40] sm:$0xff]
    %v4471 = vld [vmem:[%s4461 + $0x48] sm:$0xff]
    %v4472 = vld [vmem:[%s4461 + $0x50] sm:$0xff]
    %v4473 = vld [vmem:[%s4461 + $0x58] sm:$0xff]
    %v4474 = vld [vmem:[%s4461 + $0x60] sm:$0xff]
    %v4475 = vld [vmem:[%s4461 + $0x68] sm:$0xff]
    %v4476 = vld [vmem:[%s4461 + $0x70] sm:$0xff]
    %v4477 = vld [vmem:[%s4461 + $0x78] sm:$0xff]
    %v4478 = vld [vmem:[%s4461 + $0x80] sm:$0xff]
    %v4479 = vld [vmem:[%s4461 + $0x88] sm:$0xff]
    %v4480 = vld [vmem:[%s4461 + $0x90] sm:$0xff]
    %v4481 = vld [vmem:[%s4461 + $0x98] sm:$0xff]
    %v4482 = vld [vmem:[%s4461 + $0xa0] sm:$0xff]
    %v4483 = vld [vmem:[%s4461 + $0xa8] sm:$0xff]
    %v4484 = vld [vmem:[%s4461 + $0xb0] sm:$0xff]
    %v4485 = vld [vmem:[%s4461 + $0xb8] sm:$0xff]
    %v4486 = vld [vmem:[%s4461 + $0xc0] sm:$0xff]
    %v4487 = vunpack.c.0.s8 %v4462
    %v4488 = vunpack.c.1.s8 %v4462
    %v4489 = vunpack.c.2.s8 %v4462
    %v4490 = vunpack.c.3.s8 %v4462
    %v4491 = vunpack.c.0.s8 %v4463
    %v4492 = vunpack.c.1.s8 %v4463
    %v4493 = vunpack.c.2.s8 %v4463
    %v4494 = vunpack.c.3.s8 %v4463
    %v4495 = vunpack.c.0.s8 %v4464
    %v4496 = vunpack.c.1.s8 %v4464
    %v4497 = vunpack.c.2.s8 %v4464
    %v4498 = vunpack.c.3.s8 %v4464
    %v4499 = vunpack.c.0.s8 %v4465
    %v4500 = vunpack.c.1.s8 %v4465
    %v4501 = vunpack.c.2.s8 %v4465
    %v4502 = vunpack.c.3.s8 %v4465
    %v4503 = vunpack.c.0.s8 %v4466
    %v4504 = vunpack.c.1.s8 %v4466
    %v4505 = vunpack.c.2.s8 %v4466
    %v4506 = vunpack.c.3.s8 %v4466
    %v4507 = vunpack.c.0.s8 %v4467
    %v4508 = vunpack.c.1.s8 %v4467
    %v4509 = vunpack.c.2.s8 %v4467
    %v4510 = vunpack.c.3.s8 %v4467
    %v4511 = vunpack.c.0.s8 %v4468
    %v4512 = vunpack.c.1.s8 %v4468
    %v4513 = vunpack.c.2.s8 %v4468
    %v4514 = vunpack.c.3.s8 %v4468
    %v4515 = vunpack.c.0.s8 %v4469
    %v4516 = vunpack.c.1.s8 %v4469
    %v4517 = vunpack.c.2.s8 %v4469
    %v4518 = vunpack.c.3.s8 %v4469
    %v4519 = vunpack.c.0.s8 %v4470
    %v4520 = vunpack.c.1.s8 %v4470
    %v4521 = vunpack.c.2.s8 %v4470
    %v4522 = vunpack.c.3.s8 %v4470
    %v4523 = vunpack.c.0.s8 %v4471
    %v4524 = vunpack.c.1.s8 %v4471
    %v4525 = vunpack.c.2.s8 %v4471
    %v4526 = vunpack.c.3.s8 %v4471
    %v4527 = vunpack.c.0.s8 %v4472
    %v4528 = vunpack.c.1.s8 %v4472
    %v4529 = vunpack.c.2.s8 %v4472
    %v4530 = vunpack.c.3.s8 %v4472
    %v4531 = vunpack.c.0.s8 %v4473
    %v4532 = vunpack.c.1.s8 %v4473
    %v4533 = vunpack.c.2.s8 %v4473
    %v4534 = vunpack.c.3.s8 %v4473
    %v4535 = vunpack.c.0.s8 %v4474
    %v4536 = vunpack.c.1.s8 %v4474
    %v4537 = vunpack.c.2.s8 %v4474
    %v4538 = vunpack.c.3.s8 %v4474
    %v4539 = vunpack.c.0.s8 %v4475
    %v4540 = vunpack.c.1.s8 %v4475
    %v4541 = vunpack.c.2.s8 %v4475
    %v4542 = vunpack.c.3.s8 %v4475
    %v4543 = vunpack.c.0.s8 %v4476
    %v4544 = vunpack.c.1.s8 %v4476
    %v4545 = vunpack.c.2.s8 %v4476
    %v4546 = vunpack.c.3.s8 %v4476
    %v4547 = vunpack.c.0.s8 %v4477
    %v4548 = vunpack.c.1.s8 %v4477
    %v4549 = vunpack.c.2.s8 %v4477
    %v4550 = vunpack.c.3.s8 %v4477
    %v4551 = vunpack.c.0.s8 %v4478
    %v4552 = vunpack.c.1.s8 %v4478
    %v4553 = vunpack.c.2.s8 %v4478
    %v4554 = vunpack.c.3.s8 %v4478
    %v4555 = vunpack.c.0.s8 %v4479
    %v4556 = vunpack.c.1.s8 %v4479
    %v4557 = vunpack.c.2.s8 %v4479
    %v4558 = vunpack.c.3.s8 %v4479
    %v4559 = vunpack.c.0.s8 %v4480
    %v4560 = vunpack.c.1.s8 %v4480
    %v4561 = vunpack.c.2.s8 %v4480
    %v4562 = vunpack.c.3.s8 %v4480
    %v4563 = vunpack.c.0.s8 %v4481
    %v4564 = vunpack.c.1.s8 %v4481
    %v4565 = vunpack.c.2.s8 %v4481
    %v4566 = vunpack.c.3.s8 %v4481
    %v4567 = vunpack.c.0.s8 %v4482
    %v4568 = vunpack.c.1.s8 %v4482
    %v4569 = vunpack.c.2.s8 %v4482
    %v4570 = vunpack.c.3.s8 %v4482
    %v4571 = vunpack.c.0.s8 %v4483
    %v4572 = vunpack.c.1.s8 %v4483
    %v4573 = vunpack.c.2.s8 %v4483
    %v4574 = vunpack.c.3.s8 %v4483
    %v4575 = vunpack.c.0.s8 %v4484
    %v4576 = vunpack.c.1.s8 %v4484
    %v4577 = vunpack.c.2.s8 %v4484
    %v4578 = vunpack.c.3.s8 %v4484
    %v4579 = vunpack.c.0.s8 %v4485
    %v4580 = vunpack.c.1.s8 %v4485
    %v4581 = vunpack.c.2.s8 %v4485
    %v4582 = vunpack.c.3.s8 %v4485
    %v4583 = vunpack.c.0.s8 %v4486
    %v4584 = vunpack.c.1.s8 %v4486
    %v4585 = vunpack.c.2.s8 %v4486
    %v4586 = vunpack.c.3.s8 %v4486
    %v4587 = vcvt.s32.f32 %v4487
    %v4588 = vcvt.s32.f32 %v4488
    %v4589 = vcvt.s32.f32 %v4489
    %v4590 = vcvt.s32.f32 %v4490
    %v4591 = vcvt.s32.f32 %v4491
    %v4592 = vcvt.s32.f32 %v4492
    %v4593 = vcvt.s32.f32 %v4493
    %v4594 = vcvt.s32.f32 %v4494
    %v4595 = vcvt.s32.f32 %v4495
    %v4596 = vcvt.s32.f32 %v4496
    %v4597 = vcvt.s32.f32 %v4497
    %v4598 = vcvt.s32.f32 %v4498
    %v4599 = vcvt.s32.f32 %v4499
    %v4600 = vcvt.s32.f32 %v4500
    %v4601 = vcvt.s32.f32 %v4501
    %v4602 = vcvt.s32.f32 %v4502
    %v4603 = vcvt.s32.f32 %v4503
    %v4604 = vcvt.s32.f32 %v4504
    %v4605 = vcvt.s32.f32 %v4505
    %v4606 = vcvt.s32.f32 %v4506
    %v4607 = vcvt.s32.f32 %v4507
    %v4608 = vcvt.s32.f32 %v4508
    %v4609 = vcvt.s32.f32 %v4509
    %v4610 = vcvt.s32.f32 %v4510
    %v4611 = vcvt.s32.f32 %v4511
    %v4612 = vcvt.s32.f32 %v4512
    %v4613 = vcvt.s32.f32 %v4513
    %v4614 = vcvt.s32.f32 %v4514
    %v4615 = vcvt.s32.f32 %v4515
    %v4616 = vcvt.s32.f32 %v4516
    %v4617 = vcvt.s32.f32 %v4517
    %v4618 = vcvt.s32.f32 %v4518
    %v4619 = vcvt.s32.f32 %v4519
    %v4620 = vcvt.s32.f32 %v4520
    %v4621 = vcvt.s32.f32 %v4521
    %v4622 = vcvt.s32.f32 %v4522
    %v4623 = vcvt.s32.f32 %v4523
    %v4624 = vcvt.s32.f32 %v4524
    %v4625 = vcvt.s32.f32 %v4525
    %v4626 = vcvt.s32.f32 %v4526
    %v4627 = vcvt.s32.f32 %v4527
    %v4628 = vcvt.s32.f32 %v4528
    %v4629 = vcvt.s32.f32 %v4529
    %v4630 = vcvt.s32.f32 %v4530
    %v4631 = vcvt.s32.f32 %v4531
    %v4632 = vcvt.s32.f32 %v4532
    %v4633 = vcvt.s32.f32 %v4533
    %v4634 = vcvt.s32.f32 %v4534
    %v4635 = vcvt.s32.f32 %v4535
    %v4636 = vcvt.s32.f32 %v4536
    %v4637 = vcvt.s32.f32 %v4537
    %v4638 = vcvt.s32.f32 %v4538
    %v4639 = vcvt.s32.f32 %v4539
    %v4640 = vcvt.s32.f32 %v4540
    %v4641 = vcvt.s32.f32 %v4541
    %v4642 = vcvt.s32.f32 %v4542
    %v4643 = vcvt.s32.f32 %v4543
    %v4644 = vcvt.s32.f32 %v4544
    %v4645 = vcvt.s32.f32 %v4545
    %v4646 = vcvt.s32.f32 %v4546
    %v4647 = vcvt.s32.f32 %v4547
    %v4648 = vcvt.s32.f32 %v4548
    %v4649 = vcvt.s32.f32 %v4549
    %v4650 = vcvt.s32.f32 %v4550
    %v4651 = vcvt.s32.f32 %v4551
    %v4652 = vcvt.s32.f32 %v4552
    %v4653 = vcvt.s32.f32 %v4553
    %v4654 = vcvt.s32.f32 %v4554
    %v4655 = vcvt.s32.f32 %v4555
    %v4656 = vcvt.s32.f32 %v4556
    %v4657 = vcvt.s32.f32 %v4557
    %v4658 = vcvt.s32.f32 %v4558
    %v4659 = vcvt.s32.f32 %v4559
    %v4660 = vcvt.s32.f32 %v4560
    %v4661 = vcvt.s32.f32 %v4561
    %v4662 = vcvt.s32.f32 %v4562
    %v4663 = vcvt.s32.f32 %v4563
    %v4664 = vcvt.s32.f32 %v4564
    %v4665 = vcvt.s32.f32 %v4565
    %v4666 = vcvt.s32.f32 %v4566
    %v4667 = vcvt.s32.f32 %v4567
    %v4668 = vcvt.s32.f32 %v4568
    %v4669 = vcvt.s32.f32 %v4569
    %v4670 = vcvt.s32.f32 %v4570
    %v4671 = vcvt.s32.f32 %v4571
    %v4672 = vcvt.s32.f32 %v4572
    %v4673 = vcvt.s32.f32 %v4573
    %v4674 = vcvt.s32.f32 %v4574
    %v4675 = vcvt.s32.f32 %v4575
    %v4676 = vcvt.s32.f32 %v4576
    %v4677 = vcvt.s32.f32 %v4577
    %v4678 = vcvt.s32.f32 %v4578
    %v4679 = vcvt.s32.f32 %v4579
    %v4680 = vcvt.s32.f32 %v4580
    %v4681 = vcvt.s32.f32 %v4581
    %v4682 = vcvt.s32.f32 %v4582
    %v4683 = vcvt.s32.f32 %v4583
    %v4684 = vcvt.s32.f32 %v4584
    %v4685 = vcvt.s32.f32 %v4585
    %v4686 = vcvt.s32.f32 %v4586
    %v4687 = vrot.slane %v1670, 6
    %v4688 = vrot.slane %v1696, 6
    %v4690 = vsel %vm2162, %v4688, 0
    %4692 = vmatpush.msra.mxu0 %v4647
    %4693 = vmatpush.msra.mxu0 %v4643
    %4694 = vmatpush.msra.mxu0 %v4639
    %4695 = vmatpush.msra.mxu0 %v4635
    %4696 = vmatpush.msra.mxu0 %v4631
    %4697 = vmatpush.msra.mxu0 %v4627
    %4698 = vmatpush.msra.mxu0 %v4623
    %4699 = vmatpush.msra.mxu0 %v4619
    %4700 = vmatpush.msra.mxu0 %v4615
    %4701 = vmatpush.msra.mxu0 %v4611
    %4702 = vmatpush.msra.mxu0 %v4607
    %4703 = vmatpush.msra.mxu0 %v4603
    %4704 = vmatpush.msra.mxu0 %v4599
    %4705 = vmatpush.msra.mxu0 %v4595
    %4706 = vmatpush.msra.mxu0 %v4591
    %4707 = vmatpush.msra.mxu0 %v4587
    %4708 = vmatmul.f32.gmra.mxu0 %v4687
    %v4709 = vpop.f32.mrf.mxu0
    %v4710 = vadd.f32 0.0, %v4709
    %4711 = vdwg.mxu0
    %4712 = vmatpush.msra.mxu0 0.0
    %4713 = vmatpush.msra.mxu0 0.0
    %4714 = vmatpush.msra.mxu0 0.0
    %4715 = vmatpush.msra.mxu0 0.0
    %4716 = vmatpush.msra.mxu0 0.0
    %4717 = vmatpush.msra.mxu0 0.0
    %4718 = vmatpush.msra.mxu0 0.0
    %4719 = vmatpush.msra.mxu0 %v4683
    %4720 = vmatpush.msra.mxu0 %v4679
    %4721 = vmatpush.msra.mxu0 %v4675
    %4722 = vmatpush.msra.mxu0 %v4671
    %4723 = vmatpush.msra.mxu0 %v4667
    %4724 = vmatpush.msra.mxu0 %v4663
    %4725 = vmatpush.msra.mxu0 %v4659
    %4726 = vmatpush.msra.mxu0 %v4655
    %4727 = vmatpush.msra.mxu0 %v4651
    %4728 = vmatmul.f32.gmra.mxu0 %v4690
    %v4729 = vpop.f32.mrf.mxu0
    %v4730 = vadd.f32 %v4710, %v4729
    %4731 = vdwg.mxu0
    %4732 = vmatpush.msra.mxu0 %v4648
    %4733 = vmatpush.msra.mxu0 %v4644
    %4734 = vmatpush.msra.mxu0 %v4640
    %4735 = vmatpush.msra.mxu0 %v4636
    %4736 = vmatpush.msra.mxu0 %v4632
    %4737 = vmatpush.msra.mxu0 %v4628
    %4738 = vmatpush.msra.mxu0 %v4624
    %4739 = vmatpush.msra.mxu0 %v4620
    %4740 = vmatpush.msra.mxu0 %v4616
    %4741 = vmatpush.msra.mxu0 %v4612
    %4742 = vmatpush.msra.mxu0 %v4608
    %4743 = vmatpush.msra.mxu0 %v4604
    %4744 = vmatpush.msra.mxu0 %v4600
    %4745 = vmatpush.msra.mxu0 %v4596
    %4746 = vmatpush.msra.mxu0 %v4592
    %4747 = vmatpush.msra.mxu0 %v4588
    %4748 = vmatmul.f32.gmra.mxu0 %v4687
    %v4749 = vpop.f32.mrf.mxu0
    %v4750 = vadd.f32 0.0, %v4749
    %4751 = vdwg.mxu0
    %4752 = vmatpush.msra.mxu0 0.0
    %4753 = vmatpush.msra.mxu0 0.0
    %4754 = vmatpush.msra.mxu0 0.0
    %4755 = vmatpush.msra.mxu0 0.0
    %4756 = vmatpush.msra.mxu0 0.0
    %4757 = vmatpush.msra.mxu0 0.0
    %4758 = vmatpush.msra.mxu0 0.0
    %4759 = vmatpush.msra.mxu0 %v4684
    %4760 = vmatpush.msra.mxu0 %v4680
    %4761 = vmatpush.msra.mxu0 %v4676
    %4762 = vmatpush.msra.mxu0 %v4672
    %4763 = vmatpush.msra.mxu0 %v4668
    %4764 = vmatpush.msra.mxu0 %v4664
    %4765 = vmatpush.msra.mxu0 %v4660
    %4766 = vmatpush.msra.mxu0 %v4656
    %4767 = vmatpush.msra.mxu0 %v4652
    %4768 = vmatmul.f32.gmra.mxu0 %v4690
    %v4769 = vpop.f32.mrf.mxu0
    %v4770 = vadd.f32 %v4750, %v4769
    %4771 = vdwg.mxu0
    %4772 = vmatpush.msra.mxu0 %v4649
    %4773 = vmatpush.msra.mxu0 %v4645
    %4774 = vmatpush.msra.mxu0 %v4641
    %4775 = vmatpush.msra.mxu0 %v4637
    %4776 = vmatpush.msra.mxu0 %v4633
    %4777 = vmatpush.msra.mxu0 %v4629
    %4778 = vmatpush.msra.mxu0 %v4625
    %4779 = vmatpush.msra.mxu0 %v4621
    %4780 = vmatpush.msra.mxu0 %v4617
    %4781 = vmatpush.msra.mxu0 %v4613
    %4782 = vmatpush.msra.mxu0 %v4609
    %4783 = vmatpush.msra.mxu0 %v4605
    %4784 = vmatpush.msra.mxu0 %v4601
    %4785 = vmatpush.msra.mxu0 %v4597
    %4786 = vmatpush.msra.mxu0 %v4593
    %4787 = vmatpush.msra.mxu0 %v4589
    %4788 = vmatmul.f32.gmra.mxu0 %v4687
    %v4789 = vpop.f32.mrf.mxu0
    %v4790 = vadd.f32 0.0, %v4789
    %4791 = vdwg.mxu0
    %4792 = vmatpush.msra.mxu0 0.0
    %4793 = vmatpush.msra.mxu0 0.0
    %4794 = vmatpush.msra.mxu0 0.0
    %4795 = vmatpush.msra.mxu0 0.0
    %4796 = vmatpush.msra.mxu0 0.0
    %4797 = vmatpush.msra.mxu0 0.0
    %4798 = vmatpush.msra.mxu0 0.0
    %4799 = vmatpush.msra.mxu0 %v4685
    %4800 = vmatpush.msra.mxu0 %v4681
    %4801 = vmatpush.msra.mxu0 %v4677
    %4802 = vmatpush.msra.mxu0 %v4673
    %4803 = vmatpush.msra.mxu0 %v4669
    %4804 = vmatpush.msra.mxu0 %v4665
    %4805 = vmatpush.msra.mxu0 %v4661
    %4806 = vmatpush.msra.mxu0 %v4657
    %4807 = vmatpush.msra.mxu0 %v4653
    %4808 = vmatmul.f32.gmra.mxu0 %v4690
    %v4809 = vpop.f32.mrf.mxu0
    %v4810 = vadd.f32 %v4790, %v4809
    %4811 = vdwg.mxu0
    %4812 = vmatpush.msra.mxu0 %v4650
    %4813 = vmatpush.msra.mxu0 %v4646
    %4814 = vmatpush.msra.mxu0 %v4642
    %4815 = vmatpush.msra.mxu0 %v4638
    %4816 = vmatpush.msra.mxu0 %v4634
    %4817 = vmatpush.msra.mxu0 %v4630
    %4818 = vmatpush.msra.mxu0 %v4626
    %4819 = vmatpush.msra.mxu0 %v4622
    %4820 = vmatpush.msra.mxu0 %v4618
    %4821 = vmatpush.msra.mxu0 %v4614
    %4822 = vmatpush.msra.mxu0 %v4610
    %4823 = vmatpush.msra.mxu0 %v4606
    %4824 = vmatpush.msra.mxu0 %v4602
    %4825 = vmatpush.msra.mxu0 %v4598
    %4826 = vmatpush.msra.mxu0 %v4594
    %4827 = vmatpush.msra.mxu0 %v4590
    %4828 = vmatmul.f32.gmra.mxu0 %v4687
    %v4829 = vpop.f32.mrf.mxu0
    %v4830 = vadd.f32 0.0, %v4829
    %4831 = vdwg.mxu0
    %4832 = vmatpush.msra.mxu0 0.0
    %4833 = vmatpush.msra.mxu0 0.0
    %4834 = vmatpush.msra.mxu0 0.0
    %4835 = vmatpush.msra.mxu0 0.0
    %4836 = vmatpush.msra.mxu0 0.0
    %4837 = vmatpush.msra.mxu0 0.0
    %4838 = vmatpush.msra.mxu0 0.0
    %4839 = vmatpush.msra.mxu0 %v4686
    %4840 = vmatpush.msra.mxu0 %v4682
    %4841 = vmatpush.msra.mxu0 %v4678
    %4842 = vmatpush.msra.mxu0 %v4674
    %4843 = vmatpush.msra.mxu0 %v4670
    %4844 = vmatpush.msra.mxu0 %v4666
    %4845 = vmatpush.msra.mxu0 %v4662
    %4846 = vmatpush.msra.mxu0 %v4658
    %4847 = vmatpush.msra.mxu0 %v4654
    %4848 = vmatmul.f32.gmra.mxu0 %v4690
    %v4849 = vpop.f32.mrf.mxu0
    %v4850 = vadd.f32 %v4830, %v4849
    %4851 = vdwg.mxu0
    %v4852 = vadd.f32 %v4457, %v4730
    %v4853 = vadd.f32 %v4458, %v4770
    %v4854 = vadd.f32 %v4459, %v4810
    %v4855 = vadd.f32 %v4460, %v4850
    %s4856 = scalar_lea.vmem [#allocation2], 1600
    %v4857 = vld [vmem:[%s4856] sm:$0xff]
    %v4858 = vld [vmem:[%s4856 + $0x8] sm:$0xff]
    %v4859 = vld [vmem:[%s4856 + $0x10] sm:$0xff]
    %v4860 = vld [vmem:[%s4856 + $0x18] sm:$0xff]
    %v4861 = vld [vmem:[%s4856 + $0x20] sm:$0xff]
    %v4862 = vld [vmem:[%s4856 + $0x28] sm:$0xff]
    %v4863 = vld [vmem:[%s4856 + $0x30] sm:$0xff]
    %v4864 = vld [vmem:[%s4856 + $0x38] sm:$0xff]
    %v4865 = vld [vmem:[%s4856 + $0x40] sm:$0xff]
    %v4866 = vld [vmem:[%s4856 + $0x48] sm:$0xff]
    %v4867 = vld [vmem:[%s4856 + $0x50] sm:$0xff]
    %v4868 = vld [vmem:[%s4856 + $0x58] sm:$0xff]
    %v4869 = vld [vmem:[%s4856 + $0x60] sm:$0xff]
    %v4870 = vld [vmem:[%s4856 + $0x68] sm:$0xff]
    %v4871 = vld [vmem:[%s4856 + $0x70] sm:$0xff]
    %v4872 = vld [vmem:[%s4856 + $0x78] sm:$0xff]
    %v4873 = vld [vmem:[%s4856 + $0x80] sm:$0xff]
    %v4874 = vld [vmem:[%s4856 + $0x88] sm:$0xff]
    %v4875 = vld [vmem:[%s4856 + $0x90] sm:$0xff]
    %v4876 = vld [vmem:[%s4856 + $0x98] sm:$0xff]
    %v4877 = vld [vmem:[%s4856 + $0xa0] sm:$0xff]
    %v4878 = vld [vmem:[%s4856 + $0xa8] sm:$0xff]
    %v4879 = vld [vmem:[%s4856 + $0xb0] sm:$0xff]
    %v4880 = vld [vmem:[%s4856 + $0xb8] sm:$0xff]
    %v4881 = vld [vmem:[%s4856 + $0xc0] sm:$0xff]
    %v4882 = vunpack.c.0.s8 %v4857
    %v4883 = vunpack.c.1.s8 %v4857
    %v4884 = vunpack.c.2.s8 %v4857
    %v4885 = vunpack.c.3.s8 %v4857
    %v4886 = vunpack.c.0.s8 %v4858
    %v4887 = vunpack.c.1.s8 %v4858
    %v4888 = vunpack.c.2.s8 %v4858
    %v4889 = vunpack.c.3.s8 %v4858
    %v4890 = vunpack.c.0.s8 %v4859
    %v4891 = vunpack.c.1.s8 %v4859
    %v4892 = vunpack.c.2.s8 %v4859
    %v4893 = vunpack.c.3.s8 %v4859
    %v4894 = vunpack.c.0.s8 %v4860
    %v4895 = vunpack.c.1.s8 %v4860
    %v4896 = vunpack.c.2.s8 %v4860
    %v4897 = vunpack.c.3.s8 %v4860
    %v4898 = vunpack.c.0.s8 %v4861
    %v4899 = vunpack.c.1.s8 %v4861
    %v4900 = vunpack.c.2.s8 %v4861
    %v4901 = vunpack.c.3.s8 %v4861
    %v4902 = vunpack.c.0.s8 %v4862
    %v4903 = vunpack.c.1.s8 %v4862
    %v4904 = vunpack.c.2.s8 %v4862
    %v4905 = vunpack.c.3.s8 %v4862
    %v4906 = vunpack.c.0.s8 %v4863
    %v4907 = vunpack.c.1.s8 %v4863
    %v4908 = vunpack.c.2.s8 %v4863
    %v4909 = vunpack.c.3.s8 %v4863
    %v4910 = vunpack.c.0.s8 %v4864
    %v4911 = vunpack.c.1.s8 %v4864
    %v4912 = vunpack.c.2.s8 %v4864
    %v4913 = vunpack.c.3.s8 %v4864
    %v4914 = vunpack.c.0.s8 %v4865
    %v4915 = vunpack.c.1.s8 %v4865
    %v4916 = vunpack.c.2.s8 %v4865
    %v4917 = vunpack.c.3.s8 %v4865
    %v4918 = vunpack.c.0.s8 %v4866
    %v4919 = vunpack.c.1.s8 %v4866
    %v4920 = vunpack.c.2.s8 %v4866
    %v4921 = vunpack.c.3.s8 %v4866
    %v4922 = vunpack.c.0.s8 %v4867
    %v4923 = vunpack.c.1.s8 %v4867
    %v4924 = vunpack.c.2.s8 %v4867
    %v4925 = vunpack.c.3.s8 %v4867
    %v4926 = vunpack.c.0.s8 %v4868
    %v4927 = vunpack.c.1.s8 %v4868
    %v4928 = vunpack.c.2.s8 %v4868
    %v4929 = vunpack.c.3.s8 %v4868
    %v4930 = vunpack.c.0.s8 %v4869
    %v4931 = vunpack.c.1.s8 %v4869
    %v4932 = vunpack.c.2.s8 %v4869
    %v4933 = vunpack.c.3.s8 %v4869
    %v4934 = vunpack.c.0.s8 %v4870
    %v4935 = vunpack.c.1.s8 %v4870
    %v4936 = vunpack.c.2.s8 %v4870
    %v4937 = vunpack.c.3.s8 %v4870
    %v4938 = vunpack.c.0.s8 %v4871
    %v4939 = vunpack.c.1.s8 %v4871
    %v4940 = vunpack.c.2.s8 %v4871
    %v4941 = vunpack.c.3.s8 %v4871
    %v4942 = vunpack.c.0.s8 %v4872
    %v4943 = vunpack.c.1.s8 %v4872
    %v4944 = vunpack.c.2.s8 %v4872
    %v4945 = vunpack.c.3.s8 %v4872
    %v4946 = vunpack.c.0.s8 %v4873
    %v4947 = vunpack.c.1.s8 %v4873
    %v4948 = vunpack.c.2.s8 %v4873
    %v4949 = vunpack.c.3.s8 %v4873
    %v4950 = vunpack.c.0.s8 %v4874
    %v4951 = vunpack.c.1.s8 %v4874
    %v4952 = vunpack.c.2.s8 %v4874
    %v4953 = vunpack.c.3.s8 %v4874
    %v4954 = vunpack.c.0.s8 %v4875
    %v4955 = vunpack.c.1.s8 %v4875
    %v4956 = vunpack.c.2.s8 %v4875
    %v4957 = vunpack.c.3.s8 %v4875
    %v4958 = vunpack.c.0.s8 %v4876
    %v4959 = vunpack.c.1.s8 %v4876
    %v4960 = vunpack.c.2.s8 %v4876
    %v4961 = vunpack.c.3.s8 %v4876
    %v4962 = vunpack.c.0.s8 %v4877
    %v4963 = vunpack.c.1.s8 %v4877
    %v4964 = vunpack.c.2.s8 %v4877
    %v4965 = vunpack.c.3.s8 %v4877
    %v4966 = vunpack.c.0.s8 %v4878
    %v4967 = vunpack.c.1.s8 %v4878
    %v4968 = vunpack.c.2.s8 %v4878
    %v4969 = vunpack.c.3.s8 %v4878
    %v4970 = vunpack.c.0.s8 %v4879
    %v4971 = vunpack.c.1.s8 %v4879
    %v4972 = vunpack.c.2.s8 %v4879
    %v4973 = vunpack.c.3.s8 %v4879
    %v4974 = vunpack.c.0.s8 %v4880
    %v4975 = vunpack.c.1.s8 %v4880
    %v4976 = vunpack.c.2.s8 %v4880
    %v4977 = vunpack.c.3.s8 %v4880
    %v4978 = vunpack.c.0.s8 %v4881
    %v4979 = vunpack.c.1.s8 %v4881
    %v4980 = vunpack.c.2.s8 %v4881
    %v4981 = vunpack.c.3.s8 %v4881
    %v4982 = vcvt.s32.f32 %v4882
    %v4983 = vcvt.s32.f32 %v4883
    %v4984 = vcvt.s32.f32 %v4884
    %v4985 = vcvt.s32.f32 %v4885
    %v4986 = vcvt.s32.f32 %v4886
    %v4987 = vcvt.s32.f32 %v4887
    %v4988 = vcvt.s32.f32 %v4888
    %v4989 = vcvt.s32.f32 %v4889
    %v4990 = vcvt.s32.f32 %v4890
    %v4991 = vcvt.s32.f32 %v4891
    %v4992 = vcvt.s32.f32 %v4892
    %v4993 = vcvt.s32.f32 %v4893
    %v4994 = vcvt.s32.f32 %v4894
    %v4995 = vcvt.s32.f32 %v4895
    %v4996 = vcvt.s32.f32 %v4896
    %v4997 = vcvt.s32.f32 %v4897
    %v4998 = vcvt.s32.f32 %v4898
    %v4999 = vcvt.s32.f32 %v4899
    %v5000 = vcvt.s32.f32 %v4900
    %v5001 = vcvt.s32.f32 %v4901
    %v5002 = vcvt.s32.f32 %v4902
    %v5003 = vcvt.s32.f32 %v4903
    %v5004 = vcvt.s32.f32 %v4904
    %v5005 = vcvt.s32.f32 %v4905
    %v5006 = vcvt.s32.f32 %v4906
    %v5007 = vcvt.s32.f32 %v4907
    %v5008 = vcvt.s32.f32 %v4908
    %v5009 = vcvt.s32.f32 %v4909
    %v5010 = vcvt.s32.f32 %v4910
    %v5011 = vcvt.s32.f32 %v4911
    %v5012 = vcvt.s32.f32 %v4912
    %v5013 = vcvt.s32.f32 %v4913
    %v5014 = vcvt.s32.f32 %v4914
    %v5015 = vcvt.s32.f32 %v4915
    %v5016 = vcvt.s32.f32 %v4916
    %v5017 = vcvt.s32.f32 %v4917
    %v5018 = vcvt.s32.f32 %v4918
    %v5019 = vcvt.s32.f32 %v4919
    %v5020 = vcvt.s32.f32 %v4920
    %v5021 = vcvt.s32.f32 %v4921
    %v5022 = vcvt.s32.f32 %v4922
    %v5023 = vcvt.s32.f32 %v4923
    %v5024 = vcvt.s32.f32 %v4924
    %v5025 = vcvt.s32.f32 %v4925
    %v5026 = vcvt.s32.f32 %v4926
    %v5027 = vcvt.s32.f32 %v4927
    %v5028 = vcvt.s32.f32 %v4928
    %v5029 = vcvt.s32.f32 %v4929
    %v5030 = vcvt.s32.f32 %v4930
    %v5031 = vcvt.s32.f32 %v4931
    %v5032 = vcvt.s32.f32 %v4932
    %v5033 = vcvt.s32.f32 %v4933
    %v5034 = vcvt.s32.f32 %v4934
    %v5035 = vcvt.s32.f32 %v4935
    %v5036 = vcvt.s32.f32 %v4936
    %v5037 = vcvt.s32.f32 %v4937
    %v5038 = vcvt.s32.f32 %v4938
    %v5039 = vcvt.s32.f32 %v4939
    %v5040 = vcvt.s32.f32 %v4940
    %v5041 = vcvt.s32.f32 %v4941
    %v5042 = vcvt.s32.f32 %v4942
    %v5043 = vcvt.s32.f32 %v4943
    %v5044 = vcvt.s32.f32 %v4944
    %v5045 = vcvt.s32.f32 %v4945
    %v5046 = vcvt.s32.f32 %v4946
    %v5047 = vcvt.s32.f32 %v4947
    %v5048 = vcvt.s32.f32 %v4948
    %v5049 = vcvt.s32.f32 %v4949
    %v5050 = vcvt.s32.f32 %v4950
    %v5051 = vcvt.s32.f32 %v4951
    %v5052 = vcvt.s32.f32 %v4952
    %v5053 = vcvt.s32.f32 %v4953
    %v5054 = vcvt.s32.f32 %v4954
    %v5055 = vcvt.s32.f32 %v4955
    %v5056 = vcvt.s32.f32 %v4956
    %v5057 = vcvt.s32.f32 %v4957
    %v5058 = vcvt.s32.f32 %v4958
    %v5059 = vcvt.s32.f32 %v4959
    %v5060 = vcvt.s32.f32 %v4960
    %v5061 = vcvt.s32.f32 %v4961
    %v5062 = vcvt.s32.f32 %v4962
    %v5063 = vcvt.s32.f32 %v4963
    %v5064 = vcvt.s32.f32 %v4964
    %v5065 = vcvt.s32.f32 %v4965
    %v5066 = vcvt.s32.f32 %v4966
    %v5067 = vcvt.s32.f32 %v4967
    %v5068 = vcvt.s32.f32 %v4968
    %v5069 = vcvt.s32.f32 %v4969
    %v5070 = vcvt.s32.f32 %v4970
    %v5071 = vcvt.s32.f32 %v4971
    %v5072 = vcvt.s32.f32 %v4972
    %v5073 = vcvt.s32.f32 %v4973
    %v5074 = vcvt.s32.f32 %v4974
    %v5075 = vcvt.s32.f32 %v4975
    %v5076 = vcvt.s32.f32 %v4976
    %v5077 = vcvt.s32.f32 %v4977
    %v5078 = vcvt.s32.f32 %v4978
    %v5079 = vcvt.s32.f32 %v4979
    %v5080 = vcvt.s32.f32 %v4980
    %v5081 = vcvt.s32.f32 %v4981
    %v5083 = vsel %vm2162, %v1699, 0
    %5085 = vmatpush.msra.mxu0 %v5042
    %5086 = vmatpush.msra.mxu0 %v5038
    %5087 = vmatpush.msra.mxu0 %v5034
    %5088 = vmatpush.msra.mxu0 %v5030
    %5089 = vmatpush.msra.mxu0 %v5026
    %5090 = vmatpush.msra.mxu0 %v5022
    %5091 = vmatpush.msra.mxu0 %v5018
    %5092 = vmatpush.msra.mxu0 %v5014
    %5093 = vmatpush.msra.mxu0 %v5010
    %5094 = vmatpush.msra.mxu0 %v5006
    %5095 = vmatpush.msra.mxu0 %v5002
    %5096 = vmatpush.msra.mxu0 %v4998
    %5097 = vmatpush.msra.mxu0 %v4994
    %5098 = vmatpush.msra.mxu0 %v4990
    %5099 = vmatpush.msra.mxu0 %v4986
    %5100 = vmatpush.msra.mxu0 %v4982
    %5101 = vmatmul.f32.gmra.mxu0 %v1673
    %v5102 = vpop.f32.mrf.mxu0
    %v5103 = vadd.f32 0.0, %v5102
    %5104 = vdwg.mxu0
    %5105 = vmatpush.msra.mxu0 0.0
    %5106 = vmatpush.msra.mxu0 0.0
    %5107 = vmatpush.msra.mxu0 0.0
    %5108 = vmatpush.msra.mxu0 0.0
    %5109 = vmatpush.msra.mxu0 0.0
    %5110 = vmatpush.msra.mxu0 0.0
    %5111 = vmatpush.msra.mxu0 0.0
    %5112 = vmatpush.msra.mxu0 %v5078
    %5113 = vmatpush.msra.mxu0 %v5074
    %5114 = vmatpush.msra.mxu0 %v5070
    %5115 = vmatpush.msra.mxu0 %v5066
    %5116 = vmatpush.msra.mxu0 %v5062
    %5117 = vmatpush.msra.mxu0 %v5058
    %5118 = vmatpush.msra.mxu0 %v5054
    %5119 = vmatpush.msra.mxu0 %v5050
    %5120 = vmatpush.msra.mxu0 %v5046
    %5121 = vmatmul.f32.gmra.mxu0 %v5083
    %v5122 = vpop.f32.mrf.mxu0
    %v5123 = vadd.f32 %v5103, %v5122
    %5124 = vdwg.mxu0
    %5125 = vmatpush.msra.mxu0 %v5043
    %5126 = vmatpush.msra.mxu0 %v5039
    %5127 = vmatpush.msra.mxu0 %v5035
    %5128 = vmatpush.msra.mxu0 %v5031
    %5129 = vmatpush.msra.mxu0 %v5027
    %5130 = vmatpush.msra.mxu0 %v5023
    %5131 = vmatpush.msra.mxu0 %v5019
    %5132 = vmatpush.msra.mxu0 %v5015
    %5133 = vmatpush.msra.mxu0 %v5011
    %5134 = vmatpush.msra.mxu0 %v5007
    %5135 = vmatpush.msra.mxu0 %v5003
    %5136 = vmatpush.msra.mxu0 %v4999
    %5137 = vmatpush.msra.mxu0 %v4995
    %5138 = vmatpush.msra.mxu0 %v4991
    %5139 = vmatpush.msra.mxu0 %v4987
    %5140 = vmatpush.msra.mxu0 %v4983
    %5141 = vmatmul.f32.gmra.mxu0 %v1673
    %v5142 = vpop.f32.mrf.mxu0
    %v5143 = vadd.f32 0.0, %v5142
    %5144 = vdwg.mxu0
    %5145 = vmatpush.msra.mxu0 0.0
    %5146 = vmatpush.msra.mxu0 0.0
    %5147 = vmatpush.msra.mxu0 0.0
    %5148 = vmatpush.msra.mxu0 0.0
    %5149 = vmatpush.msra.mxu0 0.0
    %5150 = vmatpush.msra.mxu0 0.0
    %5151 = vmatpush.msra.mxu0 0.0
    %5152 = vmatpush.msra.mxu0 %v5079
    %5153 = vmatpush.msra.mxu0 %v5075
    %5154 = vmatpush.msra.mxu0 %v5071
    %5155 = vmatpush.msra.mxu0 %v5067
    %5156 = vmatpush.msra.mxu0 %v5063
    %5157 = vmatpush.msra.mxu0 %v5059
    %5158 = vmatpush.msra.mxu0 %v5055
    %5159 = vmatpush.msra.mxu0 %v5051
    %5160 = vmatpush.msra.mxu0 %v5047
    %5161 = vmatmul.f32.gmra.mxu0 %v5083
    %v5162 = vpop.f32.mrf.mxu0
    %v5163 = vadd.f32 %v5143, %v5162
    %5164 = vdwg.mxu0
    %5165 = vmatpush.msra.mxu0 %v5044
    %5166 = vmatpush.msra.mxu0 %v5040
    %5167 = vmatpush.msra.mxu0 %v5036
    %5168 = vmatpush.msra.mxu0 %v5032
    %5169 = vmatpush.msra.mxu0 %v5028
    %5170 = vmatpush.msra.mxu0 %v5024
    %5171 = vmatpush.msra.mxu0 %v5020
    %5172 = vmatpush.msra.mxu0 %v5016
    %5173 = vmatpush.msra.mxu0 %v5012
    %5174 = vmatpush.msra.mxu0 %v5008
    %5175 = vmatpush.msra.mxu0 %v5004
    %5176 = vmatpush.msra.mxu0 %v5000
    %5177 = vmatpush.msra.mxu0 %v4996
    %5178 = vmatpush.msra.mxu0 %v4992
    %5179 = vmatpush.msra.mxu0 %v4988
    %5180 = vmatpush.msra.mxu0 %v4984
    %5181 = vmatmul.f32.gmra.mxu0 %v1673
    %v5182 = vpop.f32.mrf.mxu0
    %v5183 = vadd.f32 0.0, %v5182
    %5184 = vdwg.mxu0
    %5185 = vmatpush.msra.mxu0 0.0
    %5186 = vmatpush.msra.mxu0 0.0
    %5187 = vmatpush.msra.mxu0 0.0
    %5188 = vmatpush.msra.mxu0 0.0
    %5189 = vmatpush.msra.mxu0 0.0
    %5190 = vmatpush.msra.mxu0 0.0
    %5191 = vmatpush.msra.mxu0 0.0
    %5192 = vmatpush.msra.mxu0 %v5080
    %5193 = vmatpush.msra.mxu0 %v5076
    %5194 = vmatpush.msra.mxu0 %v5072
    %5195 = vmatpush.msra.mxu0 %v5068
    %5196 = vmatpush.msra.mxu0 %v5064
    %5197 = vmatpush.msra.mxu0 %v5060
    %5198 = vmatpush.msra.mxu0 %v5056
    %5199 = vmatpush.msra.mxu0 %v5052
    %5200 = vmatpush.msra.mxu0 %v5048
    %5201 = vmatmul.f32.gmra.mxu0 %v5083
    %v5202 = vpop.f32.mrf.mxu0
    %v5203 = vadd.f32 %v5183, %v5202
    %5204 = vdwg.mxu0
    %5205 = vmatpush.msra.mxu0 %v5045
    %5206 = vmatpush.msra.mxu0 %v5041
    %5207 = vmatpush.msra.mxu0 %v5037
    %5208 = vmatpush.msra.mxu0 %v5033
    %5209 = vmatpush.msra.mxu0 %v5029
    %5210 = vmatpush.msra.mxu0 %v5025
    %5211 = vmatpush.msra.mxu0 %v5021
    %5212 = vmatpush.msra.mxu0 %v5017
    %5213 = vmatpush.msra.mxu0 %v5013
    %5214 = vmatpush.msra.mxu0 %v5009
    %5215 = vmatpush.msra.mxu0 %v5005
    %5216 = vmatpush.msra.mxu0 %v5001
    %5217 = vmatpush.msra.mxu0 %v4997
    %5218 = vmatpush.msra.mxu0 %v4993
    %5219 = vmatpush.msra.mxu0 %v4989
    %5220 = vmatpush.msra.mxu0 %v4985
    %5221 = vmatmul.f32.gmra.mxu0 %v1673
    %v5222 = vpop.f32.mrf.mxu0
    %v5223 = vadd.f32 0.0, %v5222
    %5224 = vdwg.mxu0
    %5225 = vmatpush.msra.mxu0 0.0
    %5226 = vmatpush.msra.mxu0 0.0
    %5227 = vmatpush.msra.mxu0 0.0
    %5228 = vmatpush.msra.mxu0 0.0
    %5229 = vmatpush.msra.mxu0 0.0
    %5230 = vmatpush.msra.mxu0 0.0
    %5231 = vmatpush.msra.mxu0 0.0
    %5232 = vmatpush.msra.mxu0 %v5081
    %5233 = vmatpush.msra.mxu0 %v5077
    %5234 = vmatpush.msra.mxu0 %v5073
    %5235 = vmatpush.msra.mxu0 %v5069
    %5236 = vmatpush.msra.mxu0 %v5065
    %5237 = vmatpush.msra.mxu0 %v5061
    %5238 = vmatpush.msra.mxu0 %v5057
    %5239 = vmatpush.msra.mxu0 %v5053
    %5240 = vmatpush.msra.mxu0 %v5049
    %5241 = vmatmul.f32.gmra.mxu0 %v5083
    %v5242 = vpop.f32.mrf.mxu0
    %v5243 = vadd.f32 %v5223, %v5242
    %5244 = vdwg.mxu0
    %v5245 = vadd.f32 %v4852, %v5123
    %v5246 = vadd.f32 %v4853, %v5163
    %v5247 = vadd.f32 %v4854, %v5203
    %v5248 = vadd.f32 %v4855, %v5243
    %s5249 = scalar_lea.vmem [#allocation2], 1800
    %v5250 = vld [vmem:[%s5249] sm:$0xff]
    %v5251 = vld [vmem:[%s5249 + $0x8] sm:$0xff]
    %v5252 = vld [vmem:[%s5249 + $0x10] sm:$0xff]
    %v5253 = vld [vmem:[%s5249 + $0x18] sm:$0xff]
    %v5254 = vld [vmem:[%s5249 + $0x20] sm:$0xff]
    %v5255 = vld [vmem:[%s5249 + $0x28] sm:$0xff]
    %v5256 = vld [vmem:[%s5249 + $0x30] sm:$0xff]
    %v5257 = vld [vmem:[%s5249 + $0x38] sm:$0xff]
    %v5258 = vld [vmem:[%s5249 + $0x40] sm:$0xff]
    %v5259 = vld [vmem:[%s5249 + $0x48] sm:$0xff]
    %v5260 = vld [vmem:[%s5249 + $0x50] sm:$0xff]
    %v5261 = vld [vmem:[%s5249 + $0x58] sm:$0xff]
    %v5262 = vld [vmem:[%s5249 + $0x60] sm:$0xff]
    %v5263 = vld [vmem:[%s5249 + $0x68] sm:$0xff]
    %v5264 = vld [vmem:[%s5249 + $0x70] sm:$0xff]
    %v5265 = vld [vmem:[%s5249 + $0x78] sm:$0xff]
    %v5266 = vld [vmem:[%s5249 + $0x80] sm:$0xff]
    %v5267 = vld [vmem:[%s5249 + $0x88] sm:$0xff]
    %v5268 = vld [vmem:[%s5249 + $0x90] sm:$0xff]
    %v5269 = vld [vmem:[%s5249 + $0x98] sm:$0xff]
    %v5270 = vld [vmem:[%s5249 + $0xa0] sm:$0xff]
    %v5271 = vld [vmem:[%s5249 + $0xa8] sm:$0xff]
    %v5272 = vld [vmem:[%s5249 + $0xb0] sm:$0xff]
    %v5273 = vld [vmem:[%s5249 + $0xb8] sm:$0xff]
    %v5274 = vld [vmem:[%s5249 + $0xc0] sm:$0xff]
    %v5275 = vunpack.c.0.s8 %v5250
    %v5276 = vunpack.c.1.s8 %v5250
    %v5277 = vunpack.c.2.s8 %v5250
    %v5278 = vunpack.c.3.s8 %v5250
    %v5279 = vunpack.c.0.s8 %v5251
    %v5280 = vunpack.c.1.s8 %v5251
    %v5281 = vunpack.c.2.s8 %v5251
    %v5282 = vunpack.c.3.s8 %v5251
    %v5283 = vunpack.c.0.s8 %v5252
    %v5284 = vunpack.c.1.s8 %v5252
    %v5285 = vunpack.c.2.s8 %v5252
    %v5286 = vunpack.c.3.s8 %v5252
    %v5287 = vunpack.c.0.s8 %v5253
    %v5288 = vunpack.c.1.s8 %v5253
    %v5289 = vunpack.c.2.s8 %v5253
    %v5290 = vunpack.c.3.s8 %v5253
    %v5291 = vunpack.c.0.s8 %v5254
    %v5292 = vunpack.c.1.s8 %v5254
    %v5293 = vunpack.c.2.s8 %v5254
    %v5294 = vunpack.c.3.s8 %v5254
    %v5295 = vunpack.c.0.s8 %v5255
    %v5296 = vunpack.c.1.s8 %v5255
    %v5297 = vunpack.c.2.s8 %v5255
    %v5298 = vunpack.c.3.s8 %v5255
    %v5299 = vunpack.c.0.s8 %v5256
    %v5300 = vunpack.c.1.s8 %v5256
    %v5301 = vunpack.c.2.s8 %v5256
    %v5302 = vunpack.c.3.s8 %v5256
    %v5303 = vunpack.c.0.s8 %v5257
    %v5304 = vunpack.c.1.s8 %v5257
    %v5305 = vunpack.c.2.s8 %v5257
    %v5306 = vunpack.c.3.s8 %v5257
    %v5307 = vunpack.c.0.s8 %v5258
    %v5308 = vunpack.c.1.s8 %v5258
    %v5309 = vunpack.c.2.s8 %v5258
    %v5310 = vunpack.c.3.s8 %v5258
    %v5311 = vunpack.c.0.s8 %v5259
    %v5312 = vunpack.c.1.s8 %v5259
    %v5313 = vunpack.c.2.s8 %v5259
    %v5314 = vunpack.c.3.s8 %v5259
    %v5315 = vunpack.c.0.s8 %v5260
    %v5316 = vunpack.c.1.s8 %v5260
    %v5317 = vunpack.c.2.s8 %v5260
    %v5318 = vunpack.c.3.s8 %v5260
    %v5319 = vunpack.c.0.s8 %v5261
    %v5320 = vunpack.c.1.s8 %v5261
    %v5321 = vunpack.c.2.s8 %v5261
    %v5322 = vunpack.c.3.s8 %v5261
    %v5323 = vunpack.c.0.s8 %v5262
    %v5324 = vunpack.c.1.s8 %v5262
    %v5325 = vunpack.c.2.s8 %v5262
    %v5326 = vunpack.c.3.s8 %v5262
    %v5327 = vunpack.c.0.s8 %v5263
    %v5328 = vunpack.c.1.s8 %v5263
    %v5329 = vunpack.c.2.s8 %v5263
    %v5330 = vunpack.c.3.s8 %v5263
    %v5331 = vunpack.c.0.s8 %v5264
    %v5332 = vunpack.c.1.s8 %v5264
    %v5333 = vunpack.c.2.s8 %v5264
    %v5334 = vunpack.c.3.s8 %v5264
    %v5335 = vunpack.c.0.s8 %v5265
    %v5336 = vunpack.c.1.s8 %v5265
    %v5337 = vunpack.c.2.s8 %v5265
    %v5338 = vunpack.c.3.s8 %v5265
    %v5339 = vunpack.c.0.s8 %v5266
    %v5340 = vunpack.c.1.s8 %v5266
    %v5341 = vunpack.c.2.s8 %v5266
    %v5342 = vunpack.c.3.s8 %v5266
    %v5343 = vunpack.c.0.s8 %v5267
    %v5344 = vunpack.c.1.s8 %v5267
    %v5345 = vunpack.c.2.s8 %v5267
    %v5346 = vunpack.c.3.s8 %v5267
    %v5347 = vunpack.c.0.s8 %v5268
    %v5348 = vunpack.c.1.s8 %v5268
    %v5349 = vunpack.c.2.s8 %v5268
    %v5350 = vunpack.c.3.s8 %v5268
    %v5351 = vunpack.c.0.s8 %v5269
    %v5352 = vunpack.c.1.s8 %v5269
    %v5353 = vunpack.c.2.s8 %v5269
    %v5354 = vunpack.c.3.s8 %v5269
    %v5355 = vunpack.c.0.s8 %v5270
    %v5356 = vunpack.c.1.s8 %v5270
    %v5357 = vunpack.c.2.s8 %v5270
    %v5358 = vunpack.c.3.s8 %v5270
    %v5359 = vunpack.c.0.s8 %v5271
    %v5360 = vunpack.c.1.s8 %v5271
    %v5361 = vunpack.c.2.s8 %v5271
    %v5362 = vunpack.c.3.s8 %v5271
    %v5363 = vunpack.c.0.s8 %v5272
    %v5364 = vunpack.c.1.s8 %v5272
    %v5365 = vunpack.c.2.s8 %v5272
    %v5366 = vunpack.c.3.s8 %v5272
    %v5367 = vunpack.c.0.s8 %v5273
    %v5368 = vunpack.c.1.s8 %v5273
    %v5369 = vunpack.c.2.s8 %v5273
    %v5370 = vunpack.c.3.s8 %v5273
    %v5371 = vunpack.c.0.s8 %v5274
    %v5372 = vunpack.c.1.s8 %v5274
    %v5373 = vunpack.c.2.s8 %v5274
    %v5374 = vunpack.c.3.s8 %v5274
    %v5375 = vcvt.s32.f32 %v5275
    %v5376 = vcvt.s32.f32 %v5276
    %v5377 = vcvt.s32.f32 %v5277
    %v5378 = vcvt.s32.f32 %v5278
    %v5379 = vcvt.s32.f32 %v5279
    %v5380 = vcvt.s32.f32 %v5280
    %v5381 = vcvt.s32.f32 %v5281
    %v5382 = vcvt.s32.f32 %v5282
    %v5383 = vcvt.s32.f32 %v5283
    %v5384 = vcvt.s32.f32 %v5284
    %v5385 = vcvt.s32.f32 %v5285
    %v5386 = vcvt.s32.f32 %v5286
    %v5387 = vcvt.s32.f32 %v5287
    %v5388 = vcvt.s32.f32 %v5288
    %v5389 = vcvt.s32.f32 %v5289
    %v5390 = vcvt.s32.f32 %v5290
    %v5391 = vcvt.s32.f32 %v5291
    %v5392 = vcvt.s32.f32 %v5292
    %v5393 = vcvt.s32.f32 %v5293
    %v5394 = vcvt.s32.f32 %v5294
    %v5395 = vcvt.s32.f32 %v5295
    %v5396 = vcvt.s32.f32 %v5296
    %v5397 = vcvt.s32.f32 %v5297
    %v5398 = vcvt.s32.f32 %v5298
    %v5399 = vcvt.s32.f32 %v5299
    %v5400 = vcvt.s32.f32 %v5300
    %v5401 = vcvt.s32.f32 %v5301
    %v5402 = vcvt.s32.f32 %v5302
    %v5403 = vcvt.s32.f32 %v5303
    %v5404 = vcvt.s32.f32 %v5304
    %v5405 = vcvt.s32.f32 %v5305
    %v5406 = vcvt.s32.f32 %v5306
    %v5407 = vcvt.s32.f32 %v5307
    %v5408 = vcvt.s32.f32 %v5308
    %v5409 = vcvt.s32.f32 %v5309
    %v5410 = vcvt.s32.f32 %v5310
    %v5411 = vcvt.s32.f32 %v5311
    %v5412 = vcvt.s32.f32 %v5312
    %v5413 = vcvt.s32.f32 %v5313
    %v5414 = vcvt.s32.f32 %v5314
    %v5415 = vcvt.s32.f32 %v5315
    %v5416 = vcvt.s32.f32 %v5316
    %v5417 = vcvt.s32.f32 %v5317
    %v5418 = vcvt.s32.f32 %v5318
    %v5419 = vcvt.s32.f32 %v5319
    %v5420 = vcvt.s32.f32 %v5320
    %v5421 = vcvt.s32.f32 %v5321
    %v5422 = vcvt.s32.f32 %v5322
    %v5423 = vcvt.s32.f32 %v5323
    %v5424 = vcvt.s32.f32 %v5324
    %v5425 = vcvt.s32.f32 %v5325
    %v5426 = vcvt.s32.f32 %v5326
    %v5427 = vcvt.s32.f32 %v5327
    %v5428 = vcvt.s32.f32 %v5328
    %v5429 = vcvt.s32.f32 %v5329
    %v5430 = vcvt.s32.f32 %v5330
    %v5431 = vcvt.s32.f32 %v5331
    %v5432 = vcvt.s32.f32 %v5332
    %v5433 = vcvt.s32.f32 %v5333
    %v5434 = vcvt.s32.f32 %v5334
    %v5435 = vcvt.s32.f32 %v5335
    %v5436 = vcvt.s32.f32 %v5336
    %v5437 = vcvt.s32.f32 %v5337
    %v5438 = vcvt.s32.f32 %v5338
    %v5439 = vcvt.s32.f32 %v5339
    %v5440 = vcvt.s32.f32 %v5340
    %v5441 = vcvt.s32.f32 %v5341
    %v5442 = vcvt.s32.f32 %v5342
    %v5443 = vcvt.s32.f32 %v5343
    %v5444 = vcvt.s32.f32 %v5344
    %v5445 = vcvt.s32.f32 %v5345
    %v5446 = vcvt.s32.f32 %v5346
    %v5447 = vcvt.s32.f32 %v5347
    %v5448 = vcvt.s32.f32 %v5348
    %v5449 = vcvt.s32.f32 %v5349
    %v5450 = vcvt.s32.f32 %v5350
    %v5451 = vcvt.s32.f32 %v5351
    %v5452 = vcvt.s32.f32 %v5352
    %v5453 = vcvt.s32.f32 %v5353
    %v5454 = vcvt.s32.f32 %v5354
    %v5455 = vcvt.s32.f32 %v5355
    %v5456 = vcvt.s32.f32 %v5356
    %v5457 = vcvt.s32.f32 %v5357
    %v5458 = vcvt.s32.f32 %v5358
    %v5459 = vcvt.s32.f32 %v5359
    %v5460 = vcvt.s32.f32 %v5360
    %v5461 = vcvt.s32.f32 %v5361
    %v5462 = vcvt.s32.f32 %v5362
    %v5463 = vcvt.s32.f32 %v5363
    %v5464 = vcvt.s32.f32 %v5364
    %v5465 = vcvt.s32.f32 %v5365
    %v5466 = vcvt.s32.f32 %v5366
    %v5467 = vcvt.s32.f32 %v5367
    %v5468 = vcvt.s32.f32 %v5368
    %v5469 = vcvt.s32.f32 %v5369
    %v5470 = vcvt.s32.f32 %v5370
    %v5471 = vcvt.s32.f32 %v5371
    %v5472 = vcvt.s32.f32 %v5372
    %v5473 = vcvt.s32.f32 %v5373
    %v5474 = vcvt.s32.f32 %v5374
    %v5476 = vrot.slane %v1673, 2
    %v5477 = vrot.slane %v1699, 2
    %v5479 = vsel %vm2162, %v5477, 0
    %5481 = vmatpush.msra.mxu0 %v5435
    %5482 = vmatpush.msra.mxu0 %v5431
    %5483 = vmatpush.msra.mxu0 %v5427
    %5484 = vmatpush.msra.mxu0 %v5423
    %5485 = vmatpush.msra.mxu0 %v5419
    %5486 = vmatpush.msra.mxu0 %v5415
    %5487 = vmatpush.msra.mxu0 %v5411
    %5488 = vmatpush.msra.mxu0 %v5407
    %5489 = vmatpush.msra.mxu0 %v5403
    %5490 = vmatpush.msra.mxu0 %v5399
    %5491 = vmatpush.msra.mxu0 %v5395
    %5492 = vmatpush.msra.mxu0 %v5391
    %5493 = vmatpush.msra.mxu0 %v5387
    %5494 = vmatpush.msra.mxu0 %v5383
    %5495 = vmatpush.msra.mxu0 %v5379
    %5496 = vmatpush.msra.mxu0 %v5375
    %5497 = vmatmul.f32.gmra.mxu0 %v5476
    %v5498 = vpop.f32.mrf.mxu0
    %v5499 = vadd.f32 0.0, %v5498
    %5500 = vdwg.mxu0
    %5501 = vmatpush.msra.mxu0 0.0
    %5502 = vmatpush.msra.mxu0 0.0
    %5503 = vmatpush.msra.mxu0 0.0
    %5504 = vmatpush.msra.mxu0 0.0
    %5505 = vmatpush.msra.mxu0 0.0
    %5506 = vmatpush.msra.mxu0 0.0
    %5507 = vmatpush.msra.mxu0 0.0
    %5508 = vmatpush.msra.mxu0 %v5471
    %5509 = vmatpush.msra.mxu0 %v5467
    %5510 = vmatpush.msra.mxu0 %v5463
    %5511 = vmatpush.msra.mxu0 %v5459
    %5512 = vmatpush.msra.mxu0 %v5455
    %5513 = vmatpush.msra.mxu0 %v5451
    %5514 = vmatpush.msra.mxu0 %v5447
    %5515 = vmatpush.msra.mxu0 %v5443
    %5516 = vmatpush.msra.mxu0 %v5439
    %5517 = vmatmul.f32.gmra.mxu0 %v5479
    %v5518 = vpop.f32.mrf.mxu0
    %v5519 = vadd.f32 %v5499, %v5518
    %5520 = vdwg.mxu0
    %5521 = vmatpush.msra.mxu0 %v5436
    %5522 = vmatpush.msra.mxu0 %v5432
    %5523 = vmatpush.msra.mxu0 %v5428
    %5524 = vmatpush.msra.mxu0 %v5424
    %5525 = vmatpush.msra.mxu0 %v5420
    %5526 = vmatpush.msra.mxu0 %v5416
    %5527 = vmatpush.msra.mxu0 %v5412
    %5528 = vmatpush.msra.mxu0 %v5408
    %5529 = vmatpush.msra.mxu0 %v5404
    %5530 = vmatpush.msra.mxu0 %v5400
    %5531 = vmatpush.msra.mxu0 %v5396
    %5532 = vmatpush.msra.mxu0 %v5392
    %5533 = vmatpush.msra.mxu0 %v5388
    %5534 = vmatpush.msra.mxu0 %v5384
    %5535 = vmatpush.msra.mxu0 %v5380
    %5536 = vmatpush.msra.mxu0 %v5376
    %5537 = vmatmul.f32.gmra.mxu0 %v5476
    %v5538 = vpop.f32.mrf.mxu0
    %v5539 = vadd.f32 0.0, %v5538
    %5540 = vdwg.mxu0
    %5541 = vmatpush.msra.mxu0 0.0
    %5542 = vmatpush.msra.mxu0 0.0
    %5543 = vmatpush.msra.mxu0 0.0
    %5544 = vmatpush.msra.mxu0 0.0
    %5545 = vmatpush.msra.mxu0 0.0
    %5546 = vmatpush.msra.mxu0 0.0
    %5547 = vmatpush.msra.mxu0 0.0
    %5548 = vmatpush.msra.mxu0 %v5472
    %5549 = vmatpush.msra.mxu0 %v5468
    %5550 = vmatpush.msra.mxu0 %v5464
    %5551 = vmatpush.msra.mxu0 %v5460
    %5552 = vmatpush.msra.mxu0 %v5456
    %5553 = vmatpush.msra.mxu0 %v5452
    %5554 = vmatpush.msra.mxu0 %v5448
    %5555 = vmatpush.msra.mxu0 %v5444
    %5556 = vmatpush.msra.mxu0 %v5440
    %5557 = vmatmul.f32.gmra.mxu0 %v5479
    %v5558 = vpop.f32.mrf.mxu0
    %v5559 = vadd.f32 %v5539, %v5558
    %5560 = vdwg.mxu0
    %5561 = vmatpush.msra.mxu0 %v5437
    %5562 = vmatpush.msra.mxu0 %v5433
    %5563 = vmatpush.msra.mxu0 %v5429
    %5564 = vmatpush.msra.mxu0 %v5425
    %5565 = vmatpush.msra.mxu0 %v5421
    %5566 = vmatpush.msra.mxu0 %v5417
    %5567 = vmatpush.msra.mxu0 %v5413
    %5568 = vmatpush.msra.mxu0 %v5409
    %5569 = vmatpush.msra.mxu0 %v5405
    %5570 = vmatpush.msra.mxu0 %v5401
    %5571 = vmatpush.msra.mxu0 %v5397
    %5572 = vmatpush.msra.mxu0 %v5393
    %5573 = vmatpush.msra.mxu0 %v5389
    %5574 = vmatpush.msra.mxu0 %v5385
    %5575 = vmatpush.msra.mxu0 %v5381
    %5576 = vmatpush.msra.mxu0 %v5377
    %5577 = vmatmul.f32.gmra.mxu0 %v5476
    %v5578 = vpop.f32.mrf.mxu0
    %v5579 = vadd.f32 0.0, %v5578
    %5580 = vdwg.mxu0
    %5581 = vmatpush.msra.mxu0 0.0
    %5582 = vmatpush.msra.mxu0 0.0
    %5583 = vmatpush.msra.mxu0 0.0
    %5584 = vmatpush.msra.mxu0 0.0
    %5585 = vmatpush.msra.mxu0 0.0
    %5586 = vmatpush.msra.mxu0 0.0
    %5587 = vmatpush.msra.mxu0 0.0
    %5588 = vmatpush.msra.mxu0 %v5473
    %5589 = vmatpush.msra.mxu0 %v5469
    %5590 = vmatpush.msra.mxu0 %v5465
    %5591 = vmatpush.msra.mxu0 %v5461
    %5592 = vmatpush.msra.mxu0 %v5457
    %5593 = vmatpush.msra.mxu0 %v5453
    %5594 = vmatpush.msra.mxu0 %v5449
    %5595 = vmatpush.msra.mxu0 %v5445
    %5596 = vmatpush.msra.mxu0 %v5441
    %5597 = vmatmul.f32.gmra.mxu0 %v5479
    %v5598 = vpop.f32.mrf.mxu0
    %v5599 = vadd.f32 %v5579, %v5598
    %5600 = vdwg.mxu0
    %5601 = vmatpush.msra.mxu0 %v5438
    %5602 = vmatpush.msra.mxu0 %v5434
    %5603 = vmatpush.msra.mxu0 %v5430
    %5604 = vmatpush.msra.mxu0 %v5426
    %5605 = vmatpush.msra.mxu0 %v5422
    %5606 = vmatpush.msra.mxu0 %v5418
    %5607 = vmatpush.msra.mxu0 %v5414
    %5608 = vmatpush.msra.mxu0 %v5410
    %5609 = vmatpush.msra.mxu0 %v5406
    %5610 = vmatpush.msra.mxu0 %v5402
    %5611 = vmatpush.msra.mxu0 %v5398
    %5612 = vmatpush.msra.mxu0 %v5394
    %5613 = vmatpush.msra.mxu0 %v5390
    %5614 = vmatpush.msra.mxu0 %v5386
    %5615 = vmatpush.msra.mxu0 %v5382
    %5616 = vmatpush.msra.mxu0 %v5378
    %5617 = vmatmul.f32.gmra.mxu0 %v5476
    %v5618 = vpop.f32.mrf.mxu0
    %v5619 = vadd.f32 0.0, %v5618
    %5620 = vdwg.mxu0
    %5621 = vmatpush.msra.mxu0 0.0
    %5622 = vmatpush.msra.mxu0 0.0
    %5623 = vmatpush.msra.mxu0 0.0
    %5624 = vmatpush.msra.mxu0 0.0
    %5625 = vmatpush.msra.mxu0 0.0
    %5626 = vmatpush.msra.mxu0 0.0
    %5627 = vmatpush.msra.mxu0 0.0
    %5628 = vmatpush.msra.mxu0 %v5474
    %5629 = vmatpush.msra.mxu0 %v5470
    %5630 = vmatpush.msra.mxu0 %v5466
    %5631 = vmatpush.msra.mxu0 %v5462
    %5632 = vmatpush.msra.mxu0 %v5458
    %5633 = vmatpush.msra.mxu0 %v5454
    %5634 = vmatpush.msra.mxu0 %v5450
    %5635 = vmatpush.msra.mxu0 %v5446
    %5636 = vmatpush.msra.mxu0 %v5442
    %5637 = vmatmul.f32.gmra.mxu0 %v5479
    %v5638 = vpop.f32.mrf.mxu0
    %v5639 = vadd.f32 %v5619, %v5638
    %5640 = vdwg.mxu0
    %v5641 = vadd.f32 %v5245, %v5519
    %v5642 = vadd.f32 %v5246, %v5559
    %v5643 = vadd.f32 %v5247, %v5599
    %v5644 = vadd.f32 %v5248, %v5639
    %v5646 = vperm.slane %v39, 0
    %v5647 = vperm.slane %v39, 1
    %v5648 = vperm.slane %v39, 2
    %v5649 = vperm.slane %v39, 3
    %v5654 = vadd.f32 %v5641, %v5646
    %v5655 = vadd.f32 %v5642, %v5647
    %v5656 = vadd.f32 %v5643, %v5648
    %v5657 = vadd.f32 %v5644, %v5649
    %v5658 = vmax.f32 %v5654, 0.0
    %v5659 = vmax.f32 %v5655, 0.0
    %v5660 = vmax.f32 %v5656, 0.0
    %v5661 = vmax.f32 %v5657, 0.0
    %v5662 = vld [vmem:[%s4] sm:$0xff]
    %v5663 = vld [vmem:[%s4 + $0x8] sm:$0xff]
    %v5664 = vld [vmem:[%s4 + $0x10] sm:$0xff]
    %v5665 = vld [vmem:[%s4 + $0x18] sm:$0xff]
    %v5666 = vld [vmem:[%s4 + $0x20] sm:$0xff]
    %v5667 = vld [vmem:[%s4 + $0x28] sm:$0xff]
    %v5668 = vld [vmem:[%s4 + $0x30] sm:$0xff]
    %v5669 = vld [vmem:[%s4 + $0x38] sm:$0xff]
    %v5670 = vld [vmem:[%s4 + $0x40] sm:$0xff]
    %v5671 = vld [vmem:[%s4 + $0x48] sm:$0xff]
    %v5672 = vld [vmem:[%s4 + $0x50] sm:$0xff]
    %v5673 = vld [vmem:[%s4 + $0x58] sm:$0xff]
    %v5674 = vld [vmem:[%s4 + $0x60] sm:$0xff]
    %v5675 = vld [vmem:[%s4 + $0x68] sm:$0xff]
    %v5676 = vld [vmem:[%s4 + $0x70] sm:$0xff]
    %v5677 = vld [vmem:[%s4 + $0x78] sm:$0xff]
    %v5678 = vld [vmem:[%s4 + $0x80] sm:$0xff]
    %v5679 = vld [vmem:[%s4 + $0x88] sm:$0xff]
    %v5680 = vld [vmem:[%s4 + $0x90] sm:$0xff]
    %v5681 = vld [vmem:[%s4 + $0x98] sm:$0xff]
    %v5682 = vld [vmem:[%s4 + $0xa0] sm:$0xff]
    %v5683 = vld [vmem:[%s4 + $0xa8] sm:$0xff]
    %v5684 = vld [vmem:[%s4 + $0xb0] sm:$0xff]
    %v5685 = vld [vmem:[%s4 + $0xb8] sm:$0xff]
    %v5686 = vld [vmem:[%s4 + $0xc0] sm:$0xff]
    %v5687 = vld [vmem:[%s4 + $0xc8] sm:$0xff]
    %v5688 = vld [vmem:[%s4 + $0xd0] sm:$0xff]
    %v5689 = vld [vmem:[%s4 + $0xd8] sm:$0xff]
    %v5690 = vld [vmem:[%s4 + $0xe0] sm:$0xff]
    %v5691 = vld [vmem:[%s4 + $0xe8] sm:$0xff]
    %v5692 = vld [vmem:[%s4 + $0xf0] sm:$0xff]
    %v5693 = vld [vmem:[%s4 + $0xf8] sm:$0xff]
    %v5694 = vld [vmem:[%s4 + $0x100] sm:$0xff]
    %v5695 = vld [vmem:[%s4 + $0x108] sm:$0xff]
    %v5696 = vld [vmem:[%s4 + $0x110] sm:$0xff]
    %v5697 = vld [vmem:[%s4 + $0x118] sm:$0xff]
    %v5698 = vld [vmem:[%s4 + $0x120] sm:$0xff]
    %v5699 = vld [vmem:[%s4 + $0x128] sm:$0xff]
    %v5700 = vld [vmem:[%s4 + $0x130] sm:$0xff]
    %v5701 = vld [vmem:[%s4 + $0x138] sm:$0xff]
    %v5702 = vld [vmem:[%s4 + $0x140] sm:$0xff]
    %v5703 = vld [vmem:[%s4 + $0x148] sm:$0xff]
    %v5704 = vld [vmem:[%s4 + $0x150] sm:$0xff]
    %v5705 = vld [vmem:[%s4 + $0x158] sm:$0xff]
    %v5706 = vld [vmem:[%s4 + $0x160] sm:$0xff]
    %v5707 = vld [vmem:[%s4 + $0x168] sm:$0xff]
    %v5708 = vld [vmem:[%s4 + $0x170] sm:$0xff]
    %v5709 = vld [vmem:[%s4 + $0x178] sm:$0xff]
    %v5710 = vld [vmem:[%s4 + $0x180] sm:$0xff]
    %v5711 = vld [vmem:[%s4 + $0x188] sm:$0xff]
    %v5712 = vld [vmem:[%s4 + $0x190] sm:$0xff]
    %v5713 = vld [vmem:[%s4 + $0x198] sm:$0xff]
    %v5714 = vld [vmem:[%s4 + $0x1a0] sm:$0xff]
    %v5715 = vld [vmem:[%s4 + $0x1a8] sm:$0xff]
    %v5716 = vld [vmem:[%s4 + $0x1b0] sm:$0xff]
    %v5717 = vld [vmem:[%s4 + $0x1b8] sm:$0xff]
    %v5718 = vld [vmem:[%s4 + $0x1c0] sm:$0xff]
    %v5719 = vld [vmem:[%s4 + $0x1c8] sm:$0xff]
    %v5720 = vld [vmem:[%s4 + $0x1d0] sm:$0xff]
    %v5721 = vld [vmem:[%s4 + $0x1d8] sm:$0xff]
    %v5722 = vld [vmem:[%s4 + $0x1e0] sm:$0xff]
    %v5723 = vld [vmem:[%s4 + $0x1e8] sm:$0xff]
    %v5724 = vld [vmem:[%s4 + $0x1f0] sm:$0xf]
    %vm5725 = vcmask 949248
    %v5727 = vsel %vm5725, %v5661, 0
    %v5730 = vsel %vm116, %v5724, 0
    %5732 = vmatpush.msra.mxu0 %v5677
    %5733 = vmatpush.msra.mxu0 %v5676
    %5734 = vmatpush.msra.mxu0 %v5675
    %5735 = vmatpush.msra.mxu0 %v5674
    %5736 = vmatpush.msra.mxu0 %v5673
    %5737 = vmatpush.msra.mxu0 %v5672
    %5738 = vmatpush.msra.mxu0 %v5671
    %5739 = vmatpush.msra.mxu0 %v5670
    %5740 = vmatpush.msra.mxu0 %v5669
    %5741 = vmatpush.msra.mxu0 %v5668
    %5742 = vmatpush.msra.mxu0 %v5667
    %5743 = vmatpush.msra.mxu0 %v5666
    %5744 = vmatpush.msra.mxu0 %v5665
    %5745 = vmatpush.msra.mxu0 %v5664
    %5746 = vmatpush.msra.mxu0 %v5663
    %5747 = vmatpush.msra.mxu0 %v5662
    %5748 = vmatmul.f32.gmra.mxu0 %v5658
    %v5749 = vpop.f32.mrf.mxu0
    %v5750 = vadd.f32 %v40, %v5749
    %5751 = vdwg.mxu0
    %5752 = vmatpush.msra.mxu0 %v5693
    %5753 = vmatpush.msra.mxu0 %v5692
    %5754 = vmatpush.msra.mxu0 %v5691
    %5755 = vmatpush.msra.mxu0 %v5690
    %5756 = vmatpush.msra.mxu0 %v5689
    %5757 = vmatpush.msra.mxu0 %v5688
    %5758 = vmatpush.msra.mxu0 %v5687
    %5759 = vmatpush.msra.mxu0 %v5686
    %5760 = vmatpush.msra.mxu0 %v5685
    %5761 = vmatpush.msra.mxu0 %v5684
    %5762 = vmatpush.msra.mxu0 %v5683
    %5763 = vmatpush.msra.mxu0 %v5682
    %5764 = vmatpush.msra.mxu0 %v5681
    %5765 = vmatpush.msra.mxu0 %v5680
    %5766 = vmatpush.msra.mxu0 %v5679
    %5767 = vmatpush.msra.mxu0 %v5678
    %5768 = vmatmul.f32.gmra.mxu0 %v5659
    %v5769 = vpop.f32.mrf.mxu0
    %v5770 = vadd.f32 %v5750, %v5769
    %5771 = vdwg.mxu0
    %5772 = vmatpush.msra.mxu0 %v5709
    %5773 = vmatpush.msra.mxu0 %v5708
    %5774 = vmatpush.msra.mxu0 %v5707
    %5775 = vmatpush.msra.mxu0 %v5706
    %5776 = vmatpush.msra.mxu0 %v5705
    %5777 = vmatpush.msra.mxu0 %v5704
    %5778 = vmatpush.msra.mxu0 %v5703
    %5779 = vmatpush.msra.mxu0 %v5702
    %5780 = vmatpush.msra.mxu0 %v5701
    %5781 = vmatpush.msra.mxu0 %v5700
    %5782 = vmatpush.msra.mxu0 %v5699
    %5783 = vmatpush.msra.mxu0 %v5698
    %5784 = vmatpush.msra.mxu0 %v5697
    %5785 = vmatpush.msra.mxu0 %v5696
    %5786 = vmatpush.msra.mxu0 %v5695
    %5787 = vmatpush.msra.mxu0 %v5694
    %5788 = vmatmul.f32.gmra.mxu0 %v5660
    %v5789 = vpop.f32.mrf.mxu0
    %v5790 = vadd.f32 %v5770, %v5789
    %5791 = vdwg.mxu0
    %5792 = vmatpush.msra.mxu0 0.0
    %5793 = vmatpush.msra.mxu0 %v5730
    %5794 = vmatpush.msra.mxu0 %v5723
    %5795 = vmatpush.msra.mxu0 %v5722
    %5796 = vmatpush.msra.mxu0 %v5721
    %5797 = vmatpush.msra.mxu0 %v5720
    %5798 = vmatpush.msra.mxu0 %v5719
    %5799 = vmatpush.msra.mxu0 %v5718
    %5800 = vmatpush.msra.mxu0 %v5717
    %5801 = vmatpush.msra.mxu0 %v5716
    %5802 = vmatpush.msra.mxu0 %v5715
    %5803 = vmatpush.msra.mxu0 %v5714
    %5804 = vmatpush.msra.mxu0 %v5713
    %5805 = vmatpush.msra.mxu0 %v5712
    %5806 = vmatpush.msra.mxu0 %v5711
    %5807 = vmatpush.msra.mxu0 %v5710
    %5808 = vmatmul.f32.gmra.mxu0 %v5727
    %v5809 = vpop.f32.mrf.mxu0
    %v5810 = vadd.f32 %v5790, %v5809
    %5811 = vdwg.mxu0
    %vm5812 = vcmask 74752
    %v5813 = vsel %vm5812, %v5810, -inf
    %5814 = vmax.xlane.f32.xlu0 %v5813
    %v5815 = vpop.xlane.xlu0 %5814
    %v5816 = vsub.f32 %v5810, %v5815
    %v5817 = vmul.f32 %v5816, 1.442695
    %v5818 = vpow.pop %v5817
    %v5819 = vsel %vm5812, %v5818, 0.0
    %5820 = vadd.xlane.f32.xlu0 %v5819
    %v5821 = vpop.xlane.xlu0 %5820
    %v5822 = vlog2.pop %v5821
    %v5823 = vmul.f32 %v5822, 0.6931472
    %v5824 = vsub.f32 %v5816, %v5823
    %5825 = vst.msk [vmem:[#allocation4] sm:$0x3] %vm5812, %v5824
    // Predicated region
    $region26: #{forward.1} parent=1 // pred_check
      _
    $region27: #{forward.1} parent=1 // pred_check_branch
      %5827 = sbr.rel (0) target = $region29
    $region28: #{forward.1} parent=1 // pred_region
      %5829 = vsyncadd [#allocation5], 0
      %s5831 = sshll.u32 [#allocation4], 4
      %s5832 = int_to_ptr.vmem [resolvable:$true] %s5831
      %s5833 = sshll.u32 %s6, 4
      %s5834 = int_to_ptr.hbm [resolvable:$true] %s5833
      %5836 = dma.vmem_to_hbm [thread:$0]  %s5832, 32, %s5834, [#allocation5]
    $region29: #{forward.1} parent=1 // pred_fallthru
      _
    // Predicated region
    $region30: #{forward.1} parent=1 // pred_check
      _
    $region31: #{forward.1} parent=1 // pred_check_branch
      %5838 = sbr.rel (0) target = $region33
    $region32: #{forward.1} parent=1 // pred_region
      %5840 = dma.done [#allocation5], 32
    $region33: #{forward.1} parent=1 // pred_fallthru
      _
    %5841 = vsyncpa [#allocation5], 1
  %5842 = vsyncmov [#allocation3]
  %s5843 = vpop.sfrf %5842
  %p5844 = scmp.eq.s32.totalorder %s5843, 0
  %p5845 = pneg %p5844
  %5847 = shalt.err (%p5845)

</llo_original>
